<compile_context>
chip_gen: v6e
topology: v6e:2x2x1
jax: 0.10.0
libtpu: 0.0.40
codegen_flags: <defaults>
</compile_context>

<pallas_src>
import math
from functools import partial

import numpy as np
import jax
import jax.numpy as jnp
from jax.experimental import pallas as pl
from jax.experimental.pallas import tpu as pltpu


_VMEM = pl.BlockSpec(memory_space=pltpu.MemorySpace.VMEM)


# ----------------------------------------------------------------------------
# unfold / fold (kernel_size == stride) expressed as 0/1 selection matmuls
# ----------------------------------------------------------------------------
def _sel_matrices(H, W, k):
    """k*k stacked selection matrices, each of shape (H*W, (H//k)*(W//k)).

    S[kh*k+kw][h*W + w, ho*(W//k) + wo] = 1  iff  h == k*ho + kh and
    w == k*wo + kw.  For an activation A of shape (C, H*W):
      * A @ S[t]    gathers tap (kh, kw) of every k x k patch (unfold),
      * U @ S[t].T  scatters tap values onto the k-times-upsampled grid
                    (fold; exact because kernel_size == stride -> no overlap).
    """
    Ho, Wo = H // k, W // k
    mats = np.zeros((k * k, H * W, Ho * Wo), dtype=np.float32)
    ho = np.arange(Ho)[:, None]
    wo = np.arange(Wo)[None, :]
    cols = (ho * Wo + wo).reshape(-1)
    for kh in range(k):
        for kw in range(k):
            rows = ((k * ho + kh) * W + (k * wo + kw)).reshape(-1)
            mats[kh * k + kw, rows, cols] = 1.0
    return jnp.asarray(mats)


def _prefer_gather_first(r_in, r_out, l_in, l_out):
    """Pick the cheaper association for  W @ a @ S  (MAC-count model).

    gather-first:  y = a @ S  (r_in*l_in*l_out)  then  W @ y  (r_out*r_in*l_out)
    mix-first:     y = W @ a  (r_out*r_in*l_in)  then  y @ S  (r_out*l_in*l_out)
    """
    cost_gather_first = r_in * l_in * l_out + r_out * r_in * l_out
    cost_mix_first = r_out * r_in * l_in + r_out * l_in * l_out
    return cost_gather_first <= cost_mix_first


def _num_parallel_groups(N):
    """2 balanced 'parallel' grid steps on 2-TensorCore chips (v7x, and the
    megacore v4/v5p), a single step on 1-TC chips (v5e/v6e) where extra grid
    steps only add per-step pipeline overhead for this us-scale kernel."""
    try:
        kind = jax.devices()[0].device_kind.lower()
    except Exception:
        kind = ""
    two_tc = any(tag in kind for tag in ("v7", "v4", "v5p"))
    if two_tc and N >= 2 and N % 2 == 0:
        return 2
    return 1


# ----------------------------------------------------------------------------
# Fused whole-network kernel: one pallas_call for the entire Sequential.
# Each conv-ish layer becomes
#     a <- act( sum_t  W_tap[t] @ a @ S[t]  + bias )
# with a statically chosen association order per layer; only 2-D matmuls
# (MXU) + elementwise ops (VPU/EUP) appear in the body.
# ----------------------------------------------------------------------------
def _make_fused_kernel(ops):
    """`ops` is a static tuple of ("affine", gather_first) / ("relu",) /
    ("sigmoid",) tags."""

    def kernel(*refs):
        x_ref, o_ref = refs[0], refs[-1]
        prm = refs[1:-1]
        a = x_ref[...]                                   # (R_in, H*W) in VMEM
        pi = 0
        for op in ops:
            if op[0] == "affine":
                gather_first = op[1]
                w_ref = prm[3 * pi]                      # (k*k, R_out, R_in) f32
                s_ref = prm[3 * pi + 1]                  # (k*k, L_in, L_out) bf16
                b_ref = prm[3 * pi + 2]                  # (R_out, 1)         f32
                pi += 1
                acc = None
                for t in range(w_ref.shape[0]):          # static unroll over taps
                    w_t = w_ref[t]
                    s_t = s_ref[t].astype(jnp.float32)   # 0/1: exact in bf16
                    if gather_first:                     # cheaper when R_in<=R_out
                        y = jnp.dot(a, s_t, preferred_element_type=jnp.float32)
                        y = jnp.dot(w_t, y, preferred_element_type=jnp.float32)
                    else:                                # cheaper when R_out<R_in
                        y = jnp.dot(w_t, a, preferred_element_type=jnp.float32)
                        y = jnp.dot(y, s_t, preferred_element_type=jnp.float32)
                    acc = y if acc is None else acc + y
                a = acc + b_ref[...]                     # fused bias epilogue
            elif op[0] == "relu":
                a = jnp.maximum(a, jnp.float32(0.0))     # fused activation
            elif op[0] == "sigmoid":
                a = jax.nn.sigmoid(a)                    # fused activation
        o_ref[...] = a.astype(o_ref.dtype)

    return kernel


# ----------------------------------------------------------------------------
# Standalone elementwise path (only used when ReLU/Sigmoid are called outside
# a Sequential).  Lane-dense (8, multiple-of-128) layout, pad skipped when the
# element count is already a multiple of 1024.
# ----------------------------------------------------------------------------
def _eltwise_kernel(fn, x_ref, o_ref):
    o_ref[...] = fn(x_ref[...])


def _elementwise(fn, x):
    shape, total = x.shape, x.size
    lanes = -(-(-(-total // 8)) // 128) * 128            # ceil(total/8) -> mult of 128
    padded = 8 * lanes
    xf = x.reshape(-1).astype(jnp.float32)
    if padded != total:
        xf = jnp.pad(xf, (0, padded - total))
    x2 = xf.reshape(8, lanes)
    y = pl.pallas_call(
        partial(_eltwise_kernel, fn),
        out_shape=jax.ShapeDtypeStruct((8, lanes), jnp.float32),
        in_specs=[_VMEM],
        out_specs=_VMEM,
    )(x2)
    y = y.reshape(-1)
    if padded != total:
        y = y[:total]
    return y.reshape(shape)


# ----------------------------------------------------------------------------
# Module / Sequential (mirrors the PyTorch reference forward semantics)
# ----------------------------------------------------------------------------
class Module:
    def forward(self, inp):
        raise NotImplementedError

    def zero_grad(self):
        return

    def param(self):
        return []


class ReLU(Module):
    name = "ReLU"

    def forward(self, x):
        return _elementwise(lambda v: jnp.maximum(v, jnp.float32(0.0)), x)


class Sigmoid(Module):
    name = "Sigmoid"

    def forward(self, x):
        return _elementwise(jax.nn.sigmoid, x)


class Conv2d(Module):
    """Conv2d with kernel_size == stride (non-overlapping patches)."""

    name = "Conv2d"

    def __init__(self, in_ch, out_ch, kernel_size, stride, key):
        assert kernel_size == stride, "this kernel supports kernel_size == stride"
        self.in_ch, self.out_ch, self.k = in_ch, out_ch, kernel_size
        fan_in = in_ch * kernel_size * kernel_size
        bound = 1.0 / math.sqrt(fan_in)
        k1, k2 = jax.random.split(key)
        self.weight = jax.random.uniform(
            k1, (out_ch, in_ch, kernel_size, kernel_size),
            minval=-bound, maxval=bound, dtype=jnp.float32)
        self.bias = jax.random.uniform(
            k2, (out_ch,), minval=-bound, maxval=bound, dtype=jnp.float32)
        self._seq = None                                  # cached standalone wrapper

    def param(self):
        return [self.weight, self.bias]

    def forward(self, x):
        if self._seq is None:
            self._seq = Sequential(self)
        return self._seq.forward(x)


class ConvTranspose2d(Module):
    """ConvTranspose2d with kernel_size == stride (non-overlapping fold)."""

    name = "ConvTranspose2d"

    def __init__(self, in_ch, out_ch, kernel_size, stride, key):
        assert kernel_size == stride, "this kernel supports kernel_size == stride"
        self.in_ch, self.out_ch, self.k = in_ch, out_ch, kernel_size
        fan_in = in_ch * kernel_size * kernel_size
        bound = 1.0 / math.sqrt(fan_in)
        k1, k2 = jax.random.split(key)
        # PyTorch ConvTranspose2d weight layout: (C_in, C_out, kH, kW)
        self.weight = jax.random.uniform(
            k1, (in_ch, out_ch, kernel_size, kernel_size),
            minval=-bound, maxval=bound, dtype=jnp.float32)
        self.bias = jax.random.uniform(
            k2, (out_ch,), minval=-bound, maxval=bound, dtype=jnp.float32)
        self._seq = None

    def param(self):
        return [self.weight, self.bias]

    def forward(self, x):
        if self._seq is None:
            self._seq = Sequential(self)
        return self._seq.forward(x)


class Sequential(Module):
    def __init__(self, *args):
        super().__init__()
        self.layer_list = list(args)
        self._plan_cache = {}

    # ---- build the fused single-kernel execution plan -----------------------
    # The cached plan holds only STRUCTURAL data (ops, shape-derived selection
    # matrices, the jitted callable).  Weights/biases are read fresh from the
    # layers every forward and passed as runtime args, so updates are never
    # stale.
    def _build_plan(self, N, C, H, W):
        key = (N, C, H, W)
        plan = self._plan_cache.get(key)
        if plan is not None:
            return plan

        G = _num_parallel_groups(N)                       # grid steps (chip-aware)
        n_grp = N // G                                    # samples folded per step

        ops = []                                          # static kernel tags
        sels = []                                         # bf16 selection matrices
        affine_meta = []                                  # (is_transpose, k)
        affine_layers = []                                # layer objects (live params)
        c, h, w = C, H, W
        for layer in self.layer_list:
            if isinstance(layer, Conv2d):
                k = layer.k
                assert c == layer.in_ch and h % k == 0 and w % k == 0
                sel = _sel_matrices(h, w, k).astype(jnp.bfloat16)      # unfold
                l_in, l_out = h * w, (h // k) * (w // k)
                gf = _prefer_gather_first(n_grp * c, n_grp * layer.out_ch, l_in, l_out)
                ops.append(("affine", gf))
                sels.append(sel)
                affine_meta.append((False, k))
                affine_layers.append(layer)
                c, h, w = layer.out_ch, h // k, w // k
            elif isinstance(layer, ConvTranspose2d):
                k = layer.k
                assert c == layer.in_ch
                # fold (col2im) = transpose of the unfold selection matrices
                sel = jnp.transpose(_sel_matrices(h * k, w * k, k),
                                    (0, 2, 1)).astype(jnp.bfloat16)
                l_in, l_out = h * w, (h * k) * (w * k)
                gf = _prefer_gather_first(n_grp * c, n_grp * layer.out_ch, l_in, l_out)
                ops.append(("affine", gf))
                sels.append(sel)
                affine_meta.append((True, k))
                affine_layers.append(layer)
                c, h, w = layer.out_ch, h * k, w * k
            elif isinstance(layer, ReLU):
                ops.append(("relu",))
            elif isinstance(layer, Sigmoid):
                ops.append(("sigmoid",))
            else:
                raise NotImplementedError(f"unsupported layer: {layer!r}")
        oc, oh, ow = c, h, w

        kernel = _make_fused_kernel(tuple(ops))
        n_affine = len(affine_layers)

        pc = pl.pallas_call(
            kernel,
            out_shape=jax.ShapeDtypeStruct((G, n_grp * oc, oh * ow), jnp.float32),
            grid=(G,),                                    # 1 step (v5e/v6e), 2 (v7x)
            in_specs=[pl.BlockSpec((None, n_grp * C, H * W), lambda g: (g, 0, 0))]
                     + [_VMEM] * (3 * n_affine),
            out_specs=pl.BlockSpec((None, n_grp * oc, oh * ow), lambda g: (g, 0, 0)),
            compiler_params=pltpu.CompilerParams(
                dimension_semantics=("parallel",)),
        )

        sels_t = tuple(sels)
        meta_t = tuple(affine_meta)

        def run(x, params):
            # params: tuple of (weight, bias) per affine layer (always current).
            x2 = x.reshape(G, n_grp * C, H * W).astype(jnp.float32)   # free reshape
            tensors = []
            for (wgt, b), sel, (is_t, k) in zip(params, sels_t, meta_t):
                if is_t:   # ConvTranspose2d layout (C_in, C_out, kH, kW)
                    taps = [wgt[:, :, kh, kw].T for kh in range(k) for kw in range(k)]
                else:      # Conv2d layout (C_out, C_in, kH, kW)
                    taps = [wgt[:, :, kh, kw] for kh in range(k) for kw in range(k)]
                wt = jnp.stack(taps).astype(jnp.float32)   # (k*k, C_out, C_in)
                if n_grp > 1:
                    # batch folded into sublanes -> block-diagonal channel mix
                    eye = jnp.eye(n_grp, dtype=wt.dtype)
                    t_, co, ci = wt.shape
                    wt = jnp.einsum("ij,tab->tiajb", eye, wt).reshape(
                        t_, n_grp * co, n_grp * ci)
                bias_col = jnp.tile(b.astype(jnp.float32), n_grp).reshape(-1, 1)
                tensors += [wt, sel, bias_col]
            out = pc(x2, *tensors)
            return out.reshape(N, oc, oh, ow)              # free reshape

        plan = (jax.jit(run), tuple(affine_layers))
        self._plan_cache[key] = plan
        return plan

    # ---- fused forward: ONE pallas_call for the whole stack ------------------
    def forward(self, x):
        N, C, H, W = x.shape
        fn, affine_layers = self._build_plan(N, C, H, W)
        params = tuple((layer.weight, layer.bias) for layer in affine_layers)
        return fn(x, params)

    def param(self):
        return [p for layer in self.layer_list for p in layer.param()]

    def params(self):
        return self.layer_list

    # TODO(synk): backward / zero_grad gradients / load_model (training-side
    # methods of the reference module) are not kernelized; only forward is.


# ----------------------------------------------------------------------------
# Pure-JAX (XLA) reference of the same forward pass, for a correctness check.
# ----------------------------------------------------------------------------
def _ref_conv2d(layer, x):
    N, C, H, W = x.shape
    k = layer.k
    Ho, Wo = H // k, W // k
    cols = x.reshape(N, C, Ho, k, Wo, k).transpose(0, 1, 3, 5, 2, 4)
    cols = cols.reshape(N, C * k * k, Ho * Wo).transpose(1, 0, 2)
    cols = cols.reshape(C * k * k, N * Ho * Wo)
    w = layer.weight.reshape(layer.out_ch, C * k * k)
    out = w @ cols + layer.bias[:, None]
    out = out.reshape(layer.out_ch, N, Ho * Wo).transpose(1, 0, 2)
    return out.reshape(N, layer.out_ch, Ho, Wo)


def _ref_tconv2d(layer, x):
    N, C, H, W = x.shape
    k = layer.k
    cols = x.reshape(N, C, H * W).transpose(1, 0, 2).reshape(C, N * H * W)
    w = layer.weight.reshape(C, layer.out_ch * k * k)
    out = w.T @ cols + jnp.repeat(layer.bias, k * k)[:, None]
    out = out.reshape(layer.out_ch, k, k, N, H, W).transpose(3, 0, 4, 1, 5, 2)
    return out.reshape(N, layer.out_ch, H * k, W * k)


def _reference_forward(model, x):
    out = x
    for layer in model.layer_list:
        if isinstance(layer, Conv2d):
            out = _ref_conv2d(layer, out)
        elif isinstance(layer, ConvTranspose2d):
            out = _ref_tconv2d(layer, out)
        elif isinstance(layer, ReLU):
            out = jnp.maximum(out, 0.0)
        elif isinstance(layer, Sigmoid):
            out = jax.nn.sigmoid(out)
    return out


# ----------------------------------------------------------------------------
# Main
# ----------------------------------------------------------------------------
if __name__ == "__main__":
    key = jax.random.PRNGKey(0)
    kx, k1, k2, k3, k4 = jax.random.split(key, 5)

    # Representative Miniproject-2 denoiser-style stack at small shapes.
    model = Sequential(
        Conv2d(4, 8, 2, 2, k1), ReLU(),
        Conv2d(8, 8, 2, 2, k2), ReLU(),
        ConvTranspose2d(8, 8, 2, 2, k3), ReLU(),
        ConvTranspose2d(8, 4, 2, 2, k4), Sigmoid(),
    )

    x = jax.random.normal(kx, (2, 4, 16, 16), dtype=jnp.float32)  # NCHW

    out = jax.block_until_ready(model.forward(x))
    assert out.shape == (2, 4, 16, 16), out.shape
    assert bool(jnp.all((out >= 0.0) & (out <= 1.0))), "sigmoid range check failed"

    # Second forward hits the cached jitted plan (no re-trace / re-lower).
    out2 = jax.block_until_ready(model.forward(x))
    assert bool(jnp.allclose(out, out2)), "cached-plan forward mismatch"

    # Numerical check against the plain-JAX reference of the same stack.
    ref = jax.block_until_ready(_reference_forward(model, x))
    assert bool(jnp.allclose(out, ref, atol=1e-4, rtol=1e-4)), \
        float(jnp.max(jnp.abs(out - ref)))

    # Standalone (non-fused) activation path smoke test.
    r = jax.block_until_ready(ReLU().forward(x[:1, :1]))
    assert bool(jnp.allclose(r, jnp.maximum(x[:1, :1], 0.0))), "standalone ReLU failed"

    print("KERNEL_OK")
</pallas_src>

<mosaic_0001>
module attributes {stable_mosaic.version = 11 : i64} {
  func.func @kernel(%arg0: i32, %arg1: memref<1x8x256xf32, #tpu.memory_space<vmem>>, %arg2: memref<4x16x8xf32, #tpu.memory_space<vmem>>, %arg3: memref<4x256x64xbf16, #tpu.memory_space<vmem>>, %arg4: memref<16x1xf32, #tpu.memory_space<vmem>>, %arg5: memref<4x16x16xf32, #tpu.memory_space<vmem>>, %arg6: memref<4x64x16xbf16, #tpu.memory_space<vmem>>, %arg7: memref<16x1xf32, #tpu.memory_space<vmem>>, %arg8: memref<4x16x16xf32, #tpu.memory_space<vmem>>, %arg9: memref<4x16x64xbf16, #tpu.memory_space<vmem>>, %arg10: memref<16x1xf32, #tpu.memory_space<vmem>>, %arg11: memref<4x8x16xf32, #tpu.memory_space<vmem>>, %arg12: memref<4x64x256xbf16, #tpu.memory_space<vmem>>, %arg13: memref<8x1xf32, #tpu.memory_space<vmem>>, %arg14: memref<1x8x256xf32, #tpu.memory_space<vmem>>) attributes {dimension_semantics = [#tpu.dimension_semantics<parallel>], iteration_bounds = array<i64: 1>, scalar_prefetch = 0 : i64, scratch_operands = 0 : i64, tpu.core_type = #tpu.core_type<tc>, window_params = [{transform_indices = @transform_0, window_bounds = array<i64: 1, 8, 256>}, {pipeline_mode = #tpu.pipeline_mode<synchronous>, transform_indices = @transform_1, window_bounds = array<i64: 4, 16, 8>}, {pipeline_mode = #tpu.pipeline_mode<synchronous>, transform_indices = @transform_2, window_bounds = array<i64: 4, 256, 64>}, {pipeline_mode = #tpu.pipeline_mode<synchronous>, transform_indices = @transform_3, window_bounds = array<i64: 16, 1>}, {pipeline_mode = #tpu.pipeline_mode<synchronous>, transform_indices = @transform_4, window_bounds = array<i64: 4, 16, 16>}, {pipeline_mode = #tpu.pipeline_mode<synchronous>, transform_indices = @transform_5, window_bounds = array<i64: 4, 64, 16>}, {pipeline_mode = #tpu.pipeline_mode<synchronous>, transform_indices = @transform_6, window_bounds = array<i64: 16, 1>}, {pipeline_mode = #tpu.pipeline_mode<synchronous>, transform_indices = @transform_7, window_bounds = array<i64: 4, 16, 16>}, {pipeline_mode = #tpu.pipeline_mode<synchronous>, transform_indices = @transform_8, window_bounds = array<i64: 4, 16, 64>}, {pipeline_mode = #tpu.pipeline_mode<synchronous>, transform_indices = @transform_9, window_bounds = array<i64: 16, 1>}, {pipeline_mode = #tpu.pipeline_mode<synchronous>, transform_indices = @transform_10, window_bounds = array<i64: 4, 8, 16>}, {pipeline_mode = #tpu.pipeline_mode<synchronous>, transform_indices = @transform_11, window_bounds = array<i64: 4, 64, 256>}, {pipeline_mode = #tpu.pipeline_mode<synchronous>, transform_indices = @transform_12, window_bounds = array<i64: 8, 1>}, {transform_indices = @transform_13, window_bounds = array<i64: 1, 8, 256>}]} {
    %c0 = arith.constant 0 : index
    %c0_0 = arith.constant 0 : index
    %c0_1 = arith.constant 0 : index
    %0 = vector.load %arg1[%c0, %c0_0, %c0_1] : memref<1x8x256xf32, #tpu.memory_space<vmem>>, vector<1x8x256xf32>
    %1 = vector.shape_cast %0 : vector<1x8x256xf32> to vector<8x256xf32>
    %c0_2 = arith.constant 0 : index
    %c0_3 = arith.constant 0 : index
    %c0_4 = arith.constant 0 : index
    %2 = vector.load %arg2[%c0_2, %c0_3, %c0_4] : memref<4x16x8xf32, #tpu.memory_space<vmem>>, vector<1x16x8xf32>
    %3 = vector.shape_cast %2 : vector<1x16x8xf32> to vector<16x8xf32>
    %c0_5 = arith.constant 0 : index
    %c0_6 = arith.constant 0 : index
    %c0_7 = arith.constant 0 : index
    %4 = vector.load %arg3[%c0_5, %c0_6, %c0_7] : memref<4x256x64xbf16, #tpu.memory_space<vmem>>, vector<1x256x64xbf16>
    %5 = vector.shape_cast %4 : vector<1x256x64xbf16> to vector<256x64xbf16>
    %6 = arith.extf %5 : vector<256x64xbf16> to vector<256x64xf32>
    %cst = arith.constant dense<0.000000e+00> : vector<8x64xf32>
    %7 = tpu.matmul %1, %6, %cst {dimension_numbers = #tpu.dot_dimension_numbers<[1], [0], [0], [1], [0, 0, 1, 1], [], []>} : vector<8x256xf32>, vector<256x64xf32>, vector<8x64xf32> -> vector<8x64xf32>
    %cst_8 = arith.constant dense<0.000000e+00> : vector<16x64xf32>
    %8 = tpu.matmul %3, %7, %cst_8 {dimension_numbers = #tpu.dot_dimension_numbers<[1], [0], [0], [1], [0, 0, 1, 1], [], []>} : vector<16x8xf32>, vector<8x64xf32>, vector<16x64xf32> -> vector<16x64xf32>
    %c1 = arith.constant 1 : index
    %c0_9 = arith.constant 0 : index
    %c0_10 = arith.constant 0 : index
    %9 = vector.load %arg2[%c1, %c0_9, %c0_10] : memref<4x16x8xf32, #tpu.memory_space<vmem>>, vector<1x16x8xf32>
    %10 = vector.shape_cast %9 : vector<1x16x8xf32> to vector<16x8xf32>
    %c1_11 = arith.constant 1 : index
    %c0_12 = arith.constant 0 : index
    %c0_13 = arith.constant 0 : index
    %11 = vector.load %arg3[%c1_11, %c0_12, %c0_13] : memref<4x256x64xbf16, #tpu.memory_space<vmem>>, vector<1x256x64xbf16>
    %12 = vector.shape_cast %11 : vector<1x256x64xbf16> to vector<256x64xbf16>
    %13 = arith.extf %12 : vector<256x64xbf16> to vector<256x64xf32>
    %cst_14 = arith.constant dense<0.000000e+00> : vector<8x64xf32>
    %14 = tpu.matmul %1, %13, %cst_14 {dimension_numbers = #tpu.dot_dimension_numbers<[1], [0], [0], [1], [0, 0, 1, 1], [], []>} : vector<8x256xf32>, vector<256x64xf32>, vector<8x64xf32> -> vector<8x64xf32>
    %cst_15 = arith.constant dense<0.000000e+00> : vector<16x64xf32>
    %15 = tpu.matmul %10, %14, %cst_15 {dimension_numbers = #tpu.dot_dimension_numbers<[1], [0], [0], [1], [0, 0, 1, 1], [], []>} : vector<16x8xf32>, vector<8x64xf32>, vector<16x64xf32> -> vector<16x64xf32>
    %16 = arith.addf %8, %15 : vector<16x64xf32>
    %c2 = arith.constant 2 : index
    %c0_16 = arith.constant 0 : index
    %c0_17 = arith.constant 0 : index
    %17 = vector.load %arg2[%c2, %c0_16, %c0_17] : memref<4x16x8xf32, #tpu.memory_space<vmem>>, vector<1x16x8xf32>
    %18 = vector.shape_cast %17 : vector<1x16x8xf32> to vector<16x8xf32>
    %c2_18 = arith.constant 2 : index
    %c0_19 = arith.constant 0 : index
    %c0_20 = arith.constant 0 : index
    %19 = vector.load %arg3[%c2_18, %c0_19, %c0_20] : memref<4x256x64xbf16, #tpu.memory_space<vmem>>, vector<1x256x64xbf16>
    %20 = vector.shape_cast %19 : vector<1x256x64xbf16> to vector<256x64xbf16>
    %21 = arith.extf %20 : vector<256x64xbf16> to vector<256x64xf32>
    %cst_21 = arith.constant dense<0.000000e+00> : vector<8x64xf32>
    %22 = tpu.matmul %1, %21, %cst_21 {dimension_numbers = #tpu.dot_dimension_numbers<[1], [0], [0], [1], [0, 0, 1, 1], [], []>} : vector<8x256xf32>, vector<256x64xf32>, vector<8x64xf32> -> vector<8x64xf32>
    %cst_22 = arith.constant dense<0.000000e+00> : vector<16x64xf32>
    %23 = tpu.matmul %18, %22, %cst_22 {dimension_numbers = #tpu.dot_dimension_numbers<[1], [0], [0], [1], [0, 0, 1, 1], [], []>} : vector<16x8xf32>, vector<8x64xf32>, vector<16x64xf32> -> vector<16x64xf32>
    %24 = arith.addf %16, %23 : vector<16x64xf32>
    %c3 = arith.constant 3 : index
    %c0_23 = arith.constant 0 : index
    %c0_24 = arith.constant 0 : index
    %25 = vector.load %arg2[%c3, %c0_23, %c0_24] : memref<4x16x8xf32, #tpu.memory_space<vmem>>, vector<1x16x8xf32>
    %26 = vector.shape_cast %25 : vector<1x16x8xf32> to vector<16x8xf32>
    %c3_25 = arith.constant 3 : index
    %c0_26 = arith.constant 0 : index
    %c0_27 = arith.constant 0 : index
    %27 = vector.load %arg3[%c3_25, %c0_26, %c0_27] : memref<4x256x64xbf16, #tpu.memory_space<vmem>>, vector<1x256x64xbf16>
    %28 = vector.shape_cast %27 : vector<1x256x64xbf16> to vector<256x64xbf16>
    %29 = arith.extf %28 : vector<256x64xbf16> to vector<256x64xf32>
    %cst_28 = arith.constant dense<0.000000e+00> : vector<8x64xf32>
    %30 = tpu.matmul %1, %29, %cst_28 {dimension_numbers = #tpu.dot_dimension_numbers<[1], [0], [0], [1], [0, 0, 1, 1], [], []>} : vector<8x256xf32>, vector<256x64xf32>, vector<8x64xf32> -> vector<8x64xf32>
    %cst_29 = arith.constant dense<0.000000e+00> : vector<16x64xf32>
    %31 = tpu.matmul %26, %30, %cst_29 {dimension_numbers = #tpu.dot_dimension_numbers<[1], [0], [0], [1], [0, 0, 1, 1], [], []>} : vector<16x8xf32>, vector<8x64xf32>, vector<16x64xf32> -> vector<16x64xf32>
    %32 = arith.addf %24, %31 : vector<16x64xf32>
    %c0_30 = arith.constant 0 : index
    %c0_31 = arith.constant 0 : index
    %33 = vector.load %arg4[%c0_30, %c0_31] : memref<16x1xf32, #tpu.memory_space<vmem>>, vector<16x1xf32>
    %34 = vector.broadcast %33 : vector<16x1xf32> to vector<16x64xf32>
    %35 = arith.addf %32, %34 : vector<16x64xf32>
    %cst_32 = arith.constant 0.000000e+00 : f32
    %36 = vector.broadcast %cst_32 : f32 to vector<16x64xf32>
    %37 = arith.maximumf %35, %36 : vector<16x64xf32>
    %c0_33 = arith.constant 0 : index
    %c0_34 = arith.constant 0 : index
    %c0_35 = arith.constant 0 : index
    %38 = vector.load %arg5[%c0_33, %c0_34, %c0_35] : memref<4x16x16xf32, #tpu.memory_space<vmem>>, vector<1x16x16xf32>
    %39 = vector.shape_cast %38 : vector<1x16x16xf32> to vector<16x16xf32>
    %c0_36 = arith.constant 0 : index
    %c0_37 = arith.constant 0 : index
    %c0_38 = arith.constant 0 : index
    %40 = vector.load %arg6[%c0_36, %c0_37, %c0_38] : memref<4x64x16xbf16, #tpu.memory_space<vmem>>, vector<1x64x16xbf16>
    %41 = vector.shape_cast %40 : vector<1x64x16xbf16> to vector<64x16xbf16>
    %42 = arith.extf %41 : vector<64x16xbf16> to vector<64x16xf32>
    %cst_39 = arith.constant dense<0.000000e+00> : vector<16x16xf32>
    %43 = tpu.matmul %37, %42, %cst_39 {dimension_numbers = #tpu.dot_dimension_numbers<[1], [0], [0], [1], [0, 0, 1, 1], [], []>} : vector<16x64xf32>, vector<64x16xf32>, vector<16x16xf32> -> vector<16x16xf32>
    %cst_40 = arith.constant dense<0.000000e+00> : vector<16x16xf32>
    %44 = tpu.matmul %39, %43, %cst_40 {dimension_numbers = #tpu.dot_dimension_numbers<[1], [0], [0], [1], [0, 0, 1, 1], [], []>} : vector<16x16xf32>, vector<16x16xf32>, vector<16x16xf32> -> vector<16x16xf32>
    %c1_41 = arith.constant 1 : index
    %c0_42 = arith.constant 0 : index
    %c0_43 = arith.constant 0 : index
    %45 = vector.load %arg5[%c1_41, %c0_42, %c0_43] : memref<4x16x16xf32, #tpu.memory_space<vmem>>, vector<1x16x16xf32>
    %46 = vector.shape_cast %45 : vector<1x16x16xf32> to vector<16x16xf32>
    %c1_44 = arith.constant 1 : index
    %c0_45 = arith.constant 0 : index
    %c0_46 = arith.constant 0 : index
    %47 = vector.load %arg6[%c1_44, %c0_45, %c0_46] : memref<4x64x16xbf16, #tpu.memory_space<vmem>>, vector<1x64x16xbf16>
    %48 = vector.shape_cast %47 : vector<1x64x16xbf16> to vector<64x16xbf16>
    %49 = arith.extf %48 : vector<64x16xbf16> to vector<64x16xf32>
    %cst_47 = arith.constant dense<0.000000e+00> : vector<16x16xf32>
    %50 = tpu.matmul %37, %49, %cst_47 {dimension_numbers = #tpu.dot_dimension_numbers<[1], [0], [0], [1], [0, 0, 1, 1], [], []>} : vector<16x64xf32>, vector<64x16xf32>, vector<16x16xf32> -> vector<16x16xf32>
    %cst_48 = arith.constant dense<0.000000e+00> : vector<16x16xf32>
    %51 = tpu.matmul %46, %50, %cst_48 {dimension_numbers = #tpu.dot_dimension_numbers<[1], [0], [0], [1], [0, 0, 1, 1], [], []>} : vector<16x16xf32>, vector<16x16xf32>, vector<16x16xf32> -> vector<16x16xf32>
    %52 = arith.addf %44, %51 : vector<16x16xf32>
    %c2_49 = arith.constant 2 : index
    %c0_50 = arith.constant 0 : index
    %c0_51 = arith.constant 0 : index
    %53 = vector.load %arg5[%c2_49, %c0_50, %c0_51] : memref<4x16x16xf32, #tpu.memory_space<vmem>>, vector<1x16x16xf32>
    %54 = vector.shape_cast %53 : vector<1x16x16xf32> to vector<16x16xf32>
    %c2_52 = arith.constant 2 : index
    %c0_53 = arith.constant 0 : index
    %c0_54 = arith.constant 0 : index
    %55 = vector.load %arg6[%c2_52, %c0_53, %c0_54] : memref<4x64x16xbf16, #tpu.memory_space<vmem>>, vector<1x64x16xbf16>
    %56 = vector.shape_cast %55 : vector<1x64x16xbf16> to vector<64x16xbf16>
    %57 = arith.extf %56 : vector<64x16xbf16> to vector<64x16xf32>
    %cst_55 = arith.constant dense<0.000000e+00> : vector<16x16xf32>
    %58 = tpu.matmul %37, %57, %cst_55 {dimension_numbers = #tpu.dot_dimension_numbers<[1], [0], [0], [1], [0, 0, 1, 1], [], []>} : vector<16x64xf32>, vector<64x16xf32>, vector<16x16xf32> -> vector<16x16xf32>
    %cst_56 = arith.constant dense<0.000000e+00> : vector<16x16xf32>
    %59 = tpu.matmul %54, %58, %cst_56 {dimension_numbers = #tpu.dot_dimension_numbers<[1], [0], [0], [1], [0, 0, 1, 1], [], []>} : vector<16x16xf32>, vector<16x16xf32>, vector<16x16xf32> -> vector<16x16xf32>
    %60 = arith.addf %52, %59 : vector<16x16xf32>
    %c3_57 = arith.constant 3 : index
    %c0_58 = arith.constant 0 : index
    %c0_59 = arith.constant 0 : index
    %61 = vector.load %arg5[%c3_57, %c0_58, %c0_59] : memref<4x16x16xf32, #tpu.memory_space<vmem>>, vector<1x16x16xf32>
    %62 = vector.shape_cast %61 : vector<1x16x16xf32> to vector<16x16xf32>
    %c3_60 = arith.constant 3 : index
    %c0_61 = arith.constant 0 : index
    %c0_62 = arith.constant 0 : index
    %63 = vector.load %arg6[%c3_60, %c0_61, %c0_62] : memref<4x64x16xbf16, #tpu.memory_space<vmem>>, vector<1x64x16xbf16>
    %64 = vector.shape_cast %63 : vector<1x64x16xbf16> to vector<64x16xbf16>
    %65 = arith.extf %64 : vector<64x16xbf16> to vector<64x16xf32>
    %cst_63 = arith.constant dense<0.000000e+00> : vector<16x16xf32>
    %66 = tpu.matmul %37, %65, %cst_63 {dimension_numbers = #tpu.dot_dimension_numbers<[1], [0], [0], [1], [0, 0, 1, 1], [], []>} : vector<16x64xf32>, vector<64x16xf32>, vector<16x16xf32> -> vector<16x16xf32>
    %cst_64 = arith.constant dense<0.000000e+00> : vector<16x16xf32>
    %67 = tpu.matmul %62, %66, %cst_64 {dimension_numbers = #tpu.dot_dimension_numbers<[1], [0], [0], [1], [0, 0, 1, 1], [], []>} : vector<16x16xf32>, vector<16x16xf32>, vector<16x16xf32> -> vector<16x16xf32>
    %68 = arith.addf %60, %67 : vector<16x16xf32>
    %c0_65 = arith.constant 0 : index
    %c0_66 = arith.constant 0 : index
    %69 = vector.load %arg7[%c0_65, %c0_66] : memref<16x1xf32, #tpu.memory_space<vmem>>, vector<16x1xf32>
    %70 = vector.broadcast %69 : vector<16x1xf32> to vector<16x16xf32>
    %71 = arith.addf %68, %70 : vector<16x16xf32>
    %cst_67 = arith.constant 0.000000e+00 : f32
    %72 = vector.broadcast %cst_67 : f32 to vector<16x16xf32>
    %73 = arith.maximumf %71, %72 : vector<16x16xf32>
    %c0_68 = arith.constant 0 : index
    %c0_69 = arith.constant 0 : index
    %c0_70 = arith.constant 0 : index
    %74 = vector.load %arg8[%c0_68, %c0_69, %c0_70] : memref<4x16x16xf32, #tpu.memory_space<vmem>>, vector<1x16x16xf32>
    %75 = vector.shape_cast %74 : vector<1x16x16xf32> to vector<16x16xf32>
    %c0_71 = arith.constant 0 : index
    %c0_72 = arith.constant 0 : index
    %c0_73 = arith.constant 0 : index
    %76 = vector.load %arg9[%c0_71, %c0_72, %c0_73] : memref<4x16x64xbf16, #tpu.memory_space<vmem>>, vector<1x16x64xbf16>
    %77 = vector.shape_cast %76 : vector<1x16x64xbf16> to vector<16x64xbf16>
    %78 = arith.extf %77 : vector<16x64xbf16> to vector<16x64xf32>
    %cst_74 = arith.constant dense<0.000000e+00> : vector<16x16xf32>
    %79 = tpu.matmul %75, %73, %cst_74 {dimension_numbers = #tpu.dot_dimension_numbers<[1], [0], [0], [1], [0, 0, 1, 1], [], []>} : vector<16x16xf32>, vector<16x16xf32>, vector<16x16xf32> -> vector<16x16xf32>
    %cst_75 = arith.constant dense<0.000000e+00> : vector<16x64xf32>
    %80 = tpu.matmul %79, %78, %cst_75 {dimension_numbers = #tpu.dot_dimension_numbers<[1], [0], [0], [1], [0, 0, 1, 1], [], []>} : vector<16x16xf32>, vector<16x64xf32>, vector<16x64xf32> -> vector<16x64xf32>
    %c1_76 = arith.constant 1 : index
    %c0_77 = arith.constant 0 : index
    %c0_78 = arith.constant 0 : index
    %81 = vector.load %arg8[%c1_76, %c0_77, %c0_78] : memref<4x16x16xf32, #tpu.memory_space<vmem>>, vector<1x16x16xf32>
    %82 = vector.shape_cast %81 : vector<1x16x16xf32> to vector<16x16xf32>
    %c1_79 = arith.constant 1 : index
    %c0_80 = arith.constant 0 : index
    %c0_81 = arith.constant 0 : index
    %83 = vector.load %arg9[%c1_79, %c0_80, %c0_81] : memref<4x16x64xbf16, #tpu.memory_space<vmem>>, vector<1x16x64xbf16>
    %84 = vector.shape_cast %83 : vector<1x16x64xbf16> to vector<16x64xbf16>
    %85 = arith.extf %84 : vector<16x64xbf16> to vector<16x64xf32>
    %cst_82 = arith.constant dense<0.000000e+00> : vector<16x16xf32>
    %86 = tpu.matmul %82, %73, %cst_82 {dimension_numbers = #tpu.dot_dimension_numbers<[1], [0], [0], [1], [0, 0, 1, 1], [], []>} : vector<16x16xf32>, vector<16x16xf32>, vector<16x16xf32> -> vector<16x16xf32>
    %cst_83 = arith.constant dense<0.000000e+00> : vector<16x64xf32>
    %87 = tpu.matmul %86, %85, %cst_83 {dimension_numbers = #tpu.dot_dimension_numbers<[1], [0], [0], [1], [0, 0, 1, 1], [], []>} : vector<16x16xf32>, vector<16x64xf32>, vector<16x64xf32> -> vector<16x64xf32>
    %88 = arith.addf %80, %87 : vector<16x64xf32>
    %c2_84 = arith.constant 2 : index
    %c0_85 = arith.constant 0 : index
    %c0_86 = arith.constant 0 : index
    %89 = vector.load %arg8[%c2_84, %c0_85, %c0_86] : memref<4x16x16xf32, #tpu.memory_space<vmem>>, vector<1x16x16xf32>
    %90 = vector.shape_cast %89 : vector<1x16x16xf32> to vector<16x16xf32>
    %c2_87 = arith.constant 2 : index
    %c0_88 = arith.constant 0 : index
    %c0_89 = arith.constant 0 : index
    %91 = vector.load %arg9[%c2_87, %c0_88, %c0_89] : memref<4x16x64xbf16, #tpu.memory_space<vmem>>, vector<1x16x64xbf16>
    %92 = vector.shape_cast %91 : vector<1x16x64xbf16> to vector<16x64xbf16>
    %93 = arith.extf %92 : vector<16x64xbf16> to vector<16x64xf32>
    %cst_90 = arith.constant dense<0.000000e+00> : vector<16x16xf32>
    %94 = tpu.matmul %90, %73, %cst_90 {dimension_numbers = #tpu.dot_dimension_numbers<[1], [0], [0], [1], [0, 0, 1, 1], [], []>} : vector<16x16xf32>, vector<16x16xf32>, vector<16x16xf32> -> vector<16x16xf32>
    %cst_91 = arith.constant dense<0.000000e+00> : vector<16x64xf32>
    %95 = tpu.matmul %94, %93, %cst_91 {dimension_numbers = #tpu.dot_dimension_numbers<[1], [0], [0], [1], [0, 0, 1, 1], [], []>} : vector<16x16xf32>, vector<16x64xf32>, vector<16x64xf32> -> vector<16x64xf32>
    %96 = arith.addf %88, %95 : vector<16x64xf32>
    %c3_92 = arith.constant 3 : index
    %c0_93 = arith.constant 0 : index
    %c0_94 = arith.constant 0 : index
    %97 = vector.load %arg8[%c3_92, %c0_93, %c0_94] : memref<4x16x16xf32, #tpu.memory_space<vmem>>, vector<1x16x16xf32>
    %98 = vector.shape_cast %97 : vector<1x16x16xf32> to vector<16x16xf32>
    %c3_95 = arith.constant 3 : index
    %c0_96 = arith.constant 0 : index
    %c0_97 = arith.constant 0 : index
    %99 = vector.load %arg9[%c3_95, %c0_96, %c0_97] : memref<4x16x64xbf16, #tpu.memory_space<vmem>>, vector<1x16x64xbf16>
    %100 = vector.shape_cast %99 : vector<1x16x64xbf16> to vector<16x64xbf16>
    %101 = arith.extf %100 : vector<16x64xbf16> to vector<16x64xf32>
    %cst_98 = arith.constant dense<0.000000e+00> : vector<16x16xf32>
    %102 = tpu.matmul %98, %73, %cst_98 {dimension_numbers = #tpu.dot_dimension_numbers<[1], [0], [0], [1], [0, 0, 1, 1], [], []>} : vector<16x16xf32>, vector<16x16xf32>, vector<16x16xf32> -> vector<16x16xf32>
    %cst_99 = arith.constant dense<0.000000e+00> : vector<16x64xf32>
    %103 = tpu.matmul %102, %101, %cst_99 {dimension_numbers = #tpu.dot_dimension_numbers<[1], [0], [0], [1], [0, 0, 1, 1], [], []>} : vector<16x16xf32>, vector<16x64xf32>, vector<16x64xf32> -> vector<16x64xf32>
    %104 = arith.addf %96, %103 : vector<16x64xf32>
    %c0_100 = arith.constant 0 : index
    %c0_101 = arith.constant 0 : index
    %105 = vector.load %arg10[%c0_100, %c0_101] : memref<16x1xf32, #tpu.memory_space<vmem>>, vector<16x1xf32>
    %106 = vector.broadcast %105 : vector<16x1xf32> to vector<16x64xf32>
    %107 = arith.addf %104, %106 : vector<16x64xf32>
    %cst_102 = arith.constant 0.000000e+00 : f32
    %108 = vector.broadcast %cst_102 : f32 to vector<16x64xf32>
    %109 = arith.maximumf %107, %108 : vector<16x64xf32>
    %c0_103 = arith.constant 0 : index
    %c0_104 = arith.constant 0 : index
    %c0_105 = arith.constant 0 : index
    %110 = vector.load %arg11[%c0_103, %c0_104, %c0_105] : memref<4x8x16xf32, #tpu.memory_space<vmem>>, vector<1x8x16xf32>
    %111 = vector.shape_cast %110 : vector<1x8x16xf32> to vector<8x16xf32>
    %c0_106 = arith.constant 0 : index
    %c0_107 = arith.constant 0 : index
    %c0_108 = arith.constant 0 : index
    %112 = vector.load %arg12[%c0_106, %c0_107, %c0_108] : memref<4x64x256xbf16, #tpu.memory_space<vmem>>, vector<1x64x256xbf16>
    %113 = vector.shape_cast %112 : vector<1x64x256xbf16> to vector<64x256xbf16>
    %114 = arith.extf %113 : vector<64x256xbf16> to vector<64x256xf32>
    %cst_109 = arith.constant dense<0.000000e+00> : vector<8x64xf32>
    %115 = tpu.matmul %111, %109, %cst_109 {dimension_numbers = #tpu.dot_dimension_numbers<[1], [0], [0], [1], [0, 0, 1, 1], [], []>} : vector<8x16xf32>, vector<16x64xf32>, vector<8x64xf32> -> vector<8x64xf32>
    %cst_110 = arith.constant dense<0.000000e+00> : vector<8x256xf32>
    %116 = tpu.matmul %115, %114, %cst_110 {dimension_numbers = #tpu.dot_dimension_numbers<[1], [0], [0], [1], [0, 0, 1, 1], [], []>} : vector<8x64xf32>, vector<64x256xf32>, vector<8x256xf32> -> vector<8x256xf32>
    %c1_111 = arith.constant 1 : index
    %c0_112 = arith.constant 0 : index
    %c0_113 = arith.constant 0 : index
    %117 = vector.load %arg11[%c1_111, %c0_112, %c0_113] : memref<4x8x16xf32, #tpu.memory_space<vmem>>, vector<1x8x16xf32>
    %118 = vector.shape_cast %117 : vector<1x8x16xf32> to vector<8x16xf32>
    %c1_114 = arith.constant 1 : index
    %c0_115 = arith.constant 0 : index
    %c0_116 = arith.constant 0 : index
    %119 = vector.load %arg12[%c1_114, %c0_115, %c0_116] : memref<4x64x256xbf16, #tpu.memory_space<vmem>>, vector<1x64x256xbf16>
    %120 = vector.shape_cast %119 : vector<1x64x256xbf16> to vector<64x256xbf16>
    %121 = arith.extf %120 : vector<64x256xbf16> to vector<64x256xf32>
    %cst_117 = arith.constant dense<0.000000e+00> : vector<8x64xf32>
    %122 = tpu.matmul %118, %109, %cst_117 {dimension_numbers = #tpu.dot_dimension_numbers<[1], [0], [0], [1], [0, 0, 1, 1], [], []>} : vector<8x16xf32>, vector<16x64xf32>, vector<8x64xf32> -> vector<8x64xf32>
    %cst_118 = arith.constant dense<0.000000e+00> : vector<8x256xf32>
    %123 = tpu.matmul %122, %121, %cst_118 {dimension_numbers = #tpu.dot_dimension_numbers<[1], [0], [0], [1], [0, 0, 1, 1], [], []>} : vector<8x64xf32>, vector<64x256xf32>, vector<8x256xf32> -> vector<8x256xf32>
    %124 = arith.addf %116, %123 : vector<8x256xf32>
    %c2_119 = arith.constant 2 : index
    %c0_120 = arith.constant 0 : index
    %c0_121 = arith.constant 0 : index
    %125 = vector.load %arg11[%c2_119, %c0_120, %c0_121] : memref<4x8x16xf32, #tpu.memory_space<vmem>>, vector<1x8x16xf32>
    %126 = vector.shape_cast %125 : vector<1x8x16xf32> to vector<8x16xf32>
    %c2_122 = arith.constant 2 : index
    %c0_123 = arith.constant 0 : index
    %c0_124 = arith.constant 0 : index
    %127 = vector.load %arg12[%c2_122, %c0_123, %c0_124] : memref<4x64x256xbf16, #tpu.memory_space<vmem>>, vector<1x64x256xbf16>
    %128 = vector.shape_cast %127 : vector<1x64x256xbf16> to vector<64x256xbf16>
    %129 = arith.extf %128 : vector<64x256xbf16> to vector<64x256xf32>
    %cst_125 = arith.constant dense<0.000000e+00> : vector<8x64xf32>
    %130 = tpu.matmul %126, %109, %cst_125 {dimension_numbers = #tpu.dot_dimension_numbers<[1], [0], [0], [1], [0, 0, 1, 1], [], []>} : vector<8x16xf32>, vector<16x64xf32>, vector<8x64xf32> -> vector<8x64xf32>
    %cst_126 = arith.constant dense<0.000000e+00> : vector<8x256xf32>
    %131 = tpu.matmul %130, %129, %cst_126 {dimension_numbers = #tpu.dot_dimension_numbers<[1], [0], [0], [1], [0, 0, 1, 1], [], []>} : vector<8x64xf32>, vector<64x256xf32>, vector<8x256xf32> -> vector<8x256xf32>
    %132 = arith.addf %124, %131 : vector<8x256xf32>
    %c3_127 = arith.constant 3 : index
    %c0_128 = arith.constant 0 : index
    %c0_129 = arith.constant 0 : index
    %133 = vector.load %arg11[%c3_127, %c0_128, %c0_129] : memref<4x8x16xf32, #tpu.memory_space<vmem>>, vector<1x8x16xf32>
    %134 = vector.shape_cast %133 : vector<1x8x16xf32> to vector<8x16xf32>
    %c3_130 = arith.constant 3 : index
    %c0_131 = arith.constant 0 : index
    %c0_132 = arith.constant 0 : index
    %135 = vector.load %arg12[%c3_130, %c0_131, %c0_132] : memref<4x64x256xbf16, #tpu.memory_space<vmem>>, vector<1x64x256xbf16>
    %136 = vector.shape_cast %135 : vector<1x64x256xbf16> to vector<64x256xbf16>
    %137 = arith.extf %136 : vector<64x256xbf16> to vector<64x256xf32>
    %cst_133 = arith.constant dense<0.000000e+00> : vector<8x64xf32>
    %138 = tpu.matmul %134, %109, %cst_133 {dimension_numbers = #tpu.dot_dimension_numbers<[1], [0], [0], [1], [0, 0, 1, 1], [], []>} : vector<8x16xf32>, vector<16x64xf32>, vector<8x64xf32> -> vector<8x64xf32>
    %cst_134 = arith.constant dense<0.000000e+00> : vector<8x256xf32>
    %139 = tpu.matmul %138, %137, %cst_134 {dimension_numbers = #tpu.dot_dimension_numbers<[1], [0], [0], [1], [0, 0, 1, 1], [], []>} : vector<8x64xf32>, vector<64x256xf32>, vector<8x256xf32> -> vector<8x256xf32>
    %140 = arith.addf %132, %139 : vector<8x256xf32>
    %c0_135 = arith.constant 0 : index
    %c0_136 = arith.constant 0 : index
    %141 = vector.load %arg13[%c0_135, %c0_136] : memref<8x1xf32, #tpu.memory_space<vmem>>, vector<8x1xf32>
    %142 = vector.broadcast %141 : vector<8x1xf32> to vector<8x256xf32>
    %143 = arith.addf %140, %142 : vector<8x256xf32>
    %144 = arith.negf %143 : vector<8x256xf32>
    %145 = math.exp %144 : vector<8x256xf32>
    %cst_137 = arith.constant 1.000000e+00 : f32
    %146 = vector.broadcast %cst_137 : f32 to vector<8x256xf32>
    %147 = arith.addf %146, %145 : vector<8x256xf32>
    %148 = arith.divf %146, %147 : vector<8x256xf32>
    %c0_138 = arith.constant 0 : index
    %c0_139 = arith.constant 0 : index
    %c0_140 = arith.constant 0 : index
    %149 = vector.load %arg14[%c0_138, %c0_139, %c0_140] : memref<1x8x256xf32, #tpu.memory_space<vmem>>, vector<1x8x256xf32>
    %150 = vector.shape_cast %149 : vector<1x8x256xf32> to vector<8x256xf32>
    %151 = vector.shape_cast %148 : vector<8x256xf32> to vector<1x8x256xf32>
    tpu.vector_store %arg14[%c0_138, %c0_139, %c0_140], %151 {strides = array<i32>} : memref<1x8x256xf32, #tpu.memory_space<vmem>>, vector<1x8x256xf32>,
    return
  }
  func.func @transform_0(%arg0: i32) -> (i32, i32, i32) {
    %c0_i32 = arith.constant 0 : i32
    %c0_i32_0 = arith.constant 0 : i32
    %c0_i32_1 = arith.constant 0 : i32
    return %arg0, %c0_i32, %c0_i32_0 : i32, i32, i32
  }
  func.func @transform_1(%arg0: i32) -> (i32, i32, i32) {
    %c0_i32 = arith.constant 0 : i32
    %c0_i32_0 = arith.constant 0 : i32
    %c0_i32_1 = arith.constant 0 : i32
    %c0_i32_2 = arith.constant 0 : i32
    return %c0_i32, %c0_i32_0, %c0_i32_1 : i32, i32, i32
  }
  func.func @transform_2(%arg0: i32) -> (i32, i32, i32) {
    %c0_i32 = arith.constant 0 : i32
    %c0_i32_0 = arith.constant 0 : i32
    %c0_i32_1 = arith.constant 0 : i32
    %c0_i32_2 = arith.constant 0 : i32
    return %c0_i32, %c0_i32_0, %c0_i32_1 : i32, i32, i32
  }
  func.func @transform_3(%arg0: i32) -> (i32, i32) {
    %c0_i32 = arith.constant 0 : i32
    %c0_i32_0 = arith.constant 0 : i32
    %c0_i32_1 = arith.constant 0 : i32
    return %c0_i32, %c0_i32_0 : i32, i32
  }
  func.func @transform_4(%arg0: i32) -> (i32, i32, i32) {
    %c0_i32 = arith.constant 0 : i32
    %c0_i32_0 = arith.constant 0 : i32
    %c0_i32_1 = arith.constant 0 : i32
    %c0_i32_2 = arith.constant 0 : i32
    return %c0_i32, %c0_i32_0, %c0_i32_1 : i32, i32, i32
  }
  func.func @transform_5(%arg0: i32) -> (i32, i32, i32) {
    %c0_i32 = arith.constant 0 : i32
    %c0_i32_0 = arith.constant 0 : i32
    %c0_i32_1 = arith.constant 0 : i32
    %c0_i32_2 = arith.constant 0 : i32
    return %c0_i32, %c0_i32_0, %c0_i32_1 : i32, i32, i32
  }
  func.func @transform_6(%arg0: i32) -> (i32, i32) {
    %c0_i32 = arith.constant 0 : i32
    %c0_i32_0 = arith.constant 0 : i32
    %c0_i32_1 = arith.constant 0 : i32
    return %c0_i32, %c0_i32_0 : i32, i32
  }
  func.func @transform_7(%arg0: i32) -> (i32, i32, i32) {
    %c0_i32 = arith.constant 0 : i32
    %c0_i32_0 = arith.constant 0 : i32
    %c0_i32_1 = arith.constant 0 : i32
    %c0_i32_2 = arith.constant 0 : i32
    return %c0_i32, %c0_i32_0, %c0_i32_1 : i32, i32, i32
  }
  func.func @transform_8(%arg0: i32) -> (i32, i32, i32) {
    %c0_i32 = arith.constant 0 : i32
    %c0_i32_0 = arith.constant 0 : i32
    %c0_i32_1 = arith.constant 0 : i32
    %c0_i32_2 = arith.constant 0 : i32
    return %c0_i32, %c0_i32_0, %c0_i32_1 : i32, i32, i32
  }
  func.func @transform_9(%arg0: i32) -> (i32, i32) {
    %c0_i32 = arith.constant 0 : i32
    %c0_i32_0 = arith.constant 0 : i32
    %c0_i32_1 = arith.constant 0 : i32
    return %c0_i32, %c0_i32_0 : i32, i32
  }
  func.func @transform_10(%arg0: i32) -> (i32, i32, i32) {
    %c0_i32 = arith.constant 0 : i32
    %c0_i32_0 = arith.constant 0 : i32
    %c0_i32_1 = arith.constant 0 : i32
    %c0_i32_2 = arith.constant 0 : i32
    return %c0_i32, %c0_i32_0, %c0_i32_1 : i32, i32, i32
  }
  func.func @transform_11(%arg0: i32) -> (i32, i32, i32) {
    %c0_i32 = arith.constant 0 : i32
    %c0_i32_0 = arith.constant 0 : i32
    %c0_i32_1 = arith.constant 0 : i32
    %c0_i32_2 = arith.constant 0 : i32
    return %c0_i32, %c0_i32_0, %c0_i32_1 : i32, i32, i32
  }
  func.func @transform_12(%arg0: i32) -> (i32, i32) {
    %c0_i32 = arith.constant 0 : i32
    %c0_i32_0 = arith.constant 0 : i32
    %c0_i32_1 = arith.constant 0 : i32
    return %c0_i32, %c0_i32_0 : i32, i32
  }
  func.func @transform_13(%arg0: i32) -> (i32, i32, i32) {
    %c0_i32 = arith.constant 0 : i32
    %c0_i32_0 = arith.constant 0 : i32
    %c0_i32_1 = arith.constant 0 : i32
    return %arg0, %c0_i32, %c0_i32_0 : i32, i32, i32
  }
}

</mosaic_0001>

<llo_original>
// kernel: tile.23
$region0: #{tile.23}
  #allocation0 [shape = 's32[1]{0}', space=sflag, size = 0x4, scoped, tag = 'scoped memory for tile.23']
  %s0 = inlined_call_operand.vmem [shape: f32[8], index: 0, kind: input, shape index: {}]
  %s1 = inlined_call_operand.vmem [shape: f32[2,8], index: 1, kind: output, shape index: {}]
  // Predicated region
  $region2: #{tile.23} parent=0 // pred_check
    _
  $region3: #{tile.23} parent=0 // pred_check_branch
    %3 = sbr.rel (0) target = $region5
  $region4: #{tile.23} parent=0 // pred_region
    _
  $region5: #{tile.23} parent=0 // pred_fallthru
    _
  %v4 = vld [vmem:[%s0] ss:$0 sm:$0xff]
  %5 = vst [vmem:[%s1] sm:$0x3] %v4

// kernel: tile.0
$region0: #{tile.0}
  %s0 = inlined_call_operand.vmem [shape: f32[2,8], index: 0, kind: input, shape index: {}]
  %s1 = inlined_call_operand.vmem [shape: f32[16,1], index: 1, kind: output, shape index: {}]
  $region1: #{tile.0} parent=0
    #allocation0 [shape = 'u8[4096]{0}', space=vmem, size = 0x1000, scoped, tag = 'scoped mem for input reshape']
    %s3 = sshll.u32 1, 2
    %s4 = ssub.s32 %s3, 1
    %v5 = vld [vmem:[%s0] sm:%s4]
    %6 = vst [vmem:[#allocation0] sm:%s4] %v5
    %v7 = vld [vmem:[#allocation0] sm:$0x3]
    %vm8 = vcmask 7168
    %9 = vst.msk [vmem:[%s1] ss:$8 sm:$0x3] %vm8, %v7
    %v10 = vld [vmem:[#allocation0] sm:$0x3]
    %11 = vrot.lane.b32.xlu0 %v10, 127
    %v12 = vpop.permute.xlu0 %11
    %vm13 = vcmask 7168
    %s14 = scalar_lea.vmem %s1, 1
    %15 = vst.msk [vmem:[%s14] ss:$8 sm:$0x3] %vm13, %v12
    %v16 = vld [vmem:[#allocation0] sm:$0x3]
    %17 = vrot.lane.b32.xlu0 %v16, 126
    %v18 = vpop.permute.xlu0 %17
    %vm19 = vcmask 7168
    %s20 = scalar_lea.vmem %s1, 2
    %21 = vst.msk [vmem:[%s20] ss:$8 sm:$0x3] %vm19, %v18
    %v22 = vld [vmem:[#allocation0] sm:$0x3]
    %23 = vrot.lane.b32.xlu0 %v22, 125
    %v24 = vpop.permute.xlu0 %23
    %vm25 = vcmask 7168
    %s26 = scalar_lea.vmem %s1, 3
    %27 = vst.msk [vmem:[%s26] ss:$8 sm:$0x3] %vm25, %v24
    %v28 = vld [vmem:[#allocation0] sm:$0x3]
    %29 = vrot.lane.b32.xlu0 %v28, 124
    %v30 = vpop.permute.xlu0 %29
    %vm31 = vcmask 7168
    %s32 = scalar_lea.vmem %s1, 4
    %33 = vst.msk [vmem:[%s32] ss:$8 sm:$0x3] %vm31, %v30
    %v34 = vld [vmem:[#allocation0] sm:$0x3]
    %35 = vrot.lane.b32.xlu0 %v34, 123
    %v36 = vpop.permute.xlu0 %35
    %vm37 = vcmask 7168
    %s38 = scalar_lea.vmem %s1, 5
    %39 = vst.msk [vmem:[%s38] ss:$8 sm:$0x3] %vm37, %v36
    %v40 = vld [vmem:[#allocation0] sm:$0x3]
    %41 = vrot.lane.b32.xlu0 %v40, 122
    %v42 = vpop.permute.xlu0 %41
    %vm43 = vcmask 7168
    %s44 = scalar_lea.vmem %s1, 6
    %45 = vst.msk [vmem:[%s44] ss:$8 sm:$0x3] %vm43, %v42
    %v46 = vld [vmem:[#allocation0] sm:$0x3]
    %47 = vrot.lane.b32.xlu0 %v46, 121
    %v48 = vpop.permute.xlu0 %47
    %vm49 = vcmask 7168
    %s50 = scalar_lea.vmem %s1, 7
    %51 = vst.msk [vmem:[%s50] ss:$8 sm:$0x3] %vm49, %v48

// kernel: tile.38
$region0: #{tile.38}
  #allocation0 [shape = 's32[1]{0}', space=sflag, size = 0x4, scoped, tag = 'scoped memory for tile.38']
  %s0 = inlined_call_operand.vmem [shape: f32[4], index: 0, kind: input, shape index: {}]
  %s1 = inlined_call_operand.vmem [shape: f32[2,4], index: 1, kind: output, shape index: {}]
  // Predicated region
  $region2: #{tile.38} parent=0 // pred_check
    _
  $region3: #{tile.38} parent=0 // pred_check_branch
    %3 = sbr.rel (0) target = $region5
  $region4: #{tile.38} parent=0 // pred_region
    _
  $region5: #{tile.38} parent=0 // pred_fallthru
    _
  %v4 = vld [vmem:[%s0] ss:$0 sm:$0xff]
  %5 = vst [vmem:[%s1] sm:$0x3] %v4

// kernel: tile.3
$region0: #{tile.3}
  %s0 = inlined_call_operand.vmem [shape: f32[2,4], index: 0, kind: input, shape index: {}]
  %s1 = inlined_call_operand.vmem [shape: f32[8,1], index: 1, kind: output, shape index: {}]
  $region1: #{tile.3} parent=0
    #allocation0 [shape = 'u8[4096]{0}', space=vmem, size = 0x1000, scoped, tag = 'scoped mem for input reshape']
    %s3 = sshll.u32 1, 2
    %s4 = ssub.s32 %s3, 1
    %v5 = vld [vmem:[%s0] sm:%s4]
    %6 = vst [vmem:[#allocation0] sm:%s4] %v5
    %v7 = vld [vmem:[#allocation0] sm:$0x3]
    %vm8 = vcmask 7168
    %9 = vst.msk [vmem:[%s1] ss:$4 sm:$0x3] %vm8, %v7
    %v10 = vld [vmem:[#allocation0] sm:$0x3]
    %11 = vrot.lane.b32.xlu0 %v10, 127
    %v12 = vpop.permute.xlu0 %11
    %vm13 = vcmask 7168
    %s14 = scalar_lea.vmem %s1, 1
    %15 = vst.msk [vmem:[%s14] ss:$4 sm:$0x3] %vm13, %v12
    %v16 = vld [vmem:[#allocation0] sm:$0x3]
    %17 = vrot.lane.b32.xlu0 %v16, 126
    %v18 = vpop.permute.xlu0 %17
    %vm19 = vcmask 7168
    %s20 = scalar_lea.vmem %s1, 2
    %21 = vst.msk [vmem:[%s20] ss:$4 sm:$0x3] %vm19, %v18
    %v22 = vld [vmem:[#allocation0] sm:$0x3]
    %23 = vrot.lane.b32.xlu0 %v22, 125
    %v24 = vpop.permute.xlu0 %23
    %vm25 = vcmask 7168
    %s26 = scalar_lea.vmem %s1, 3
    %27 = vst.msk [vmem:[%s26] ss:$4 sm:$0x3] %vm25, %v24

// kernel: run.1
$region0: #{run.1}
  #allocation0 [shape = 'u32[]', space=smem, size = 0x4, offset = 0x4, fixed_abs, tag = 'smem constant byte address 0x4 - core index']
  #allocation1 [shape = 'u32[144,128]{1,0:T(1,128)}', space=vmem, size = 0x12000, scoped, tag = 'internal scratch']
  %s0 = inlined_call_operand.vmem [shape: f32[1,8,256], index: 0, kind: input, shape index: {}]
  %s1 = inlined_call_operand.vmem [shape: f32[4,16,8], index: 1, kind: input, shape index: {}]
  %s2 = inlined_call_operand.vmem [shape: bf16[4,256,64], index: 2, kind: input, shape index: {}]
  %s3 = inlined_call_operand.vmem [shape: f32[16,1], index: 3, kind: input, shape index: {}]
  %s4 = inlined_call_operand.vmem [shape: f32[4,16,16], index: 4, kind: input, shape index: {}]
  %s5 = inlined_call_operand.vmem [shape: bf16[4,64,16], index: 5, kind: input, shape index: {}]
  %s6 = inlined_call_operand.vmem [shape: f32[16,1], index: 6, kind: input, shape index: {}]
  %s7 = inlined_call_operand.vmem [shape: f32[4,16,16], index: 7, kind: input, shape index: {}]
  %s8 = inlined_call_operand.vmem [shape: bf16[4,16,64], index: 8, kind: input, shape index: {}]
  %s9 = inlined_call_operand.vmem [shape: f32[16,1], index: 9, kind: input, shape index: {}]
  %s10 = inlined_call_operand.vmem [shape: f32[4,8,16], index: 10, kind: input, shape index: {}]
  %s11 = inlined_call_operand.vmem [shape: bf16[4,64,256], index: 11, kind: input, shape index: {}]
  %s12 = inlined_call_operand.vmem [shape: f32[8,1], index: 12, kind: input, shape index: {}]
  %s13 = inlined_call_operand.vmem [shape: f32[1,8,256], index: 13, kind: output, shape index: {}]
  %s14 = sld [smem:[#allocation0]]
  $region62: #{run.1} parent=0
    _
  %s16 = ssub.s32 1, %s14
  %s17 = scalar_select 0, %s16, %s14
  // Predicated region
  $region2: #{run.1} parent=0 // pred_check
    _
  $region3: #{run.1} parent=0 // pred_check_branch
    %19 = sbr.rel (0) target = $region5
  $region4: #{run.1} parent=0 // pred_region
    _
  $region5: #{run.1} parent=0 // pred_fallthru
    _
  // Predicated region
  $region6: #{run.1} parent=0 // pred_check
    _
  $region7: #{run.1} parent=0 // pred_check_branch
    %21 = sbr.rel (0) target = $region9
  $region8: #{run.1} parent=0 // pred_region
    _
  $region9: #{run.1} parent=0 // pred_fallthru
    _
  // Predicated region
  $region10: #{run.1} parent=0 // pred_check
    _
  $region11: #{run.1} parent=0 // pred_check_branch
    %23 = sbr.rel (0) target = $region13
  $region12: #{run.1} parent=0 // pred_region
    _
  $region13: #{run.1} parent=0 // pred_fallthru
    _
  // Predicated region
  $region14: #{run.1} parent=0 // pred_check
    _
  $region15: #{run.1} parent=0 // pred_check_branch
    %25 = sbr.rel (0) target = $region17
  $region16: #{run.1} parent=0 // pred_region
    _
  $region17: #{run.1} parent=0 // pred_fallthru
    _
  // Predicated region
  $region18: #{run.1} parent=0 // pred_check
    _
  $region19: #{run.1} parent=0 // pred_check_branch
    %27 = sbr.rel (0) target = $region21
  $region20: #{run.1} parent=0 // pred_region
    _
  $region21: #{run.1} parent=0 // pred_fallthru
    _
  // Predicated region
  $region22: #{run.1} parent=0 // pred_check
    _
  $region23: #{run.1} parent=0 // pred_check_branch
    %29 = sbr.rel (0) target = $region25
  $region24: #{run.1} parent=0 // pred_region
    _
  $region25: #{run.1} parent=0 // pred_fallthru
    _
  // Predicated region
  $region26: #{run.1} parent=0 // pred_check
    _
  $region27: #{run.1} parent=0 // pred_check_branch
    %31 = sbr.rel (0) target = $region29
  $region28: #{run.1} parent=0 // pred_region
    _
  $region29: #{run.1} parent=0 // pred_fallthru
    _
  // Predicated region
  $region30: #{run.1} parent=0 // pred_check
    _
  $region31: #{run.1} parent=0 // pred_check_branch
    %33 = sbr.rel (0) target = $region33
  $region32: #{run.1} parent=0 // pred_region
    _
  $region33: #{run.1} parent=0 // pred_fallthru
    _
  // Predicated region
  $region34: #{run.1} parent=0 // pred_check
    _
  $region35: #{run.1} parent=0 // pred_check_branch
    %35 = sbr.rel (0) target = $region37
  $region36: #{run.1} parent=0 // pred_region
    _
  $region37: #{run.1} parent=0 // pred_fallthru
    _
  // Predicated region
  $region38: #{run.1} parent=0 // pred_check
    _
  $region39: #{run.1} parent=0 // pred_check_branch
    %37 = sbr.rel (0) target = $region41
  $region40: #{run.1} parent=0 // pred_region
    _
  $region41: #{run.1} parent=0 // pred_fallthru
    _
  // Predicated region
  $region42: #{run.1} parent=0 // pred_check
    _
  $region43: #{run.1} parent=0 // pred_check_branch
    %39 = sbr.rel (0) target = $region45
  $region44: #{run.1} parent=0 // pred_region
    _
  $region45: #{run.1} parent=0 // pred_fallthru
    _
  // Predicated region
  $region46: #{run.1} parent=0 // pred_check
    _
  $region47: #{run.1} parent=0 // pred_check_branch
    %41 = sbr.rel (0) target = $region49
  $region48: #{run.1} parent=0 // pred_region
    _
  $region49: #{run.1} parent=0 // pred_fallthru
    _
  // Predicated region
  $region50: #{run.1} parent=0 // pred_check
    _
  $region51: #{run.1} parent=0 // pred_check_branch
    %43 = sbr.rel (0) target = $region53
  $region52: #{run.1} parent=0 // pred_region
    _
  $region53: #{run.1} parent=0 // pred_fallthru
    _
  %v44 = vld [vmem:[%s0] sm:$0xff]
  %v45 = vld [vmem:[%s0 + $0x8] sm:$0xff]
  %v46 = vld [vmem:[%s1] sm:$0xff]
  %v47 = vld [vmem:[%s1 + $0x8] sm:$0xff]
  %v48 = vld [vmem:[%s2] sm:$0xf]
  %v49 = vld [vmem:[%s2 + $0x4] sm:$0xf]
  %v50 = vld [vmem:[%s2 + $0x8] sm:$0xf]
  %v51 = vld [vmem:[%s2 + $0xc] sm:$0xf]
  %v52 = vld [vmem:[%s2 + $0x10] sm:$0xf]
  %v53 = vld [vmem:[%s2 + $0x14] sm:$0xf]
  %v54 = vld [vmem:[%s2 + $0x18] sm:$0xf]
  %v55 = vld [vmem:[%s2 + $0x1c] sm:$0xf]
  %v56 = vld [vmem:[%s2 + $0x20] sm:$0xf]
  %v57 = vld [vmem:[%s2 + $0x24] sm:$0xf]
  %v58 = vld [vmem:[%s2 + $0x28] sm:$0xf]
  %v59 = vld [vmem:[%s2 + $0x2c] sm:$0xf]
  %v60 = vld [vmem:[%s2 + $0x30] sm:$0xf]
  %v61 = vld [vmem:[%s2 + $0x34] sm:$0xf]
  %v62 = vld [vmem:[%s2 + $0x38] sm:$0xf]
  %v63 = vld [vmem:[%s2 + $0x3c] sm:$0xf]
  %v64 = vld [vmem:[%s2 + $0x40] sm:$0xf]
  %v65 = vld [vmem:[%s2 + $0x44] sm:$0xf]
  %v66 = vld [vmem:[%s2 + $0x48] sm:$0xf]
  %v67 = vld [vmem:[%s2 + $0x4c] sm:$0xf]
  %v68 = vld [vmem:[%s2 + $0x50] sm:$0xf]
  %v69 = vld [vmem:[%s2 + $0x54] sm:$0xf]
  %v70 = vld [vmem:[%s2 + $0x58] sm:$0xf]
  %v71 = vld [vmem:[%s2 + $0x5c] sm:$0xf]
  %v72 = vld [vmem:[%s2 + $0x60] sm:$0xf]
  %v73 = vld [vmem:[%s2 + $0x64] sm:$0xf]
  %v74 = vld [vmem:[%s2 + $0x68] sm:$0xf]
  %v75 = vld [vmem:[%s2 + $0x6c] sm:$0xf]
  %v76 = vld [vmem:[%s2 + $0x70] sm:$0xf]
  %v77 = vld [vmem:[%s2 + $0x74] sm:$0xf]
  %v78 = vld [vmem:[%s2 + $0x78] sm:$0xf]
  %v79 = vld [vmem:[%s2 + $0x7c] sm:$0xf]
  %v80 = vunpack.c.l.bf16 %v48
  %v81 = vunpack.c.l.bf16 %v49
  %v82 = vunpack.c.l.bf16 %v50
  %v83 = vunpack.c.l.bf16 %v51
  %v84 = vunpack.c.l.bf16 %v52
  %v85 = vunpack.c.l.bf16 %v53
  %v86 = vunpack.c.l.bf16 %v54
  %v87 = vunpack.c.l.bf16 %v55
  %v88 = vunpack.c.l.bf16 %v56
  %v89 = vunpack.c.l.bf16 %v57
  %v90 = vunpack.c.l.bf16 %v58
  %v91 = vunpack.c.l.bf16 %v59
  %v92 = vunpack.c.l.bf16 %v60
  %v93 = vunpack.c.l.bf16 %v61
  %v94 = vunpack.c.l.bf16 %v62
  %v95 = vunpack.c.l.bf16 %v63
  %v96 = vunpack.c.l.bf16 %v64
  %v97 = vunpack.c.l.bf16 %v65
  %v98 = vunpack.c.l.bf16 %v66
  %v99 = vunpack.c.l.bf16 %v67
  %v100 = vunpack.c.l.bf16 %v68
  %v101 = vunpack.c.l.bf16 %v69
  %v102 = vunpack.c.l.bf16 %v70
  %v103 = vunpack.c.l.bf16 %v71
  %v104 = vunpack.c.l.bf16 %v72
  %v105 = vunpack.c.l.bf16 %v73
  %v106 = vunpack.c.l.bf16 %v74
  %v107 = vunpack.c.l.bf16 %v75
  %v108 = vunpack.c.l.bf16 %v76
  %v109 = vunpack.c.l.bf16 %v77
  %v110 = vunpack.c.l.bf16 %v78
  %v111 = vunpack.c.l.bf16 %v79
  %112 = vmatprep.subr.mxu0 0.0
  %113 = vmatpush1.msra.mxu0 %v95
  %114 = vmatprep.subr.mxu0 0.0
  %115 = vmatpush1.msra.mxu0 %v94
  %116 = vmatprep.subr.mxu0 0.0
  %117 = vmatpush1.msra.mxu0 %v93
  %118 = vmatprep.subr.mxu0 0.0
  %119 = vmatpush1.msra.mxu0 %v92
  %120 = vmatprep.subr.mxu0 0.0
  %121 = vmatpush1.msra.mxu0 %v91
  %122 = vmatprep.subr.mxu0 0.0
  %123 = vmatpush1.msra.mxu0 %v90
  %124 = vmatprep.subr.mxu0 0.0
  %125 = vmatpush1.msra.mxu0 %v89
  %126 = vmatprep.subr.mxu0 0.0
  %127 = vmatpush1.msra.mxu0 %v88
  %128 = vmatprep.subr.mxu0 0.0
  %129 = vmatpush1.msra.mxu0 %v87
  %130 = vmatprep.subr.mxu0 0.0
  %131 = vmatpush1.msra.mxu0 %v86
  %132 = vmatprep.subr.mxu0 0.0
  %133 = vmatpush1.msra.mxu0 %v85
  %134 = vmatprep.subr.mxu0 0.0
  %135 = vmatpush1.msra.mxu0 %v84
  %136 = vmatprep.subr.mxu0 0.0
  %137 = vmatpush1.msra.mxu0 %v83
  %138 = vmatprep.subr.mxu0 0.0
  %139 = vmatpush1.msra.mxu0 %v82
  %140 = vmatprep.subr.mxu0 0.0
  %141 = vmatpush1.msra.mxu0 %v81
  %142 = vmatprep.subr.mxu0 0.0
  %143 = vmatpush1.msra.mxu0 %v80
  %144 = vmatprep.subr.mxu0 0.0
  %145 = vmatpush2.msra.mxu0 %v111
  %146 = vmatprep.subr.mxu0 0.0
  %147 = vmatpush2.msra.mxu0 %v110
  %148 = vmatprep.subr.mxu0 0.0
  %149 = vmatpush2.msra.mxu0 %v109
  %150 = vmatprep.subr.mxu0 0.0
  %151 = vmatpush2.msra.mxu0 %v108
  %152 = vmatprep.subr.mxu0 0.0
  %153 = vmatpush2.msra.mxu0 %v107
  %154 = vmatprep.subr.mxu0 0.0
  %155 = vmatpush2.msra.mxu0 %v106
  %156 = vmatprep.subr.mxu0 0.0
  %157 = vmatpush2.msra.mxu0 %v105
  %158 = vmatprep.subr.mxu0 0.0
  %159 = vmatpush2.msra.mxu0 %v104
  %160 = vmatprep.subr.mxu0 0.0
  %161 = vmatpush2.msra.mxu0 %v103
  %162 = vmatprep.subr.mxu0 0.0
  %163 = vmatpush2.msra.mxu0 %v102
  %164 = vmatprep.subr.mxu0 0.0
  %165 = vmatpush2.msra.mxu0 %v101
  %166 = vmatprep.subr.mxu0 0.0
  %167 = vmatpush2.msra.mxu0 %v100
  %168 = vmatprep.subr.mxu0 0.0
  %169 = vmatpush2.msra.mxu0 %v99
  %170 = vmatprep.subr.mxu0 0.0
  %171 = vmatpush2.msra.mxu0 %v98
  %172 = vmatprep.subr.mxu0 0.0
  %173 = vmatpush2.msra.mxu0 %v97
  %174 = vmatprep.subr.mxu0 0.0
  %175 = vmatpush2.msra.mxu0 %v96
  %176 = vmatprep.mubr.f32.mxu0 %v45
  %177 = vmatmul.mubr.f32.gmra.mxu0 %v44
  %v178 = vpop.f32.mrf.mxu0
  %v179 = vadd.f32 0.0, %v178
  %v180 = vpop.f32.mrf.mxu0
  %181 = vdwg.mxu0
  %s182 = scalar_lea.vmem %s1, 16
  %v183 = vld [vmem:[%s182] sm:$0xff]
  %v184 = vld [vmem:[%s182 + $0x8] sm:$0xff]
  %s185 = scalar_lea.vmem %s2, 128
  %v186 = vld [vmem:[%s185] sm:$0xf]
  %v187 = vld [vmem:[%s185 + $0x4] sm:$0xf]
  %v188 = vld [vmem:[%s185 + $0x8] sm:$0xf]
  %v189 = vld [vmem:[%s185 + $0xc] sm:$0xf]
  %v190 = vld [vmem:[%s185 + $0x10] sm:$0xf]
  %v191 = vld [vmem:[%s185 + $0x14] sm:$0xf]
  %v192 = vld [vmem:[%s185 + $0x18] sm:$0xf]
  %v193 = vld [vmem:[%s185 + $0x1c] sm:$0xf]
  %v194 = vld [vmem:[%s185 + $0x20] sm:$0xf]
  %v195 = vld [vmem:[%s185 + $0x24] sm:$0xf]
  %v196 = vld [vmem:[%s185 + $0x28] sm:$0xf]
  %v197 = vld [vmem:[%s185 + $0x2c] sm:$0xf]
  %v198 = vld [vmem:[%s185 + $0x30] sm:$0xf]
  %v199 = vld [vmem:[%s185 + $0x34] sm:$0xf]
  %v200 = vld [vmem:[%s185 + $0x38] sm:$0xf]
  %v201 = vld [vmem:[%s185 + $0x3c] sm:$0xf]
  %v202 = vld [vmem:[%s185 + $0x40] sm:$0xf]
  %v203 = vld [vmem:[%s185 + $0x44] sm:$0xf]
  %v204 = vld [vmem:[%s185 + $0x48] sm:$0xf]
  %v205 = vld [vmem:[%s185 + $0x4c] sm:$0xf]
  %v206 = vld [vmem:[%s185 + $0x50] sm:$0xf]
  %v207 = vld [vmem:[%s185 + $0x54] sm:$0xf]
  %v208 = vld [vmem:[%s185 + $0x58] sm:$0xf]
  %v209 = vld [vmem:[%s185 + $0x5c] sm:$0xf]
  %v210 = vld [vmem:[%s185 + $0x60] sm:$0xf]
  %v211 = vld [vmem:[%s185 + $0x64] sm:$0xf]
  %v212 = vld [vmem:[%s185 + $0x68] sm:$0xf]
  %v213 = vld [vmem:[%s185 + $0x6c] sm:$0xf]
  %v214 = vld [vmem:[%s185 + $0x70] sm:$0xf]
  %v215 = vld [vmem:[%s185 + $0x74] sm:$0xf]
  %v216 = vld [vmem:[%s185 + $0x78] sm:$0xf]
  %v217 = vld [vmem:[%s185 + $0x7c] sm:$0xf]
  %v218 = vunpack.c.l.bf16 %v186
  %v219 = vunpack.c.l.bf16 %v187
  %v220 = vunpack.c.l.bf16 %v188
  %v221 = vunpack.c.l.bf16 %v189
  %v222 = vunpack.c.l.bf16 %v190
  %v223 = vunpack.c.l.bf16 %v191
  %v224 = vunpack.c.l.bf16 %v192
  %v225 = vunpack.c.l.bf16 %v193
  %v226 = vunpack.c.l.bf16 %v194
  %v227 = vunpack.c.l.bf16 %v195
  %v228 = vunpack.c.l.bf16 %v196
  %v229 = vunpack.c.l.bf16 %v197
  %v230 = vunpack.c.l.bf16 %v198
  %v231 = vunpack.c.l.bf16 %v199
  %v232 = vunpack.c.l.bf16 %v200
  %v233 = vunpack.c.l.bf16 %v201
  %v234 = vunpack.c.l.bf16 %v202
  %v235 = vunpack.c.l.bf16 %v203
  %v236 = vunpack.c.l.bf16 %v204
  %v237 = vunpack.c.l.bf16 %v205
  %v238 = vunpack.c.l.bf16 %v206
  %v239 = vunpack.c.l.bf16 %v207
  %v240 = vunpack.c.l.bf16 %v208
  %v241 = vunpack.c.l.bf16 %v209
  %v242 = vunpack.c.l.bf16 %v210
  %v243 = vunpack.c.l.bf16 %v211
  %v244 = vunpack.c.l.bf16 %v212
  %v245 = vunpack.c.l.bf16 %v213
  %v246 = vunpack.c.l.bf16 %v214
  %v247 = vunpack.c.l.bf16 %v215
  %v248 = vunpack.c.l.bf16 %v216
  %v249 = vunpack.c.l.bf16 %v217
  %250 = vmatprep.subr.mxu0 0.0
  %251 = vmatpush1.msra.mxu0 %v233
  %252 = vmatprep.subr.mxu0 0.0
  %253 = vmatpush1.msra.mxu0 %v232
  %254 = vmatprep.subr.mxu0 0.0
  %255 = vmatpush1.msra.mxu0 %v231
  %256 = vmatprep.subr.mxu0 0.0
  %257 = vmatpush1.msra.mxu0 %v230
  %258 = vmatprep.subr.mxu0 0.0
  %259 = vmatpush1.msra.mxu0 %v229
  %260 = vmatprep.subr.mxu0 0.0
  %261 = vmatpush1.msra.mxu0 %v228
  %262 = vmatprep.subr.mxu0 0.0
  %263 = vmatpush1.msra.mxu0 %v227
  %264 = vmatprep.subr.mxu0 0.0
  %265 = vmatpush1.msra.mxu0 %v226
  %266 = vmatprep.subr.mxu0 0.0
  %267 = vmatpush1.msra.mxu0 %v225
  %268 = vmatprep.subr.mxu0 0.0
  %269 = vmatpush1.msra.mxu0 %v224
  %270 = vmatprep.subr.mxu0 0.0
  %271 = vmatpush1.msra.mxu0 %v223
  %272 = vmatprep.subr.mxu0 0.0
  %273 = vmatpush1.msra.mxu0 %v222
  %274 = vmatprep.subr.mxu0 0.0
  %275 = vmatpush1.msra.mxu0 %v221
  %276 = vmatprep.subr.mxu0 0.0
  %277 = vmatpush1.msra.mxu0 %v220
  %278 = vmatprep.subr.mxu0 0.0
  %279 = vmatpush1.msra.mxu0 %v219
  %280 = vmatprep.subr.mxu0 0.0
  %281 = vmatpush1.msra.mxu0 %v218
  %282 = vmatprep.subr.mxu0 0.0
  %283 = vmatpush2.msra.mxu0 %v249
  %284 = vmatprep.subr.mxu0 0.0
  %285 = vmatpush2.msra.mxu0 %v248
  %286 = vmatprep.subr.mxu0 0.0
  %287 = vmatpush2.msra.mxu0 %v247
  %288 = vmatprep.subr.mxu0 0.0
  %289 = vmatpush2.msra.mxu0 %v246
  %290 = vmatprep.subr.mxu0 0.0
  %291 = vmatpush2.msra.mxu0 %v245
  %292 = vmatprep.subr.mxu0 0.0
  %293 = vmatpush2.msra.mxu0 %v244
  %294 = vmatprep.subr.mxu0 0.0
  %295 = vmatpush2.msra.mxu0 %v243
  %296 = vmatprep.subr.mxu0 0.0
  %297 = vmatpush2.msra.mxu0 %v242
  %298 = vmatprep.subr.mxu0 0.0
  %299 = vmatpush2.msra.mxu0 %v241
  %300 = vmatprep.subr.mxu0 0.0
  %301 = vmatpush2.msra.mxu0 %v240
  %302 = vmatprep.subr.mxu0 0.0
  %303 = vmatpush2.msra.mxu0 %v239
  %304 = vmatprep.subr.mxu0 0.0
  %305 = vmatpush2.msra.mxu0 %v238
  %306 = vmatprep.subr.mxu0 0.0
  %307 = vmatpush2.msra.mxu0 %v237
  %308 = vmatprep.subr.mxu0 0.0
  %309 = vmatpush2.msra.mxu0 %v236
  %310 = vmatprep.subr.mxu0 0.0
  %311 = vmatpush2.msra.mxu0 %v235
  %312 = vmatprep.subr.mxu0 0.0
  %313 = vmatpush2.msra.mxu0 %v234
  %314 = vmatprep.mubr.f32.mxu0 %v45
  %315 = vmatmul.mubr.f32.gmra.mxu0 %v44
  %v316 = vpop.f32.mrf.mxu0
  %v317 = vadd.f32 0.0, %v316
  %v318 = vpop.f32.mrf.mxu0
  %319 = vdwg.mxu0
  %vm320 = vcmask 64512
  %v322 = vsel %vm320, %v183, 0
  %v325 = vsel %vm320, %v184, 0
  %327 = vmatprep.subr.mxu0 0.0
  %328 = vmatpush1.msra.mxu0 0.0
  %329 = vmatprep.subr.mxu0 0.0
  %330 = vmatpush1.msra.mxu0 0.0
  %331 = vmatprep.subr.mxu0 0.0
  %332 = vmatpush1.msra.mxu0 0.0
  %333 = vmatprep.subr.mxu0 0.0
  %334 = vmatpush1.msra.mxu0 0.0
  %335 = vmatprep.subr.mxu0 0.0
  %336 = vmatpush1.msra.mxu0 0.0
  %337 = vmatprep.subr.mxu0 0.0
  %338 = vmatpush1.msra.mxu0 0.0
  %339 = vmatprep.subr.mxu0 0.0
  %340 = vmatpush1.msra.mxu0 0.0
  %341 = vmatprep.subr.mxu0 0.0
  %342 = vmatpush1.msra.mxu0 0.0
  %343 = vmatprep.subr.mxu0 0.0
  %344 = vmatpush1.msra.mxu0 0.0
  %345 = vmatprep.subr.mxu0 0.0
  %346 = vmatpush1.msra.mxu0 0.0
  %347 = vmatprep.subr.mxu0 0.0
  %348 = vmatpush1.msra.mxu0 0.0
  %349 = vmatprep.subr.mxu0 0.0
  %350 = vmatpush1.msra.mxu0 0.0
  %351 = vmatprep.subr.mxu0 0.0
  %352 = vmatpush1.msra.mxu0 0.0
  %353 = vmatprep.subr.mxu0 0.0
  %354 = vmatpush1.msra.mxu0 0.0
  %355 = vmatprep.subr.mxu0 0.0
  %356 = vmatpush1.msra.mxu0 0.0
  %357 = vmatprep.subr.mxu0 0.0
  %358 = vmatpush1.msra.mxu0 %v317
  %359 = vmatprep.subr.mxu0 0.0
  %360 = vmatpush2.msra.mxu0 0.0
  %361 = vmatprep.subr.mxu0 0.0
  %362 = vmatpush2.msra.mxu0 0.0
  %363 = vmatprep.subr.mxu0 0.0
  %364 = vmatpush2.msra.mxu0 0.0
  %365 = vmatprep.subr.mxu0 0.0
  %366 = vmatpush2.msra.mxu0 0.0
  %367 = vmatprep.subr.mxu0 0.0
  %368 = vmatpush2.msra.mxu0 0.0
  %369 = vmatprep.subr.mxu0 0.0
  %370 = vmatpush2.msra.mxu0 0.0
  %371 = vmatprep.subr.mxu0 0.0
  %372 = vmatpush2.msra.mxu0 0.0
  %373 = vmatprep.subr.mxu0 0.0
  %374 = vmatpush2.msra.mxu0 0.0
  %375 = vmatprep.subr.mxu0 0.0
  %376 = vmatpush2.msra.mxu0 0.0
  %377 = vmatprep.subr.mxu0 0.0
  %378 = vmatpush2.msra.mxu0 0.0
  %379 = vmatprep.subr.mxu0 0.0
  %380 = vmatpush2.msra.mxu0 0.0
  %381 = vmatprep.subr.mxu0 0.0
  %382 = vmatpush2.msra.mxu0 0.0
  %383 = vmatprep.subr.mxu0 0.0
  %384 = vmatpush2.msra.mxu0 0.0
  %385 = vmatprep.subr.mxu0 0.0
  %386 = vmatpush2.msra.mxu0 0.0
  %387 = vmatprep.subr.mxu0 0.0
  %388 = vmatpush2.msra.mxu0 0.0
  %389 = vmatprep.subr.mxu0 0.0
  %390 = vmatpush2.msra.mxu0 0.0
  %391 = vmatprep.mubr.f32.mxu0 0.0
  %392 = vmatmul.mubr.f32.gmra.mxu0 %v322
  %v393 = vpop.f32.mrf.mxu0
  %v394 = vadd.f32 0.0, %v393
  %v395 = vpop.f32.mrf.mxu0
  %396 = vmatprep.mubr.f32.mxu0 0.0
  %397 = vmatmul.mubr.f32.gmra.mxu0 %v325
  %v398 = vpop.f32.mrf.mxu0
  %v399 = vadd.f32 0.0, %v398
  %v400 = vpop.f32.mrf.mxu0
  %401 = vdwg.mxu0
  %v403 = vsel %vm320, %v46, 0
  %v406 = vsel %vm320, %v47, 0
  %408 = vmatprep.subr.mxu0 0.0
  %409 = vmatpush1.msra.mxu0 0.0
  %410 = vmatprep.subr.mxu0 0.0
  %411 = vmatpush1.msra.mxu0 0.0
  %412 = vmatprep.subr.mxu0 0.0
  %413 = vmatpush1.msra.mxu0 0.0
  %414 = vmatprep.subr.mxu0 0.0
  %415 = vmatpush1.msra.mxu0 0.0
  %416 = vmatprep.subr.mxu0 0.0
  %417 = vmatpush1.msra.mxu0 0.0
  %418 = vmatprep.subr.mxu0 0.0
  %419 = vmatpush1.msra.mxu0 0.0
  %420 = vmatprep.subr.mxu0 0.0
  %421 = vmatpush1.msra.mxu0 0.0
  %422 = vmatprep.subr.mxu0 0.0
  %423 = vmatpush1.msra.mxu0 0.0
  %424 = vmatprep.subr.mxu0 0.0
  %425 = vmatpush1.msra.mxu0 0.0
  %426 = vmatprep.subr.mxu0 0.0
  %427 = vmatpush1.msra.mxu0 0.0
  %428 = vmatprep.subr.mxu0 0.0
  %429 = vmatpush1.msra.mxu0 0.0
  %430 = vmatprep.subr.mxu0 0.0
  %431 = vmatpush1.msra.mxu0 0.0
  %432 = vmatprep.subr.mxu0 0.0
  %433 = vmatpush1.msra.mxu0 0.0
  %434 = vmatprep.subr.mxu0 0.0
  %435 = vmatpush1.msra.mxu0 0.0
  %436 = vmatprep.subr.mxu0 0.0
  %437 = vmatpush1.msra.mxu0 0.0
  %438 = vmatprep.subr.mxu0 0.0
  %439 = vmatpush1.msra.mxu0 %v179
  %440 = vmatprep.subr.mxu0 0.0
  %441 = vmatpush2.msra.mxu0 0.0
  %442 = vmatprep.subr.mxu0 0.0
  %443 = vmatpush2.msra.mxu0 0.0
  %444 = vmatprep.subr.mxu0 0.0
  %445 = vmatpush2.msra.mxu0 0.0
  %446 = vmatprep.subr.mxu0 0.0
  %447 = vmatpush2.msra.mxu0 0.0
  %448 = vmatprep.subr.mxu0 0.0
  %449 = vmatpush2.msra.mxu0 0.0
  %450 = vmatprep.subr.mxu0 0.0
  %451 = vmatpush2.msra.mxu0 0.0
  %452 = vmatprep.subr.mxu0 0.0
  %453 = vmatpush2.msra.mxu0 0.0
  %454 = vmatprep.subr.mxu0 0.0
  %455 = vmatpush2.msra.mxu0 0.0
  %456 = vmatprep.subr.mxu0 0.0
  %457 = vmatpush2.msra.mxu0 0.0
  %458 = vmatprep.subr.mxu0 0.0
  %459 = vmatpush2.msra.mxu0 0.0
  %460 = vmatprep.subr.mxu0 0.0
  %461 = vmatpush2.msra.mxu0 0.0
  %462 = vmatprep.subr.mxu0 0.0
  %463 = vmatpush2.msra.mxu0 0.0
  %464 = vmatprep.subr.mxu0 0.0
  %465 = vmatpush2.msra.mxu0 0.0
  %466 = vmatprep.subr.mxu0 0.0
  %467 = vmatpush2.msra.mxu0 0.0
  %468 = vmatprep.subr.mxu0 0.0
  %469 = vmatpush2.msra.mxu0 0.0
  %470 = vmatprep.subr.mxu0 0.0
  %471 = vmatpush2.msra.mxu0 0.0
  %472 = vmatprep.mubr.f32.mxu0 0.0
  %473 = vmatmul.mubr.f32.gmra.mxu0 %v403
  %v474 = vpop.f32.mrf.mxu0
  %v475 = vadd.f32 %v394, %v474
  %v476 = vpop.f32.mrf.mxu0
  %477 = vmatprep.mubr.f32.mxu0 0.0
  %478 = vmatmul.mubr.f32.gmra.mxu0 %v406
  %v479 = vpop.f32.mrf.mxu0
  %v480 = vadd.f32 %v399, %v479
  %v481 = vpop.f32.mrf.mxu0
  %482 = vdwg.mxu0
  %s483 = scalar_lea.vmem %s1, 32
  %v484 = vld [vmem:[%s483] sm:$0xff]
  %v485 = vld [vmem:[%s483 + $0x8] sm:$0xff]
  %s486 = scalar_lea.vmem %s2, 256
  %v487 = vld [vmem:[%s486] sm:$0xf]
  %v488 = vld [vmem:[%s486 + $0x4] sm:$0xf]
  %v489 = vld [vmem:[%s486 + $0x8] sm:$0xf]
  %v490 = vld [vmem:[%s486 + $0xc] sm:$0xf]
  %v491 = vld [vmem:[%s486 + $0x10] sm:$0xf]
  %v492 = vld [vmem:[%s486 + $0x14] sm:$0xf]
  %v493 = vld [vmem:[%s486 + $0x18] sm:$0xf]
  %v494 = vld [vmem:[%s486 + $0x1c] sm:$0xf]
  %v495 = vld [vmem:[%s486 + $0x20] sm:$0xf]
  %v496 = vld [vmem:[%s486 + $0x24] sm:$0xf]
  %v497 = vld [vmem:[%s486 + $0x28] sm:$0xf]
  %v498 = vld [vmem:[%s486 + $0x2c] sm:$0xf]
  %v499 = vld [vmem:[%s486 + $0x30] sm:$0xf]
  %v500 = vld [vmem:[%s486 + $0x34] sm:$0xf]
  %v501 = vld [vmem:[%s486 + $0x38] sm:$0xf]
  %v502 = vld [vmem:[%s486 + $0x3c] sm:$0xf]
  %v503 = vld [vmem:[%s486 + $0x40] sm:$0xf]
  %v504 = vld [vmem:[%s486 + $0x44] sm:$0xf]
  %v505 = vld [vmem:[%s486 + $0x48] sm:$0xf]
  %v506 = vld [vmem:[%s486 + $0x4c] sm:$0xf]
  %v507 = vld [vmem:[%s486 + $0x50] sm:$0xf]
  %v508 = vld [vmem:[%s486 + $0x54] sm:$0xf]
  %v509 = vld [vmem:[%s486 + $0x58] sm:$0xf]
  %v510 = vld [vmem:[%s486 + $0x5c] sm:$0xf]
  %v511 = vld [vmem:[%s486 + $0x60] sm:$0xf]
  %v512 = vld [vmem:[%s486 + $0x64] sm:$0xf]
  %v513 = vld [vmem:[%s486 + $0x68] sm:$0xf]
  %v514 = vld [vmem:[%s486 + $0x6c] sm:$0xf]
  %v515 = vld [vmem:[%s486 + $0x70] sm:$0xf]
  %v516 = vld [vmem:[%s486 + $0x74] sm:$0xf]
  %v517 = vld [vmem:[%s486 + $0x78] sm:$0xf]
  %v518 = vld [vmem:[%s486 + $0x7c] sm:$0xf]
  %v519 = vunpack.c.l.bf16 %v487
  %v520 = vunpack.c.l.bf16 %v488
  %v521 = vunpack.c.l.bf16 %v489
  %v522 = vunpack.c.l.bf16 %v490
  %v523 = vunpack.c.l.bf16 %v491
  %v524 = vunpack.c.l.bf16 %v492
  %v525 = vunpack.c.l.bf16 %v493
  %v526 = vunpack.c.l.bf16 %v494
  %v527 = vunpack.c.l.bf16 %v495
  %v528 = vunpack.c.l.bf16 %v496
  %v529 = vunpack.c.l.bf16 %v497
  %v530 = vunpack.c.l.bf16 %v498
  %v531 = vunpack.c.l.bf16 %v499
  %v532 = vunpack.c.l.bf16 %v500
  %v533 = vunpack.c.l.bf16 %v501
  %v534 = vunpack.c.l.bf16 %v502
  %v535 = vunpack.c.l.bf16 %v503
  %v536 = vunpack.c.l.bf16 %v504
  %v537 = vunpack.c.l.bf16 %v505
  %v538 = vunpack.c.l.bf16 %v506
  %v539 = vunpack.c.l.bf16 %v507
  %v540 = vunpack.c.l.bf16 %v508
  %v541 = vunpack.c.l.bf16 %v509
  %v542 = vunpack.c.l.bf16 %v510
  %v543 = vunpack.c.l.bf16 %v511
  %v544 = vunpack.c.l.bf16 %v512
  %v545 = vunpack.c.l.bf16 %v513
  %v546 = vunpack.c.l.bf16 %v514
  %v547 = vunpack.c.l.bf16 %v515
  %v548 = vunpack.c.l.bf16 %v516
  %v549 = vunpack.c.l.bf16 %v517
  %v550 = vunpack.c.l.bf16 %v518
  %551 = vmatprep.subr.mxu0 0.0
  %552 = vmatpush1.msra.mxu0 %v534
  %553 = vmatprep.subr.mxu0 0.0
  %554 = vmatpush1.msra.mxu0 %v533
  %555 = vmatprep.subr.mxu0 0.0
  %556 = vmatpush1.msra.mxu0 %v532
  %557 = vmatprep.subr.mxu0 0.0
  %558 = vmatpush1.msra.mxu0 %v531
  %559 = vmatprep.subr.mxu0 0.0
  %560 = vmatpush1.msra.mxu0 %v530
  %561 = vmatprep.subr.mxu0 0.0
  %562 = vmatpush1.msra.mxu0 %v529
  %563 = vmatprep.subr.mxu0 0.0
  %564 = vmatpush1.msra.mxu0 %v528
  %565 = vmatprep.subr.mxu0 0.0
  %566 = vmatpush1.msra.mxu0 %v527
  %567 = vmatprep.subr.mxu0 0.0
  %568 = vmatpush1.msra.mxu0 %v526
  %569 = vmatprep.subr.mxu0 0.0
  %570 = vmatpush1.msra.mxu0 %v525
  %571 = vmatprep.subr.mxu0 0.0
  %572 = vmatpush1.msra.mxu0 %v524
  %573 = vmatprep.subr.mxu0 0.0
  %574 = vmatpush1.msra.mxu0 %v523
  %575 = vmatprep.subr.mxu0 0.0
  %576 = vmatpush1.msra.mxu0 %v522
  %577 = vmatprep.subr.mxu0 0.0
  %578 = vmatpush1.msra.mxu0 %v521
  %579 = vmatprep.subr.mxu0 0.0
  %580 = vmatpush1.msra.mxu0 %v520
  %581 = vmatprep.subr.mxu0 0.0
  %582 = vmatpush1.msra.mxu0 %v519
  %583 = vmatprep.subr.mxu0 0.0
  %584 = vmatpush2.msra.mxu0 %v550
  %585 = vmatprep.subr.mxu0 0.0
  %586 = vmatpush2.msra.mxu0 %v549
  %587 = vmatprep.subr.mxu0 0.0
  %588 = vmatpush2.msra.mxu0 %v548
  %589 = vmatprep.subr.mxu0 0.0
  %590 = vmatpush2.msra.mxu0 %v547
  %591 = vmatprep.subr.mxu0 0.0
  %592 = vmatpush2.msra.mxu0 %v546
  %593 = vmatprep.subr.mxu0 0.0
  %594 = vmatpush2.msra.mxu0 %v545
  %595 = vmatprep.subr.mxu0 0.0
  %596 = vmatpush2.msra.mxu0 %v544
  %597 = vmatprep.subr.mxu0 0.0
  %598 = vmatpush2.msra.mxu0 %v543
  %599 = vmatprep.subr.mxu0 0.0
  %600 = vmatpush2.msra.mxu0 %v542
  %601 = vmatprep.subr.mxu0 0.0
  %602 = vmatpush2.msra.mxu0 %v541
  %603 = vmatprep.subr.mxu0 0.0
  %604 = vmatpush2.msra.mxu0 %v540
  %605 = vmatprep.subr.mxu0 0.0
  %606 = vmatpush2.msra.mxu0 %v539
  %607 = vmatprep.subr.mxu0 0.0
  %608 = vmatpush2.msra.mxu0 %v538
  %609 = vmatprep.subr.mxu0 0.0
  %610 = vmatpush2.msra.mxu0 %v537
  %611 = vmatprep.subr.mxu0 0.0
  %612 = vmatpush2.msra.mxu0 %v536
  %613 = vmatprep.subr.mxu0 0.0
  %614 = vmatpush2.msra.mxu0 %v535
  %615 = vmatprep.mubr.f32.mxu0 %v45
  %616 = vmatmul.mubr.f32.gmra.mxu0 %v44
  %v617 = vpop.f32.mrf.mxu0
  %v618 = vadd.f32 0.0, %v617
  %v619 = vpop.f32.mrf.mxu0
  %620 = vdwg.mxu0
  %v622 = vsel %vm320, %v484, 0
  %v625 = vsel %vm320, %v485, 0
  %627 = vmatprep.subr.mxu0 0.0
  %628 = vmatpush1.msra.mxu0 0.0
  %629 = vmatprep.subr.mxu0 0.0
  %630 = vmatpush1.msra.mxu0 0.0
  %631 = vmatprep.subr.mxu0 0.0
  %632 = vmatpush1.msra.mxu0 0.0
  %633 = vmatprep.subr.mxu0 0.0
  %634 = vmatpush1.msra.mxu0 0.0
  %635 = vmatprep.subr.mxu0 0.0
  %636 = vmatpush1.msra.mxu0 0.0
  %637 = vmatprep.subr.mxu0 0.0
  %638 = vmatpush1.msra.mxu0 0.0
  %639 = vmatprep.subr.mxu0 0.0
  %640 = vmatpush1.msra.mxu0 0.0
  %641 = vmatprep.subr.mxu0 0.0
  %642 = vmatpush1.msra.mxu0 0.0
  %643 = vmatprep.subr.mxu0 0.0
  %644 = vmatpush1.msra.mxu0 0.0
  %645 = vmatprep.subr.mxu0 0.0
  %646 = vmatpush1.msra.mxu0 0.0
  %647 = vmatprep.subr.mxu0 0.0
  %648 = vmatpush1.msra.mxu0 0.0
  %649 = vmatprep.subr.mxu0 0.0
  %650 = vmatpush1.msra.mxu0 0.0
  %651 = vmatprep.subr.mxu0 0.0
  %652 = vmatpush1.msra.mxu0 0.0
  %653 = vmatprep.subr.mxu0 0.0
  %654 = vmatpush1.msra.mxu0 0.0
  %655 = vmatprep.subr.mxu0 0.0
  %656 = vmatpush1.msra.mxu0 0.0
  %657 = vmatprep.subr.mxu0 0.0
  %658 = vmatpush1.msra.mxu0 %v618
  %659 = vmatprep.subr.mxu0 0.0
  %660 = vmatpush2.msra.mxu0 0.0
  %661 = vmatprep.subr.mxu0 0.0
  %662 = vmatpush2.msra.mxu0 0.0
  %663 = vmatprep.subr.mxu0 0.0
  %664 = vmatpush2.msra.mxu0 0.0
  %665 = vmatprep.subr.mxu0 0.0
  %666 = vmatpush2.msra.mxu0 0.0
  %667 = vmatprep.subr.mxu0 0.0
  %668 = vmatpush2.msra.mxu0 0.0
  %669 = vmatprep.subr.mxu0 0.0
  %670 = vmatpush2.msra.mxu0 0.0
  %671 = vmatprep.subr.mxu0 0.0
  %672 = vmatpush2.msra.mxu0 0.0
  %673 = vmatprep.subr.mxu0 0.0
  %674 = vmatpush2.msra.mxu0 0.0
  %675 = vmatprep.subr.mxu0 0.0
  %676 = vmatpush2.msra.mxu0 0.0
  %677 = vmatprep.subr.mxu0 0.0
  %678 = vmatpush2.msra.mxu0 0.0
  %679 = vmatprep.subr.mxu0 0.0
  %680 = vmatpush2.msra.mxu0 0.0
  %681 = vmatprep.subr.mxu0 0.0
  %682 = vmatpush2.msra.mxu0 0.0
  %683 = vmatprep.subr.mxu0 0.0
  %684 = vmatpush2.msra.mxu0 0.0
  %685 = vmatprep.subr.mxu0 0.0
  %686 = vmatpush2.msra.mxu0 0.0
  %687 = vmatprep.subr.mxu0 0.0
  %688 = vmatpush2.msra.mxu0 0.0
  %689 = vmatprep.subr.mxu0 0.0
  %690 = vmatpush2.msra.mxu0 0.0
  %691 = vmatprep.mubr.f32.mxu0 0.0
  %692 = vmatmul.mubr.f32.gmra.mxu0 %v622
  %v693 = vpop.f32.mrf.mxu0
  %v694 = vadd.f32 0.0, %v693
  %v695 = vpop.f32.mrf.mxu0
  %696 = vmatprep.mubr.f32.mxu0 0.0
  %697 = vmatmul.mubr.f32.gmra.mxu0 %v625
  %v698 = vpop.f32.mrf.mxu0
  %v699 = vadd.f32 0.0, %v698
  %v700 = vpop.f32.mrf.mxu0
  %701 = vdwg.mxu0
  %v702 = vadd.f32 %v475, %v694
  %v703 = vadd.f32 %v480, %v699
  %s704 = scalar_lea.vmem %s1, 48
  %v705 = vld [vmem:[%s704] sm:$0xff]
  %v706 = vld [vmem:[%s704 + $0x8] sm:$0xff]
  %s707 = scalar_lea.vmem %s2, 384
  %v708 = vld [vmem:[%s707] sm:$0xf]
  %v709 = vld [vmem:[%s707 + $0x4] sm:$0xf]
  %v710 = vld [vmem:[%s707 + $0x8] sm:$0xf]
  %v711 = vld [vmem:[%s707 + $0xc] sm:$0xf]
  %v712 = vld [vmem:[%s707 + $0x10] sm:$0xf]
  %v713 = vld [vmem:[%s707 + $0x14] sm:$0xf]
  %v714 = vld [vmem:[%s707 + $0x18] sm:$0xf]
  %v715 = vld [vmem:[%s707 + $0x1c] sm:$0xf]
  %v716 = vld [vmem:[%s707 + $0x20] sm:$0xf]
  %v717 = vld [vmem:[%s707 + $0x24] sm:$0xf]
  %v718 = vld [vmem:[%s707 + $0x28] sm:$0xf]
  %v719 = vld [vmem:[%s707 + $0x2c] sm:$0xf]
  %v720 = vld [vmem:[%s707 + $0x30] sm:$0xf]
  %v721 = vld [vmem:[%s707 + $0x34] sm:$0xf]
  %v722 = vld [vmem:[%s707 + $0x38] sm:$0xf]
  %v723 = vld [vmem:[%s707 + $0x3c] sm:$0xf]
  %v724 = vld [vmem:[%s707 + $0x40] sm:$0xf]
  %v725 = vld [vmem:[%s707 + $0x44] sm:$0xf]
  %v726 = vld [vmem:[%s707 + $0x48] sm:$0xf]
  %v727 = vld [vmem:[%s707 + $0x4c] sm:$0xf]
  %v728 = vld [vmem:[%s707 + $0x50] sm:$0xf]
  %v729 = vld [vmem:[%s707 + $0x54] sm:$0xf]
  %v730 = vld [vmem:[%s707 + $0x58] sm:$0xf]
  %v731 = vld [vmem:[%s707 + $0x5c] sm:$0xf]
  %v732 = vld [vmem:[%s707 + $0x60] sm:$0xf]
  %v733 = vld [vmem:[%s707 + $0x64] sm:$0xf]
  %v734 = vld [vmem:[%s707 + $0x68] sm:$0xf]
  %v735 = vld [vmem:[%s707 + $0x6c] sm:$0xf]
  %v736 = vld [vmem:[%s707 + $0x70] sm:$0xf]
  %v737 = vld [vmem:[%s707 + $0x74] sm:$0xf]
  %v738 = vld [vmem:[%s707 + $0x78] sm:$0xf]
  %v739 = vld [vmem:[%s707 + $0x7c] sm:$0xf]
  %v740 = vunpack.c.l.bf16 %v708
  %v741 = vunpack.c.l.bf16 %v709
  %v742 = vunpack.c.l.bf16 %v710
  %v743 = vunpack.c.l.bf16 %v711
  %v744 = vunpack.c.l.bf16 %v712
  %v745 = vunpack.c.l.bf16 %v713
  %v746 = vunpack.c.l.bf16 %v714
  %v747 = vunpack.c.l.bf16 %v715
  %v748 = vunpack.c.l.bf16 %v716
  %v749 = vunpack.c.l.bf16 %v717
  %v750 = vunpack.c.l.bf16 %v718
  %v751 = vunpack.c.l.bf16 %v719
  %v752 = vunpack.c.l.bf16 %v720
  %v753 = vunpack.c.l.bf16 %v721
  %v754 = vunpack.c.l.bf16 %v722
  %v755 = vunpack.c.l.bf16 %v723
  %v756 = vunpack.c.l.bf16 %v724
  %v757 = vunpack.c.l.bf16 %v725
  %v758 = vunpack.c.l.bf16 %v726
  %v759 = vunpack.c.l.bf16 %v727
  %v760 = vunpack.c.l.bf16 %v728
  %v761 = vunpack.c.l.bf16 %v729
  %v762 = vunpack.c.l.bf16 %v730
  %v763 = vunpack.c.l.bf16 %v731
  %v764 = vunpack.c.l.bf16 %v732
  %v765 = vunpack.c.l.bf16 %v733
  %v766 = vunpack.c.l.bf16 %v734
  %v767 = vunpack.c.l.bf16 %v735
  %v768 = vunpack.c.l.bf16 %v736
  %v769 = vunpack.c.l.bf16 %v737
  %v770 = vunpack.c.l.bf16 %v738
  %v771 = vunpack.c.l.bf16 %v739
  %772 = vmatprep.subr.mxu0 0.0
  %773 = vmatpush1.msra.mxu0 %v755
  %774 = vmatprep.subr.mxu0 0.0
  %775 = vmatpush1.msra.mxu0 %v754
  %776 = vmatprep.subr.mxu0 0.0
  %777 = vmatpush1.msra.mxu0 %v753
  %778 = vmatprep.subr.mxu0 0.0
  %779 = vmatpush1.msra.mxu0 %v752
  %780 = vmatprep.subr.mxu0 0.0
  %781 = vmatpush1.msra.mxu0 %v751
  %782 = vmatprep.subr.mxu0 0.0
  %783 = vmatpush1.msra.mxu0 %v750
  %784 = vmatprep.subr.mxu0 0.0
  %785 = vmatpush1.msra.mxu0 %v749
  %786 = vmatprep.subr.mxu0 0.0
  %787 = vmatpush1.msra.mxu0 %v748
  %788 = vmatprep.subr.mxu0 0.0
  %789 = vmatpush1.msra.mxu0 %v747
  %790 = vmatprep.subr.mxu0 0.0
  %791 = vmatpush1.msra.mxu0 %v746
  %792 = vmatprep.subr.mxu0 0.0
  %793 = vmatpush1.msra.mxu0 %v745
  %794 = vmatprep.subr.mxu0 0.0
  %795 = vmatpush1.msra.mxu0 %v744
  %796 = vmatprep.subr.mxu0 0.0
  %797 = vmatpush1.msra.mxu0 %v743
  %798 = vmatprep.subr.mxu0 0.0
  %799 = vmatpush1.msra.mxu0 %v742
  %800 = vmatprep.subr.mxu0 0.0
  %801 = vmatpush1.msra.mxu0 %v741
  %802 = vmatprep.subr.mxu0 0.0
  %803 = vmatpush1.msra.mxu0 %v740
  %804 = vmatprep.subr.mxu0 0.0
  %805 = vmatpush2.msra.mxu0 %v771
  %806 = vmatprep.subr.mxu0 0.0
  %807 = vmatpush2.msra.mxu0 %v770
  %808 = vmatprep.subr.mxu0 0.0
  %809 = vmatpush2.msra.mxu0 %v769
  %810 = vmatprep.subr.mxu0 0.0
  %811 = vmatpush2.msra.mxu0 %v768
  %812 = vmatprep.subr.mxu0 0.0
  %813 = vmatpush2.msra.mxu0 %v767
  %814 = vmatprep.subr.mxu0 0.0
  %815 = vmatpush2.msra.mxu0 %v766
  %816 = vmatprep.subr.mxu0 0.0
  %817 = vmatpush2.msra.mxu0 %v765
  %818 = vmatprep.subr.mxu0 0.0
  %819 = vmatpush2.msra.mxu0 %v764
  %820 = vmatprep.subr.mxu0 0.0
  %821 = vmatpush2.msra.mxu0 %v763
  %822 = vmatprep.subr.mxu0 0.0
  %823 = vmatpush2.msra.mxu0 %v762
  %824 = vmatprep.subr.mxu0 0.0
  %825 = vmatpush2.msra.mxu0 %v761
  %826 = vmatprep.subr.mxu0 0.0
  %827 = vmatpush2.msra.mxu0 %v760
  %828 = vmatprep.subr.mxu0 0.0
  %829 = vmatpush2.msra.mxu0 %v759
  %830 = vmatprep.subr.mxu0 0.0
  %831 = vmatpush2.msra.mxu0 %v758
  %832 = vmatprep.subr.mxu0 0.0
  %833 = vmatpush2.msra.mxu0 %v757
  %834 = vmatprep.subr.mxu0 0.0
  %835 = vmatpush2.msra.mxu0 %v756
  %836 = vmatprep.mubr.f32.mxu0 %v45
  %837 = vmatmul.mubr.f32.gmra.mxu0 %v44
  %v838 = vpop.f32.mrf.mxu0
  %v839 = vadd.f32 0.0, %v838
  %v840 = vpop.f32.mrf.mxu0
  %841 = vdwg.mxu0
  %v843 = vsel %vm320, %v705, 0
  %v846 = vsel %vm320, %v706, 0
  %848 = vmatprep.subr.mxu0 0.0
  %849 = vmatpush1.msra.mxu0 0.0
  %850 = vmatprep.subr.mxu0 0.0
  %851 = vmatpush1.msra.mxu0 0.0
  %852 = vmatprep.subr.mxu0 0.0
  %853 = vmatpush1.msra.mxu0 0.0
  %854 = vmatprep.subr.mxu0 0.0
  %855 = vmatpush1.msra.mxu0 0.0
  %856 = vmatprep.subr.mxu0 0.0
  %857 = vmatpush1.msra.mxu0 0.0
  %858 = vmatprep.subr.mxu0 0.0
  %859 = vmatpush1.msra.mxu0 0.0
  %860 = vmatprep.subr.mxu0 0.0
  %861 = vmatpush1.msra.mxu0 0.0
  %862 = vmatprep.subr.mxu0 0.0
  %863 = vmatpush1.msra.mxu0 0.0
  %864 = vmatprep.subr.mxu0 0.0
  %865 = vmatpush1.msra.mxu0 0.0
  %866 = vmatprep.subr.mxu0 0.0
  %867 = vmatpush1.msra.mxu0 0.0
  %868 = vmatprep.subr.mxu0 0.0
  %869 = vmatpush1.msra.mxu0 0.0
  %870 = vmatprep.subr.mxu0 0.0
  %871 = vmatpush1.msra.mxu0 0.0
  %872 = vmatprep.subr.mxu0 0.0
  %873 = vmatpush1.msra.mxu0 0.0
  %874 = vmatprep.subr.mxu0 0.0
  %875 = vmatpush1.msra.mxu0 0.0
  %876 = vmatprep.subr.mxu0 0.0
  %877 = vmatpush1.msra.mxu0 0.0
  %878 = vmatprep.subr.mxu0 0.0
  %879 = vmatpush1.msra.mxu0 %v839
  %880 = vmatprep.subr.mxu0 0.0
  %881 = vmatpush2.msra.mxu0 0.0
  %882 = vmatprep.subr.mxu0 0.0
  %883 = vmatpush2.msra.mxu0 0.0
  %884 = vmatprep.subr.mxu0 0.0
  %885 = vmatpush2.msra.mxu0 0.0
  %886 = vmatprep.subr.mxu0 0.0
  %887 = vmatpush2.msra.mxu0 0.0
  %888 = vmatprep.subr.mxu0 0.0
  %889 = vmatpush2.msra.mxu0 0.0
  %890 = vmatprep.subr.mxu0 0.0
  %891 = vmatpush2.msra.mxu0 0.0
  %892 = vmatprep.subr.mxu0 0.0
  %893 = vmatpush2.msra.mxu0 0.0
  %894 = vmatprep.subr.mxu0 0.0
  %895 = vmatpush2.msra.mxu0 0.0
  %896 = vmatprep.subr.mxu0 0.0
  %897 = vmatpush2.msra.mxu0 0.0
  %898 = vmatprep.subr.mxu0 0.0
  %899 = vmatpush2.msra.mxu0 0.0
  %900 = vmatprep.subr.mxu0 0.0
  %901 = vmatpush2.msra.mxu0 0.0
  %902 = vmatprep.subr.mxu0 0.0
  %903 = vmatpush2.msra.mxu0 0.0
  %904 = vmatprep.subr.mxu0 0.0
  %905 = vmatpush2.msra.mxu0 0.0
  %906 = vmatprep.subr.mxu0 0.0
  %907 = vmatpush2.msra.mxu0 0.0
  %908 = vmatprep.subr.mxu0 0.0
  %909 = vmatpush2.msra.mxu0 0.0
  %910 = vmatprep.subr.mxu0 0.0
  %911 = vmatpush2.msra.mxu0 0.0
  %912 = vmatprep.mubr.f32.mxu0 0.0
  %913 = vmatmul.mubr.f32.gmra.mxu0 %v843
  %v914 = vpop.f32.mrf.mxu0
  %v915 = vadd.f32 0.0, %v914
  %v916 = vpop.f32.mrf.mxu0
  %917 = vmatprep.mubr.f32.mxu0 0.0
  %918 = vmatmul.mubr.f32.gmra.mxu0 %v846
  %v919 = vpop.f32.mrf.mxu0
  %v920 = vadd.f32 0.0, %v919
  %v921 = vpop.f32.mrf.mxu0
  %922 = vdwg.mxu0
  %v923 = vadd.f32 %v702, %v915
  %v924 = vadd.f32 %v703, %v920
  %v925 = vld [vmem:[%s3] sm:$0xff]
  %v926 = vld [vmem:[%s3 + $0x8] sm:$0xff]
  %928 = vset.pattern.permute.xlu0 0
  %929 = vperm.xlu0 %928, %v925
  %v930 = vpop.permute.xlu0 %929
  %933 = vset.pattern.permute.xlu0 0
  %934 = vperm.xlu0 %933, %v926
  %v935 = vpop.permute.xlu0 %934
  %v937 = vadd.f32 %v923, %v930
  %v938 = vadd.f32 %v924, %v935
  %v939 = vmax.f32 %v937, 0.0
  %v940 = vmax.f32 %v938, 0.0
  %v941 = vld [vmem:[%s4] sm:$0xff]
  %v942 = vld [vmem:[%s4 + $0x8] sm:$0xff]
  %v943 = vld [vmem:[%s5] sm:$0xf]
  %v944 = vld [vmem:[%s5 + $0x4] sm:$0xf]
  %v945 = vld [vmem:[%s5 + $0x8] sm:$0xf]
  %v946 = vld [vmem:[%s5 + $0xc] sm:$0xf]
  %v947 = vld [vmem:[%s5 + $0x10] sm:$0xf]
  %v948 = vld [vmem:[%s5 + $0x14] sm:$0xf]
  %v949 = vld [vmem:[%s5 + $0x18] sm:$0xf]
  %v950 = vld [vmem:[%s5 + $0x1c] sm:$0xf]
  %v951 = vunpack.c.l.bf16 %v943
  %v952 = vunpack.c.l.bf16 %v944
  %v953 = vunpack.c.l.bf16 %v945
  %v954 = vunpack.c.l.bf16 %v946
  %v955 = vunpack.c.l.bf16 %v947
  %v956 = vunpack.c.l.bf16 %v948
  %v957 = vunpack.c.l.bf16 %v949
  %v958 = vunpack.c.l.bf16 %v950
  %vm959 = vcmask 523264
  %v961 = vsel %vm959, %v939, 0
  %v964 = vsel %vm959, %v940, 0
  %966 = vmatprep.subr.mxu0 0.0
  %967 = vmatpush1.msra.mxu0 0.0
  %968 = vmatprep.subr.mxu0 0.0
  %969 = vmatpush1.msra.mxu0 0.0
  %970 = vmatprep.subr.mxu0 0.0
  %971 = vmatpush1.msra.mxu0 0.0
  %972 = vmatprep.subr.mxu0 0.0
  %973 = vmatpush1.msra.mxu0 0.0
  %974 = vmatprep.subr.mxu0 0.0
  %975 = vmatpush1.msra.mxu0 0.0
  %976 = vmatprep.subr.mxu0 0.0
  %977 = vmatpush1.msra.mxu0 0.0
  %978 = vmatprep.subr.mxu0 0.0
  %979 = vmatpush1.msra.mxu0 0.0
  %980 = vmatprep.subr.mxu0 0.0
  %981 = vmatpush1.msra.mxu0 0.0
  %982 = vmatprep.subr.mxu0 0.0
  %983 = vmatpush1.msra.mxu0 %v958
  %984 = vmatprep.subr.mxu0 0.0
  %985 = vmatpush1.msra.mxu0 %v957
  %986 = vmatprep.subr.mxu0 0.0
  %987 = vmatpush1.msra.mxu0 %v956
  %988 = vmatprep.subr.mxu0 0.0
  %989 = vmatpush1.msra.mxu0 %v955
  %990 = vmatprep.subr.mxu0 0.0
  %991 = vmatpush1.msra.mxu0 %v954
  %992 = vmatprep.subr.mxu0 0.0
  %993 = vmatpush1.msra.mxu0 %v953
  %994 = vmatprep.subr.mxu0 0.0
  %995 = vmatpush1.msra.mxu0 %v952
  %996 = vmatprep.subr.mxu0 0.0
  %997 = vmatpush1.msra.mxu0 %v951
  %998 = vmatprep.subr.mxu0 0.0
  %999 = vmatpush2.msra.mxu0 0.0
  %1000 = vmatprep.subr.mxu0 0.0
  %1001 = vmatpush2.msra.mxu0 0.0
  %1002 = vmatprep.subr.mxu0 0.0
  %1003 = vmatpush2.msra.mxu0 0.0
  %1004 = vmatprep.subr.mxu0 0.0
  %1005 = vmatpush2.msra.mxu0 0.0
  %1006 = vmatprep.subr.mxu0 0.0
  %1007 = vmatpush2.msra.mxu0 0.0
  %1008 = vmatprep.subr.mxu0 0.0
  %1009 = vmatpush2.msra.mxu0 0.0
  %1010 = vmatprep.subr.mxu0 0.0
  %1011 = vmatpush2.msra.mxu0 0.0
  %1012 = vmatprep.subr.mxu0 0.0
  %1013 = vmatpush2.msra.mxu0 0.0
  %1014 = vmatprep.subr.mxu0 0.0
  %1015 = vmatpush2.msra.mxu0 0.0
  %1016 = vmatprep.subr.mxu0 0.0
  %1017 = vmatpush2.msra.mxu0 0.0
  %1018 = vmatprep.subr.mxu0 0.0
  %1019 = vmatpush2.msra.mxu0 0.0
  %1020 = vmatprep.subr.mxu0 0.0
  %1021 = vmatpush2.msra.mxu0 0.0
  %1022 = vmatprep.subr.mxu0 0.0
  %1023 = vmatpush2.msra.mxu0 0.0
  %1024 = vmatprep.subr.mxu0 0.0
  %1025 = vmatpush2.msra.mxu0 0.0
  %1026 = vmatprep.subr.mxu0 0.0
  %1027 = vmatpush2.msra.mxu0 0.0
  %1028 = vmatprep.subr.mxu0 0.0
  %1029 = vmatpush2.msra.mxu0 0.0
  %1030 = vmatprep.mubr.f32.mxu0 0.0
  %1031 = vmatmul.mubr.f32.gmra.mxu0 %v961
  %v1032 = vpop.f32.mrf.mxu0
  %v1033 = vadd.f32 0.0, %v1032
  %v1034 = vpop.f32.mrf.mxu0
  %1035 = vmatprep.mubr.f32.mxu0 0.0
  %1036 = vmatmul.mubr.f32.gmra.mxu0 %v964
  %v1037 = vpop.f32.mrf.mxu0
  %v1038 = vadd.f32 0.0, %v1037
  %v1039 = vpop.f32.mrf.mxu0
  %1040 = vdwg.mxu0
  %s1041 = scalar_lea.vmem %s4, 16
  %v1042 = vld [vmem:[%s1041] sm:$0xff]
  %v1043 = vld [vmem:[%s1041 + $0x8] sm:$0xff]
  %s1044 = scalar_lea.vmem %s5, 32
  %v1045 = vld [vmem:[%s1044] sm:$0xf]
  %v1046 = vld [vmem:[%s1044 + $0x4] sm:$0xf]
  %v1047 = vld [vmem:[%s1044 + $0x8] sm:$0xf]
  %v1048 = vld [vmem:[%s1044 + $0xc] sm:$0xf]
  %v1049 = vld [vmem:[%s1044 + $0x10] sm:$0xf]
  %v1050 = vld [vmem:[%s1044 + $0x14] sm:$0xf]
  %v1051 = vld [vmem:[%s1044 + $0x18] sm:$0xf]
  %v1052 = vld [vmem:[%s1044 + $0x1c] sm:$0xf]
  %v1053 = vunpack.c.l.bf16 %v1045
  %v1054 = vunpack.c.l.bf16 %v1046
  %v1055 = vunpack.c.l.bf16 %v1047
  %v1056 = vunpack.c.l.bf16 %v1048
  %v1057 = vunpack.c.l.bf16 %v1049
  %v1058 = vunpack.c.l.bf16 %v1050
  %v1059 = vunpack.c.l.bf16 %v1051
  %v1060 = vunpack.c.l.bf16 %v1052
  %1061 = vmatprep.subr.mxu0 0.0
  %1062 = vmatpush1.msra.mxu0 0.0
  %1063 = vmatprep.subr.mxu0 0.0
  %1064 = vmatpush1.msra.mxu0 0.0
  %1065 = vmatprep.subr.mxu0 0.0
  %1066 = vmatpush1.msra.mxu0 0.0
  %1067 = vmatprep.subr.mxu0 0.0
  %1068 = vmatpush1.msra.mxu0 0.0
  %1069 = vmatprep.subr.mxu0 0.0
  %1070 = vmatpush1.msra.mxu0 0.0
  %1071 = vmatprep.subr.mxu0 0.0
  %1072 = vmatpush1.msra.mxu0 0.0
  %1073 = vmatprep.subr.mxu0 0.0
  %1074 = vmatpush1.msra.mxu0 0.0
  %1075 = vmatprep.subr.mxu0 0.0
  %1076 = vmatpush1.msra.mxu0 0.0
  %1077 = vmatprep.subr.mxu0 0.0
  %1078 = vmatpush1.msra.mxu0 %v1060
  %1079 = vmatprep.subr.mxu0 0.0
  %1080 = vmatpush1.msra.mxu0 %v1059
  %1081 = vmatprep.subr.mxu0 0.0
  %1082 = vmatpush1.msra.mxu0 %v1058
  %1083 = vmatprep.subr.mxu0 0.0
  %1084 = vmatpush1.msra.mxu0 %v1057
  %1085 = vmatprep.subr.mxu0 0.0
  %1086 = vmatpush1.msra.mxu0 %v1056
  %1087 = vmatprep.subr.mxu0 0.0
  %1088 = vmatpush1.msra.mxu0 %v1055
  %1089 = vmatprep.subr.mxu0 0.0
  %1090 = vmatpush1.msra.mxu0 %v1054
  %1091 = vmatprep.subr.mxu0 0.0
  %1092 = vmatpush1.msra.mxu0 %v1053
  %1093 = vmatprep.subr.mxu0 0.0
  %1094 = vmatpush2.msra.mxu0 0.0
  %1095 = vmatprep.subr.mxu0 0.0
  %1096 = vmatpush2.msra.mxu0 0.0
  %1097 = vmatprep.subr.mxu0 0.0
  %1098 = vmatpush2.msra.mxu0 0.0
  %1099 = vmatprep.subr.mxu0 0.0
  %1100 = vmatpush2.msra.mxu0 0.0
  %1101 = vmatprep.subr.mxu0 0.0
  %1102 = vmatpush2.msra.mxu0 0.0
  %1103 = vmatprep.subr.mxu0 0.0
  %1104 = vmatpush2.msra.mxu0 0.0
  %1105 = vmatprep.subr.mxu0 0.0
  %1106 = vmatpush2.msra.mxu0 0.0
  %1107 = vmatprep.subr.mxu0 0.0
  %1108 = vmatpush2.msra.mxu0 0.0
  %1109 = vmatprep.subr.mxu0 0.0
  %1110 = vmatpush2.msra.mxu0 0.0
  %1111 = vmatprep.subr.mxu0 0.0
  %1112 = vmatpush2.msra.mxu0 0.0
  %1113 = vmatprep.subr.mxu0 0.0
  %1114 = vmatpush2.msra.mxu0 0.0
  %1115 = vmatprep.subr.mxu0 0.0
  %1116 = vmatpush2.msra.mxu0 0.0
  %1117 = vmatprep.subr.mxu0 0.0
  %1118 = vmatpush2.msra.mxu0 0.0
  %1119 = vmatprep.subr.mxu0 0.0
  %1120 = vmatpush2.msra.mxu0 0.0
  %1121 = vmatprep.subr.mxu0 0.0
  %1122 = vmatpush2.msra.mxu0 0.0
  %1123 = vmatprep.subr.mxu0 0.0
  %1124 = vmatpush2.msra.mxu0 0.0
  %1125 = vmatprep.mubr.f32.mxu0 0.0
  %1126 = vmatmul.mubr.f32.gmra.mxu0 %v961
  %v1127 = vpop.f32.mrf.mxu0
  %v1128 = vadd.f32 0.0, %v1127
  %v1129 = vpop.f32.mrf.mxu0
  %1130 = vmatprep.mubr.f32.mxu0 0.0
  %1131 = vmatmul.mubr.f32.gmra.mxu0 %v964
  %v1132 = vpop.f32.mrf.mxu0
  %v1133 = vadd.f32 0.0, %v1132
  %v1134 = vpop.f32.mrf.mxu0
  %1135 = vdwg.mxu0
  %vm1136 = vcmask 130048
  %v1138 = vsel %vm1136, %v1042, 0
  %v1141 = vsel %vm1136, %v1043, 0
  %1143 = vmatprep.subr.mxu0 0.0
  %1144 = vmatpush1.msra.mxu0 0.0
  %1145 = vmatprep.subr.mxu0 0.0
  %1146 = vmatpush1.msra.mxu0 0.0
  %1147 = vmatprep.subr.mxu0 0.0
  %1148 = vmatpush1.msra.mxu0 0.0
  %1149 = vmatprep.subr.mxu0 0.0
  %1150 = vmatpush1.msra.mxu0 0.0
  %1151 = vmatprep.subr.mxu0 0.0
  %1152 = vmatpush1.msra.mxu0 0.0
  %1153 = vmatprep.subr.mxu0 0.0
  %1154 = vmatpush1.msra.mxu0 0.0
  %1155 = vmatprep.subr.mxu0 0.0
  %1156 = vmatpush1.msra.mxu0 0.0
  %1157 = vmatprep.subr.mxu0 0.0
  %1158 = vmatpush1.msra.mxu0 0.0
  %1159 = vmatprep.subr.mxu0 0.0
  %1160 = vmatpush1.msra.mxu0 0.0
  %1161 = vmatprep.subr.mxu0 0.0
  %1162 = vmatpush1.msra.mxu0 0.0
  %1163 = vmatprep.subr.mxu0 0.0
  %1164 = vmatpush1.msra.mxu0 0.0
  %1165 = vmatprep.subr.mxu0 0.0
  %1166 = vmatpush1.msra.mxu0 0.0
  %1167 = vmatprep.subr.mxu0 0.0
  %1168 = vmatpush1.msra.mxu0 0.0
  %1169 = vmatprep.subr.mxu0 0.0
  %1170 = vmatpush1.msra.mxu0 0.0
  %1171 = vmatprep.subr.mxu0 0.0
  %1172 = vmatpush1.msra.mxu0 %v1133
  %1173 = vmatprep.subr.mxu0 0.0
  %1174 = vmatpush1.msra.mxu0 %v1128
  %1175 = vmatprep.subr.mxu0 0.0
  %1176 = vmatpush2.msra.mxu0 0.0
  %1177 = vmatprep.subr.mxu0 0.0
  %1178 = vmatpush2.msra.mxu0 0.0
  %1179 = vmatprep.subr.mxu0 0.0
  %1180 = vmatpush2.msra.mxu0 0.0
  %1181 = vmatprep.subr.mxu0 0.0
  %1182 = vmatpush2.msra.mxu0 0.0
  %1183 = vmatprep.subr.mxu0 0.0
  %1184 = vmatpush2.msra.mxu0 0.0
  %1185 = vmatprep.subr.mxu0 0.0
  %1186 = vmatpush2.msra.mxu0 0.0
  %1187 = vmatprep.subr.mxu0 0.0
  %1188 = vmatpush2.msra.mxu0 0.0
  %1189 = vmatprep.subr.mxu0 0.0
  %1190 = vmatpush2.msra.mxu0 0.0
  %1191 = vmatprep.subr.mxu0 0.0
  %1192 = vmatpush2.msra.mxu0 0.0
  %1193 = vmatprep.subr.mxu0 0.0
  %1194 = vmatpush2.msra.mxu0 0.0
  %1195 = vmatprep.subr.mxu0 0.0
  %1196 = vmatpush2.msra.mxu0 0.0
  %1197 = vmatprep.subr.mxu0 0.0
  %1198 = vmatpush2.msra.mxu0 0.0
  %1199 = vmatprep.subr.mxu0 0.0
  %1200 = vmatpush2.msra.mxu0 0.0
  %1201 = vmatprep.subr.mxu0 0.0
  %1202 = vmatpush2.msra.mxu0 0.0
  %1203 = vmatprep.subr.mxu0 0.0
  %1204 = vmatpush2.msra.mxu0 0.0
  %1205 = vmatprep.subr.mxu0 0.0
  %1206 = vmatpush2.msra.mxu0 0.0
  %1207 = vmatprep.mubr.f32.mxu0 0.0
  %1208 = vmatmul.mubr.f32.gmra.mxu0 %v1138
  %v1209 = vpop.f32.mrf.mxu0
  %v1210 = vadd.f32 0.0, %v1209
  %v1211 = vpop.f32.mrf.mxu0
  %1212 = vmatprep.mubr.f32.mxu0 0.0
  %1213 = vmatmul.mubr.f32.gmra.mxu0 %v1141
  %v1214 = vpop.f32.mrf.mxu0
  %v1215 = vadd.f32 0.0, %v1214
  %v1216 = vpop.f32.mrf.mxu0
  %1217 = vdwg.mxu0
  %v1219 = vsel %vm1136, %v941, 0
  %v1222 = vsel %vm1136, %v942, 0
  %1224 = vmatprep.subr.mxu0 0.0
  %1225 = vmatpush1.msra.mxu0 0.0
  %1226 = vmatprep.subr.mxu0 0.0
  %1227 = vmatpush1.msra.mxu0 0.0
  %1228 = vmatprep.subr.mxu0 0.0
  %1229 = vmatpush1.msra.mxu0 0.0
  %1230 = vmatprep.subr.mxu0 0.0
  %1231 = vmatpush1.msra.mxu0 0.0
  %1232 = vmatprep.subr.mxu0 0.0
  %1233 = vmatpush1.msra.mxu0 0.0
  %1234 = vmatprep.subr.mxu0 0.0
  %1235 = vmatpush1.msra.mxu0 0.0
  %1236 = vmatprep.subr.mxu0 0.0
  %1237 = vmatpush1.msra.mxu0 0.0
  %1238 = vmatprep.subr.mxu0 0.0
  %1239 = vmatpush1.msra.mxu0 0.0
  %1240 = vmatprep.subr.mxu0 0.0
  %1241 = vmatpush1.msra.mxu0 0.0
  %1242 = vmatprep.subr.mxu0 0.0
  %1243 = vmatpush1.msra.mxu0 0.0
  %1244 = vmatprep.subr.mxu0 0.0
  %1245 = vmatpush1.msra.mxu0 0.0
  %1246 = vmatprep.subr.mxu0 0.0
  %1247 = vmatpush1.msra.mxu0 0.0
  %1248 = vmatprep.subr.mxu0 0.0
  %1249 = vmatpush1.msra.mxu0 0.0
  %1250 = vmatprep.subr.mxu0 0.0
  %1251 = vmatpush1.msra.mxu0 0.0
  %1252 = vmatprep.subr.mxu0 0.0
  %1253 = vmatpush1.msra.mxu0 %v1038
  %1254 = vmatprep.subr.mxu0 0.0
  %1255 = vmatpush1.msra.mxu0 %v1033
  %1256 = vmatprep.subr.mxu0 0.0
  %1257 = vmatpush2.msra.mxu0 0.0
  %1258 = vmatprep.subr.mxu0 0.0
  %1259 = vmatpush2.msra.mxu0 0.0
  %1260 = vmatprep.subr.mxu0 0.0
  %1261 = vmatpush2.msra.mxu0 0.0
  %1262 = vmatprep.subr.mxu0 0.0
  %1263 = vmatpush2.msra.mxu0 0.0
  %1264 = vmatprep.subr.mxu0 0.0
  %1265 = vmatpush2.msra.mxu0 0.0
  %1266 = vmatprep.subr.mxu0 0.0
  %1267 = vmatpush2.msra.mxu0 0.0
  %1268 = vmatprep.subr.mxu0 0.0
  %1269 = vmatpush2.msra.mxu0 0.0
  %1270 = vmatprep.subr.mxu0 0.0
  %1271 = vmatpush2.msra.mxu0 0.0
  %1272 = vmatprep.subr.mxu0 0.0
  %1273 = vmatpush2.msra.mxu0 0.0
  %1274 = vmatprep.subr.mxu0 0.0
  %1275 = vmatpush2.msra.mxu0 0.0
  %1276 = vmatprep.subr.mxu0 0.0
  %1277 = vmatpush2.msra.mxu0 0.0
  %1278 = vmatprep.subr.mxu0 0.0
  %1279 = vmatpush2.msra.mxu0 0.0
  %1280 = vmatprep.subr.mxu0 0.0
  %1281 = vmatpush2.msra.mxu0 0.0
  %1282 = vmatprep.subr.mxu0 0.0
  %1283 = vmatpush2.msra.mxu0 0.0
  %1284 = vmatprep.subr.mxu0 0.0
  %1285 = vmatpush2.msra.mxu0 0.0
  %1286 = vmatprep.subr.mxu0 0.0
  %1287 = vmatpush2.msra.mxu0 0.0
  %1288 = vmatprep.mubr.f32.mxu0 0.0
  %1289 = vmatmul.mubr.f32.gmra.mxu0 %v1219
  %v1290 = vpop.f32.mrf.mxu0
  %v1291 = vadd.f32 %v1210, %v1290
  %v1292 = vpop.f32.mrf.mxu0
  %1293 = vmatprep.mubr.f32.mxu0 0.0
  %1294 = vmatmul.mubr.f32.gmra.mxu0 %v1222
  %v1295 = vpop.f32.mrf.mxu0
  %v1296 = vadd.f32 %v1215, %v1295
  %v1297 = vpop.f32.mrf.mxu0
  %1298 = vdwg.mxu0
  %s1299 = scalar_lea.vmem %s4, 32
  %v1300 = vld [vmem:[%s1299] sm:$0xff]
  %v1301 = vld [vmem:[%s1299 + $0x8] sm:$0xff]
  %s1302 = scalar_lea.vmem %s5, 64
  %v1303 = vld [vmem:[%s1302] sm:$0xf]
  %v1304 = vld [vmem:[%s1302 + $0x4] sm:$0xf]
  %v1305 = vld [vmem:[%s1302 + $0x8] sm:$0xf]
  %v1306 = vld [vmem:[%s1302 + $0xc] sm:$0xf]
  %v1307 = vld [vmem:[%s1302 + $0x10] sm:$0xf]
  %v1308 = vld [vmem:[%s1302 + $0x14] sm:$0xf]
  %v1309 = vld [vmem:[%s1302 + $0x18] sm:$0xf]
  %v1310 = vld [vmem:[%s1302 + $0x1c] sm:$0xf]
  %v1311 = vunpack.c.l.bf16 %v1303
  %v1312 = vunpack.c.l.bf16 %v1304
  %v1313 = vunpack.c.l.bf16 %v1305
  %v1314 = vunpack.c.l.bf16 %v1306
  %v1315 = vunpack.c.l.bf16 %v1307
  %v1316 = vunpack.c.l.bf16 %v1308
  %v1317 = vunpack.c.l.bf16 %v1309
  %v1318 = vunpack.c.l.bf16 %v1310
  %1319 = vmatprep.subr.mxu0 0.0
  %1320 = vmatpush1.msra.mxu0 0.0
  %1321 = vmatprep.subr.mxu0 0.0
  %1322 = vmatpush1.msra.mxu0 0.0
  %1323 = vmatprep.subr.mxu0 0.0
  %1324 = vmatpush1.msra.mxu0 0.0
  %1325 = vmatprep.subr.mxu0 0.0
  %1326 = vmatpush1.msra.mxu0 0.0
  %1327 = vmatprep.subr.mxu0 0.0
  %1328 = vmatpush1.msra.mxu0 0.0
  %1329 = vmatprep.subr.mxu0 0.0
  %1330 = vmatpush1.msra.mxu0 0.0
  %1331 = vmatprep.subr.mxu0 0.0
  %1332 = vmatpush1.msra.mxu0 0.0
  %1333 = vmatprep.subr.mxu0 0.0
  %1334 = vmatpush1.msra.mxu0 0.0
  %1335 = vmatprep.subr.mxu0 0.0
  %1336 = vmatpush1.msra.mxu0 %v1318
  %1337 = vmatprep.subr.mxu0 0.0
  %1338 = vmatpush1.msra.mxu0 %v1317
  %1339 = vmatprep.subr.mxu0 0.0
  %1340 = vmatpush1.msra.mxu0 %v1316
  %1341 = vmatprep.subr.mxu0 0.0
  %1342 = vmatpush1.msra.mxu0 %v1315
  %1343 = vmatprep.subr.mxu0 0.0
  %1344 = vmatpush1.msra.mxu0 %v1314
  %1345 = vmatprep.subr.mxu0 0.0
  %1346 = vmatpush1.msra.mxu0 %v1313
  %1347 = vmatprep.subr.mxu0 0.0
  %1348 = vmatpush1.msra.mxu0 %v1312
  %1349 = vmatprep.subr.mxu0 0.0
  %1350 = vmatpush1.msra.mxu0 %v1311
  %1351 = vmatprep.subr.mxu0 0.0
  %1352 = vmatpush2.msra.mxu0 0.0
  %1353 = vmatprep.subr.mxu0 0.0
  %1354 = vmatpush2.msra.mxu0 0.0
  %1355 = vmatprep.subr.mxu0 0.0
  %1356 = vmatpush2.msra.mxu0 0.0
  %1357 = vmatprep.subr.mxu0 0.0
  %1358 = vmatpush2.msra.mxu0 0.0
  %1359 = vmatprep.subr.mxu0 0.0
  %1360 = vmatpush2.msra.mxu0 0.0
  %1361 = vmatprep.subr.mxu0 0.0
  %1362 = vmatpush2.msra.mxu0 0.0
  %1363 = vmatprep.subr.mxu0 0.0
  %1364 = vmatpush2.msra.mxu0 0.0
  %1365 = vmatprep.subr.mxu0 0.0
  %1366 = vmatpush2.msra.mxu0 0.0
  %1367 = vmatprep.subr.mxu0 0.0
  %1368 = vmatpush2.msra.mxu0 0.0
  %1369 = vmatprep.subr.mxu0 0.0
  %1370 = vmatpush2.msra.mxu0 0.0
  %1371 = vmatprep.subr.mxu0 0.0
  %1372 = vmatpush2.msra.mxu0 0.0
  %1373 = vmatprep.subr.mxu0 0.0
  %1374 = vmatpush2.msra.mxu0 0.0
  %1375 = vmatprep.subr.mxu0 0.0
  %1376 = vmatpush2.msra.mxu0 0.0
  %1377 = vmatprep.subr.mxu0 0.0
  %1378 = vmatpush2.msra.mxu0 0.0
  %1379 = vmatprep.subr.mxu0 0.0
  %1380 = vmatpush2.msra.mxu0 0.0
  %1381 = vmatprep.subr.mxu0 0.0
  %1382 = vmatpush2.msra.mxu0 0.0
  %1383 = vmatprep.mubr.f32.mxu0 0.0
  %1384 = vmatmul.mubr.f32.gmra.mxu0 %v961
  %v1385 = vpop.f32.mrf.mxu0
  %v1386 = vadd.f32 0.0, %v1385
  %v1387 = vpop.f32.mrf.mxu0
  %1388 = vmatprep.mubr.f32.mxu0 0.0
  %1389 = vmatmul.mubr.f32.gmra.mxu0 %v964
  %v1390 = vpop.f32.mrf.mxu0
  %v1391 = vadd.f32 0.0, %v1390
  %v1392 = vpop.f32.mrf.mxu0
  %1393 = vdwg.mxu0
  %v1395 = vsel %vm1136, %v1300, 0
  %v1398 = vsel %vm1136, %v1301, 0
  %1400 = vmatprep.subr.mxu0 0.0
  %1401 = vmatpush1.msra.mxu0 0.0
  %1402 = vmatprep.subr.mxu0 0.0
  %1403 = vmatpush1.msra.mxu0 0.0
  %1404 = vmatprep.subr.mxu0 0.0
  %1405 = vmatpush1.msra.mxu0 0.0
  %1406 = vmatprep.subr.mxu0 0.0
  %1407 = vmatpush1.msra.mxu0 0.0
  %1408 = vmatprep.subr.mxu0 0.0
  %1409 = vmatpush1.msra.mxu0 0.0
  %1410 = vmatprep.subr.mxu0 0.0
  %1411 = vmatpush1.msra.mxu0 0.0
  %1412 = vmatprep.subr.mxu0 0.0
  %1413 = vmatpush1.msra.mxu0 0.0
  %1414 = vmatprep.subr.mxu0 0.0
  %1415 = vmatpush1.msra.mxu0 0.0
  %1416 = vmatprep.subr.mxu0 0.0
  %1417 = vmatpush1.msra.mxu0 0.0
  %1418 = vmatprep.subr.mxu0 0.0
  %1419 = vmatpush1.msra.mxu0 0.0
  %1420 = vmatprep.subr.mxu0 0.0
  %1421 = vmatpush1.msra.mxu0 0.0
  %1422 = vmatprep.subr.mxu0 0.0
  %1423 = vmatpush1.msra.mxu0 0.0
  %1424 = vmatprep.subr.mxu0 0.0
  %1425 = vmatpush1.msra.mxu0 0.0
  %1426 = vmatprep.subr.mxu0 0.0
  %1427 = vmatpush1.msra.mxu0 0.0
  %1428 = vmatprep.subr.mxu0 0.0
  %1429 = vmatpush1.msra.mxu0 %v1391
  %1430 = vmatprep.subr.mxu0 0.0
  %1431 = vmatpush1.msra.mxu0 %v1386
  %1432 = vmatprep.subr.mxu0 0.0
  %1433 = vmatpush2.msra.mxu0 0.0
  %1434 = vmatprep.subr.mxu0 0.0
  %1435 = vmatpush2.msra.mxu0 0.0
  %1436 = vmatprep.subr.mxu0 0.0
  %1437 = vmatpush2.msra.mxu0 0.0
  %1438 = vmatprep.subr.mxu0 0.0
  %1439 = vmatpush2.msra.mxu0 0.0
  %1440 = vmatprep.subr.mxu0 0.0
  %1441 = vmatpush2.msra.mxu0 0.0
  %1442 = vmatprep.subr.mxu0 0.0
  %1443 = vmatpush2.msra.mxu0 0.0
  %1444 = vmatprep.subr.mxu0 0.0
  %1445 = vmatpush2.msra.mxu0 0.0
  %1446 = vmatprep.subr.mxu0 0.0
  %1447 = vmatpush2.msra.mxu0 0.0
  %1448 = vmatprep.subr.mxu0 0.0
  %1449 = vmatpush2.msra.mxu0 0.0
  %1450 = vmatprep.subr.mxu0 0.0
  %1451 = vmatpush2.msra.mxu0 0.0
  %1452 = vmatprep.subr.mxu0 0.0
  %1453 = vmatpush2.msra.mxu0 0.0
  %1454 = vmatprep.subr.mxu0 0.0
  %1455 = vmatpush2.msra.mxu0 0.0
  %1456 = vmatprep.subr.mxu0 0.0
  %1457 = vmatpush2.msra.mxu0 0.0
  %1458 = vmatprep.subr.mxu0 0.0
  %1459 = vmatpush2.msra.mxu0 0.0
  %1460 = vmatprep.subr.mxu0 0.0
  %1461 = vmatpush2.msra.mxu0 0.0
  %1462 = vmatprep.subr.mxu0 0.0
  %1463 = vmatpush2.msra.mxu0 0.0
  %1464 = vmatprep.mubr.f32.mxu0 0.0
  %1465 = vmatmul.mubr.f32.gmra.mxu0 %v1395
  %v1466 = vpop.f32.mrf.mxu0
  %v1467 = vadd.f32 0.0, %v1466
  %v1468 = vpop.f32.mrf.mxu0
  %1469 = vmatprep.mubr.f32.mxu0 0.0
  %1470 = vmatmul.mubr.f32.gmra.mxu0 %v1398
  %v1471 = vpop.f32.mrf.mxu0
  %v1472 = vadd.f32 0.0, %v1471
  %v1473 = vpop.f32.mrf.mxu0
  %1474 = vdwg.mxu0
  %v1475 = vadd.f32 %v1291, %v1467
  %v1476 = vadd.f32 %v1296, %v1472
  %s1477 = scalar_lea.vmem %s4, 48
  %v1478 = vld [vmem:[%s1477] sm:$0xff]
  %v1479 = vld [vmem:[%s1477 + $0x8] sm:$0xff]
  %s1480 = scalar_lea.vmem %s5, 96
  %v1481 = vld [vmem:[%s1480] sm:$0xf]
  %v1482 = vld [vmem:[%s1480 + $0x4] sm:$0xf]
  %v1483 = vld [vmem:[%s1480 + $0x8] sm:$0xf]
  %v1484 = vld [vmem:[%s1480 + $0xc] sm:$0xf]
  %v1485 = vld [vmem:[%s1480 + $0x10] sm:$0xf]
  %v1486 = vld [vmem:[%s1480 + $0x14] sm:$0xf]
  %v1487 = vld [vmem:[%s1480 + $0x18] sm:$0xf]
  %v1488 = vld [vmem:[%s1480 + $0x1c] sm:$0xf]
  %v1489 = vunpack.c.l.bf16 %v1481
  %v1490 = vunpack.c.l.bf16 %v1482
  %v1491 = vunpack.c.l.bf16 %v1483
  %v1492 = vunpack.c.l.bf16 %v1484
  %v1493 = vunpack.c.l.bf16 %v1485
  %v1494 = vunpack.c.l.bf16 %v1486
  %v1495 = vunpack.c.l.bf16 %v1487
  %v1496 = vunpack.c.l.bf16 %v1488
  %1497 = vmatprep.subr.mxu0 0.0
  %1498 = vmatpush1.msra.mxu0 0.0
  %1499 = vmatprep.subr.mxu0 0.0
  %1500 = vmatpush1.msra.mxu0 0.0
  %1501 = vmatprep.subr.mxu0 0.0
  %1502 = vmatpush1.msra.mxu0 0.0
  %1503 = vmatprep.subr.mxu0 0.0
  %1504 = vmatpush1.msra.mxu0 0.0
  %1505 = vmatprep.subr.mxu0 0.0
  %1506 = vmatpush1.msra.mxu0 0.0
  %1507 = vmatprep.subr.mxu0 0.0
  %1508 = vmatpush1.msra.mxu0 0.0
  %1509 = vmatprep.subr.mxu0 0.0
  %1510 = vmatpush1.msra.mxu0 0.0
  %1511 = vmatprep.subr.mxu0 0.0
  %1512 = vmatpush1.msra.mxu0 0.0
  %1513 = vmatprep.subr.mxu0 0.0
  %1514 = vmatpush1.msra.mxu0 %v1496
  %1515 = vmatprep.subr.mxu0 0.0
  %1516 = vmatpush1.msra.mxu0 %v1495
  %1517 = vmatprep.subr.mxu0 0.0
  %1518 = vmatpush1.msra.mxu0 %v1494
  %1519 = vmatprep.subr.mxu0 0.0
  %1520 = vmatpush1.msra.mxu0 %v1493
  %1521 = vmatprep.subr.mxu0 0.0
  %1522 = vmatpush1.msra.mxu0 %v1492
  %1523 = vmatprep.subr.mxu0 0.0
  %1524 = vmatpush1.msra.mxu0 %v1491
  %1525 = vmatprep.subr.mxu0 0.0
  %1526 = vmatpush1.msra.mxu0 %v1490
  %1527 = vmatprep.subr.mxu0 0.0
  %1528 = vmatpush1.msra.mxu0 %v1489
  %1529 = vmatprep.subr.mxu0 0.0
  %1530 = vmatpush2.msra.mxu0 0.0
  %1531 = vmatprep.subr.mxu0 0.0
  %1532 = vmatpush2.msra.mxu0 0.0
  %1533 = vmatprep.subr.mxu0 0.0
  %1534 = vmatpush2.msra.mxu0 0.0
  %1535 = vmatprep.subr.mxu0 0.0
  %1536 = vmatpush2.msra.mxu0 0.0
  %1537 = vmatprep.subr.mxu0 0.0
  %1538 = vmatpush2.msra.mxu0 0.0
  %1539 = vmatprep.subr.mxu0 0.0
  %1540 = vmatpush2.msra.mxu0 0.0
  %1541 = vmatprep.subr.mxu0 0.0
  %1542 = vmatpush2.msra.mxu0 0.0
  %1543 = vmatprep.subr.mxu0 0.0
  %1544 = vmatpush2.msra.mxu0 0.0
  %1545 = vmatprep.subr.mxu0 0.0
  %1546 = vmatpush2.msra.mxu0 0.0
  %1547 = vmatprep.subr.mxu0 0.0
  %1548 = vmatpush2.msra.mxu0 0.0
  %1549 = vmatprep.subr.mxu0 0.0
  %1550 = vmatpush2.msra.mxu0 0.0
  %1551 = vmatprep.subr.mxu0 0.0
  %1552 = vmatpush2.msra.mxu0 0.0
  %1553 = vmatprep.subr.mxu0 0.0
  %1554 = vmatpush2.msra.mxu0 0.0
  %1555 = vmatprep.subr.mxu0 0.0
  %1556 = vmatpush2.msra.mxu0 0.0
  %1557 = vmatprep.subr.mxu0 0.0
  %1558 = vmatpush2.msra.mxu0 0.0
  %1559 = vmatprep.subr.mxu0 0.0
  %1560 = vmatpush2.msra.mxu0 0.0
  %1561 = vmatprep.mubr.f32.mxu0 0.0
  %1562 = vmatmul.mubr.f32.gmra.mxu0 %v961
  %v1563 = vpop.f32.mrf.mxu0
  %v1564 = vadd.f32 0.0, %v1563
  %v1565 = vpop.f32.mrf.mxu0
  %1566 = vmatprep.mubr.f32.mxu0 0.0
  %1567 = vmatmul.mubr.f32.gmra.mxu0 %v964
  %v1568 = vpop.f32.mrf.mxu0
  %v1569 = vadd.f32 0.0, %v1568
  %v1570 = vpop.f32.mrf.mxu0
  %1571 = vdwg.mxu0
  %v1573 = vsel %vm1136, %v1478, 0
  %v1576 = vsel %vm1136, %v1479, 0
  %1578 = vmatprep.subr.mxu0 0.0
  %1579 = vmatpush1.msra.mxu0 0.0
  %1580 = vmatprep.subr.mxu0 0.0
  %1581 = vmatpush1.msra.mxu0 0.0
  %1582 = vmatprep.subr.mxu0 0.0
  %1583 = vmatpush1.msra.mxu0 0.0
  %1584 = vmatprep.subr.mxu0 0.0
  %1585 = vmatpush1.msra.mxu0 0.0
  %1586 = vmatprep.subr.mxu0 0.0
  %1587 = vmatpush1.msra.mxu0 0.0
  %1588 = vmatprep.subr.mxu0 0.0
  %1589 = vmatpush1.msra.mxu0 0.0
  %1590 = vmatprep.subr.mxu0 0.0
  %1591 = vmatpush1.msra.mxu0 0.0
  %1592 = vmatprep.subr.mxu0 0.0
  %1593 = vmatpush1.msra.mxu0 0.0
  %1594 = vmatprep.subr.mxu0 0.0
  %1595 = vmatpush1.msra.mxu0 0.0
  %1596 = vmatprep.subr.mxu0 0.0
  %1597 = vmatpush1.msra.mxu0 0.0
  %1598 = vmatprep.subr.mxu0 0.0
  %1599 = vmatpush1.msra.mxu0 0.0
  %1600 = vmatprep.subr.mxu0 0.0
  %1601 = vmatpush1.msra.mxu0 0.0
  %1602 = vmatprep.subr.mxu0 0.0
  %1603 = vmatpush1.msra.mxu0 0.0
  %1604 = vmatprep.subr.mxu0 0.0
  %1605 = vmatpush1.msra.mxu0 0.0
  %1606 = vmatprep.subr.mxu0 0.0
  %1607 = vmatpush1.msra.mxu0 %v1569
  %1608 = vmatprep.subr.mxu0 0.0
  %1609 = vmatpush1.msra.mxu0 %v1564
  %1610 = vmatprep.subr.mxu0 0.0
  %1611 = vmatpush2.msra.mxu0 0.0
  %1612 = vmatprep.subr.mxu0 0.0
  %1613 = vmatpush2.msra.mxu0 0.0
  %1614 = vmatprep.subr.mxu0 0.0
  %1615 = vmatpush2.msra.mxu0 0.0
  %1616 = vmatprep.subr.mxu0 0.0
  %1617 = vmatpush2.msra.mxu0 0.0
  %1618 = vmatprep.subr.mxu0 0.0
  %1619 = vmatpush2.msra.mxu0 0.0
  %1620 = vmatprep.subr.mxu0 0.0
  %1621 = vmatpush2.msra.mxu0 0.0
  %1622 = vmatprep.subr.mxu0 0.0
  %1623 = vmatpush2.msra.mxu0 0.0
  %1624 = vmatprep.subr.mxu0 0.0
  %1625 = vmatpush2.msra.mxu0 0.0
  %1626 = vmatprep.subr.mxu0 0.0
  %1627 = vmatpush2.msra.mxu0 0.0
  %1628 = vmatprep.subr.mxu0 0.0
  %1629 = vmatpush2.msra.mxu0 0.0
  %1630 = vmatprep.subr.mxu0 0.0
  %1631 = vmatpush2.msra.mxu0 0.0
  %1632 = vmatprep.subr.mxu0 0.0
  %1633 = vmatpush2.msra.mxu0 0.0
  %1634 = vmatprep.subr.mxu0 0.0
  %1635 = vmatpush2.msra.mxu0 0.0
  %1636 = vmatprep.subr.mxu0 0.0
  %1637 = vmatpush2.msra.mxu0 0.0
  %1638 = vmatprep.subr.mxu0 0.0
  %1639 = vmatpush2.msra.mxu0 0.0
  %1640 = vmatprep.subr.mxu0 0.0
  %1641 = vmatpush2.msra.mxu0 0.0
  %1642 = vmatprep.mubr.f32.mxu0 0.0
  %1643 = vmatmul.mubr.f32.gmra.mxu0 %v1573
  %v1644 = vpop.f32.mrf.mxu0
  %v1645 = vadd.f32 0.0, %v1644
  %v1646 = vpop.f32.mrf.mxu0
  %1647 = vmatprep.mubr.f32.mxu0 0.0
  %1648 = vmatmul.mubr.f32.gmra.mxu0 %v1576
  %v1649 = vpop.f32.mrf.mxu0
  %v1650 = vadd.f32 0.0, %v1649
  %v1651 = vpop.f32.mrf.mxu0
  %1652 = vdwg.mxu0
  %v1653 = vadd.f32 %v1475, %v1645
  %v1654 = vadd.f32 %v1476, %v1650
  %v1655 = vld [vmem:[%s6] sm:$0xff]
  %v1656 = vld [vmem:[%s6 + $0x8] sm:$0xff]
  %1658 = vset.pattern.permute.xlu0 0
  %1659 = vperm.xlu0 %1658, %v1655
  %v1660 = vpop.permute.xlu0 %1659
  %1663 = vset.pattern.permute.xlu0 0
  %1664 = vperm.xlu0 %1663, %v1656
  %v1665 = vpop.permute.xlu0 %1664
  %v1667 = vadd.f32 %v1653, %v1660
  %v1668 = vadd.f32 %v1654, %v1665
  %v1669 = vmax.f32 %v1667, 0.0
  %v1670 = vmax.f32 %v1668, 0.0
  %v1671 = vld [vmem:[%s7] sm:$0xff]
  %v1672 = vld [vmem:[%s7 + $0x8] sm:$0xff]
  %v1673 = vld [vmem:[%s8] sm:$0xf]
  %v1674 = vld [vmem:[%s8 + $0x4] sm:$0xf]
  %v1675 = vunpack.c.l.bf16 %v1673
  %v1676 = vunpack.c.l.bf16 %v1674
  %v1678 = vsel %vm1136, %v1671, 0
  %v1681 = vsel %vm1136, %v1672, 0
  %1683 = vmatprep.subr.mxu0 0.0
  %1684 = vmatpush1.msra.mxu0 0.0
  %1685 = vmatprep.subr.mxu0 0.0
  %1686 = vmatpush1.msra.mxu0 0.0
  %1687 = vmatprep.subr.mxu0 0.0
  %1688 = vmatpush1.msra.mxu0 0.0
  %1689 = vmatprep.subr.mxu0 0.0
  %1690 = vmatpush1.msra.mxu0 0.0
  %1691 = vmatprep.subr.mxu0 0.0
  %1692 = vmatpush1.msra.mxu0 0.0
  %1693 = vmatprep.subr.mxu0 0.0
  %1694 = vmatpush1.msra.mxu0 0.0
  %1695 = vmatprep.subr.mxu0 0.0
  %1696 = vmatpush1.msra.mxu0 0.0
  %1697 = vmatprep.subr.mxu0 0.0
  %1698 = vmatpush1.msra.mxu0 0.0
  %1699 = vmatprep.subr.mxu0 0.0
  %1700 = vmatpush1.msra.mxu0 0.0
  %1701 = vmatprep.subr.mxu0 0.0
  %1702 = vmatpush1.msra.mxu0 0.0
  %1703 = vmatprep.subr.mxu0 0.0
  %1704 = vmatpush1.msra.mxu0 0.0
  %1705 = vmatprep.subr.mxu0 0.0
  %1706 = vmatpush1.msra.mxu0 0.0
  %1707 = vmatprep.subr.mxu0 0.0
  %1708 = vmatpush1.msra.mxu0 0.0
  %1709 = vmatprep.subr.mxu0 0.0
  %1710 = vmatpush1.msra.mxu0 0.0
  %1711 = vmatprep.subr.mxu0 0.0
  %1712 = vmatpush1.msra.mxu0 %v1670
  %1713 = vmatprep.subr.mxu0 0.0
  %1714 = vmatpush1.msra.mxu0 %v1669
  %1715 = vmatprep.subr.mxu0 0.0
  %1716 = vmatpush2.msra.mxu0 0.0
  %1717 = vmatprep.subr.mxu0 0.0
  %1718 = vmatpush2.msra.mxu0 0.0
  %1719 = vmatprep.subr.mxu0 0.0
  %1720 = vmatpush2.msra.mxu0 0.0
  %1721 = vmatprep.subr.mxu0 0.0
  %1722 = vmatpush2.msra.mxu0 0.0
  %1723 = vmatprep.subr.mxu0 0.0
  %1724 = vmatpush2.msra.mxu0 0.0
  %1725 = vmatprep.subr.mxu0 0.0
  %1726 = vmatpush2.msra.mxu0 0.0
  %1727 = vmatprep.subr.mxu0 0.0
  %1728 = vmatpush2.msra.mxu0 0.0
  %1729 = vmatprep.subr.mxu0 0.0
  %1730 = vmatpush2.msra.mxu0 0.0
  %1731 = vmatprep.subr.mxu0 0.0
  %1732 = vmatpush2.msra.mxu0 0.0
  %1733 = vmatprep.subr.mxu0 0.0
  %1734 = vmatpush2.msra.mxu0 0.0
  %1735 = vmatprep.subr.mxu0 0.0
  %1736 = vmatpush2.msra.mxu0 0.0
  %1737 = vmatprep.subr.mxu0 0.0
  %1738 = vmatpush2.msra.mxu0 0.0
  %1739 = vmatprep.subr.mxu0 0.0
  %1740 = vmatpush2.msra.mxu0 0.0
  %1741 = vmatprep.subr.mxu0 0.0
  %1742 = vmatpush2.msra.mxu0 0.0
  %1743 = vmatprep.subr.mxu0 0.0
  %1744 = vmatpush2.msra.mxu0 0.0
  %1745 = vmatprep.subr.mxu0 0.0
  %1746 = vmatpush2.msra.mxu0 0.0
  %1747 = vmatprep.mubr.f32.mxu0 0.0
  %1748 = vmatmul.mubr.f32.gmra.mxu0 %v1678
  %v1749 = vpop.f32.mrf.mxu0
  %v1750 = vadd.f32 0.0, %v1749
  %v1751 = vpop.f32.mrf.mxu0
  %1752 = vmatprep.mubr.f32.mxu0 0.0
  %1753 = vmatmul.mubr.f32.gmra.mxu0 %v1681
  %v1754 = vpop.f32.mrf.mxu0
  %v1755 = vadd.f32 0.0, %v1754
  %v1756 = vpop.f32.mrf.mxu0
  %1757 = vdwg.mxu0
  %s1758 = scalar_lea.vmem %s7, 16
  %v1759 = vld [vmem:[%s1758] sm:$0xff]
  %v1760 = vld [vmem:[%s1758 + $0x8] sm:$0xff]
  %s1761 = scalar_lea.vmem %s8, 8
  %v1762 = vld [vmem:[%s1761] sm:$0xf]
  %v1763 = vld [vmem:[%s1761 + $0x4] sm:$0xf]
  %v1764 = vunpack.c.l.bf16 %v1762
  %v1765 = vunpack.c.l.bf16 %v1763
  %v1767 = vsel %vm1136, %v1759, 0
  %v1770 = vsel %vm1136, %v1760, 0
  %1772 = vmatprep.subr.mxu0 0.0
  %1773 = vmatpush1.msra.mxu0 0.0
  %1774 = vmatprep.subr.mxu0 0.0
  %1775 = vmatpush1.msra.mxu0 0.0
  %1776 = vmatprep.subr.mxu0 0.0
  %1777 = vmatpush1.msra.mxu0 0.0
  %1778 = vmatprep.subr.mxu0 0.0
  %1779 = vmatpush1.msra.mxu0 0.0
  %1780 = vmatprep.subr.mxu0 0.0
  %1781 = vmatpush1.msra.mxu0 0.0
  %1782 = vmatprep.subr.mxu0 0.0
  %1783 = vmatpush1.msra.mxu0 0.0
  %1784 = vmatprep.subr.mxu0 0.0
  %1785 = vmatpush1.msra.mxu0 0.0
  %1786 = vmatprep.subr.mxu0 0.0
  %1787 = vmatpush1.msra.mxu0 0.0
  %1788 = vmatprep.subr.mxu0 0.0
  %1789 = vmatpush1.msra.mxu0 0.0
  %1790 = vmatprep.subr.mxu0 0.0
  %1791 = vmatpush1.msra.mxu0 0.0
  %1792 = vmatprep.subr.mxu0 0.0
  %1793 = vmatpush1.msra.mxu0 0.0
  %1794 = vmatprep.subr.mxu0 0.0
  %1795 = vmatpush1.msra.mxu0 0.0
  %1796 = vmatprep.subr.mxu0 0.0
  %1797 = vmatpush1.msra.mxu0 0.0
  %1798 = vmatprep.subr.mxu0 0.0
  %1799 = vmatpush1.msra.mxu0 0.0
  %1800 = vmatprep.subr.mxu0 0.0
  %1801 = vmatpush1.msra.mxu0 %v1670
  %1802 = vmatprep.subr.mxu0 0.0
  %1803 = vmatpush1.msra.mxu0 %v1669
  %1804 = vmatprep.subr.mxu0 0.0
  %1805 = vmatpush2.msra.mxu0 0.0
  %1806 = vmatprep.subr.mxu0 0.0
  %1807 = vmatpush2.msra.mxu0 0.0
  %1808 = vmatprep.subr.mxu0 0.0
  %1809 = vmatpush2.msra.mxu0 0.0
  %1810 = vmatprep.subr.mxu0 0.0
  %1811 = vmatpush2.msra.mxu0 0.0
  %1812 = vmatprep.subr.mxu0 0.0
  %1813 = vmatpush2.msra.mxu0 0.0
  %1814 = vmatprep.subr.mxu0 0.0
  %1815 = vmatpush2.msra.mxu0 0.0
  %1816 = vmatprep.subr.mxu0 0.0
  %1817 = vmatpush2.msra.mxu0 0.0
  %1818 = vmatprep.subr.mxu0 0.0
  %1819 = vmatpush2.msra.mxu0 0.0
  %1820 = vmatprep.subr.mxu0 0.0
  %1821 = vmatpush2.msra.mxu0 0.0
  %1822 = vmatprep.subr.mxu0 0.0
  %1823 = vmatpush2.msra.mxu0 0.0
  %1824 = vmatprep.subr.mxu0 0.0
  %1825 = vmatpush2.msra.mxu0 0.0
  %1826 = vmatprep.subr.mxu0 0.0
  %1827 = vmatpush2.msra.mxu0 0.0
  %1828 = vmatprep.subr.mxu0 0.0
  %1829 = vmatpush2.msra.mxu0 0.0
  %1830 = vmatprep.subr.mxu0 0.0
  %1831 = vmatpush2.msra.mxu0 0.0
  %1832 = vmatprep.subr.mxu0 0.0
  %1833 = vmatpush2.msra.mxu0 0.0
  %1834 = vmatprep.subr.mxu0 0.0
  %1835 = vmatpush2.msra.mxu0 0.0
  %1836 = vmatprep.mubr.f32.mxu0 0.0
  %1837 = vmatmul.mubr.f32.gmra.mxu0 %v1767
  %v1838 = vpop.f32.mrf.mxu0
  %v1839 = vadd.f32 0.0, %v1838
  %v1840 = vpop.f32.mrf.mxu0
  %1841 = vmatprep.mubr.f32.mxu0 0.0
  %1842 = vmatmul.mubr.f32.gmra.mxu0 %v1770
  %v1843 = vpop.f32.mrf.mxu0
  %v1844 = vadd.f32 0.0, %v1843
  %v1845 = vpop.f32.mrf.mxu0
  %1846 = vdwg.mxu0
  %v1848 = vsel %vm1136, %v1839, 0
  %v1851 = vsel %vm1136, %v1844, 0
  %1853 = vmatprep.subr.mxu0 0.0
  %1854 = vmatpush1.msra.mxu0 0.0
  %1855 = vmatprep.subr.mxu0 0.0
  %1856 = vmatpush1.msra.mxu0 0.0
  %1857 = vmatprep.subr.mxu0 0.0
  %1858 = vmatpush1.msra.mxu0 0.0
  %1859 = vmatprep.subr.mxu0 0.0
  %1860 = vmatpush1.msra.mxu0 0.0
  %1861 = vmatprep.subr.mxu0 0.0
  %1862 = vmatpush1.msra.mxu0 0.0
  %1863 = vmatprep.subr.mxu0 0.0
  %1864 = vmatpush1.msra.mxu0 0.0
  %1865 = vmatprep.subr.mxu0 0.0
  %1866 = vmatpush1.msra.mxu0 0.0
  %1867 = vmatprep.subr.mxu0 0.0
  %1868 = vmatpush1.msra.mxu0 0.0
  %1869 = vmatprep.subr.mxu0 0.0
  %1870 = vmatpush1.msra.mxu0 0.0
  %1871 = vmatprep.subr.mxu0 0.0
  %1872 = vmatpush1.msra.mxu0 0.0
  %1873 = vmatprep.subr.mxu0 0.0
  %1874 = vmatpush1.msra.mxu0 0.0
  %1875 = vmatprep.subr.mxu0 0.0
  %1876 = vmatpush1.msra.mxu0 0.0
  %1877 = vmatprep.subr.mxu0 0.0
  %1878 = vmatpush1.msra.mxu0 0.0
  %1879 = vmatprep.subr.mxu0 0.0
  %1880 = vmatpush1.msra.mxu0 0.0
  %1881 = vmatprep.subr.mxu0 0.0
  %1882 = vmatpush1.msra.mxu0 %v1765
  %1883 = vmatprep.subr.mxu0 0.0
  %1884 = vmatpush1.msra.mxu0 %v1764
  %1885 = vmatprep.subr.mxu0 0.0
  %1886 = vmatpush2.msra.mxu0 0.0
  %1887 = vmatprep.subr.mxu0 0.0
  %1888 = vmatpush2.msra.mxu0 0.0
  %1889 = vmatprep.subr.mxu0 0.0
  %1890 = vmatpush2.msra.mxu0 0.0
  %1891 = vmatprep.subr.mxu0 0.0
  %1892 = vmatpush2.msra.mxu0 0.0
  %1893 = vmatprep.subr.mxu0 0.0
  %1894 = vmatpush2.msra.mxu0 0.0
  %1895 = vmatprep.subr.mxu0 0.0
  %1896 = vmatpush2.msra.mxu0 0.0
  %1897 = vmatprep.subr.mxu0 0.0
  %1898 = vmatpush2.msra.mxu0 0.0
  %1899 = vmatprep.subr.mxu0 0.0
  %1900 = vmatpush2.msra.mxu0 0.0
  %1901 = vmatprep.subr.mxu0 0.0
  %1902 = vmatpush2.msra.mxu0 0.0
  %1903 = vmatprep.subr.mxu0 0.0
  %1904 = vmatpush2.msra.mxu0 0.0
  %1905 = vmatprep.subr.mxu0 0.0
  %1906 = vmatpush2.msra.mxu0 0.0
  %1907 = vmatprep.subr.mxu0 0.0
  %1908 = vmatpush2.msra.mxu0 0.0
  %1909 = vmatprep.subr.mxu0 0.0
  %1910 = vmatpush2.msra.mxu0 0.0
  %1911 = vmatprep.subr.mxu0 0.0
  %1912 = vmatpush2.msra.mxu0 0.0
  %1913 = vmatprep.subr.mxu0 0.0
  %1914 = vmatpush2.msra.mxu0 0.0
  %1915 = vmatprep.subr.mxu0 0.0
  %1916 = vmatpush2.msra.mxu0 0.0
  %1917 = vmatprep.mubr.f32.mxu0 0.0
  %1918 = vmatmul.mubr.f32.gmra.mxu0 %v1848
  %v1919 = vpop.f32.mrf.mxu0
  %v1920 = vadd.f32 0.0, %v1919
  %v1921 = vpop.f32.mrf.mxu0
  %1922 = vmatprep.mubr.f32.mxu0 0.0
  %1923 = vmatmul.mubr.f32.gmra.mxu0 %v1851
  %v1924 = vpop.f32.mrf.mxu0
  %v1925 = vadd.f32 0.0, %v1924
  %v1926 = vpop.f32.mrf.mxu0
  %1927 = vdwg.mxu0
  %v1929 = vsel %vm1136, %v1750, 0
  %v1932 = vsel %vm1136, %v1755, 0
  %1934 = vmatprep.subr.mxu0 0.0
  %1935 = vmatpush1.msra.mxu0 0.0
  %1936 = vmatprep.subr.mxu0 0.0
  %1937 = vmatpush1.msra.mxu0 0.0
  %1938 = vmatprep.subr.mxu0 0.0
  %1939 = vmatpush1.msra.mxu0 0.0
  %1940 = vmatprep.subr.mxu0 0.0
  %1941 = vmatpush1.msra.mxu0 0.0
  %1942 = vmatprep.subr.mxu0 0.0
  %1943 = vmatpush1.msra.mxu0 0.0
  %1944 = vmatprep.subr.mxu0 0.0
  %1945 = vmatpush1.msra.mxu0 0.0
  %1946 = vmatprep.subr.mxu0 0.0
  %1947 = vmatpush1.msra.mxu0 0.0
  %1948 = vmatprep.subr.mxu0 0.0
  %1949 = vmatpush1.msra.mxu0 0.0
  %1950 = vmatprep.subr.mxu0 0.0
  %1951 = vmatpush1.msra.mxu0 0.0
  %1952 = vmatprep.subr.mxu0 0.0
  %1953 = vmatpush1.msra.mxu0 0.0
  %1954 = vmatprep.subr.mxu0 0.0
  %1955 = vmatpush1.msra.mxu0 0.0
  %1956 = vmatprep.subr.mxu0 0.0
  %1957 = vmatpush1.msra.mxu0 0.0
  %1958 = vmatprep.subr.mxu0 0.0
  %1959 = vmatpush1.msra.mxu0 0.0
  %1960 = vmatprep.subr.mxu0 0.0
  %1961 = vmatpush1.msra.mxu0 0.0
  %1962 = vmatprep.subr.mxu0 0.0
  %1963 = vmatpush1.msra.mxu0 %v1676
  %1964 = vmatprep.subr.mxu0 0.0
  %1965 = vmatpush1.msra.mxu0 %v1675
  %1966 = vmatprep.subr.mxu0 0.0
  %1967 = vmatpush2.msra.mxu0 0.0
  %1968 = vmatprep.subr.mxu0 0.0
  %1969 = vmatpush2.msra.mxu0 0.0
  %1970 = vmatprep.subr.mxu0 0.0
  %1971 = vmatpush2.msra.mxu0 0.0
  %1972 = vmatprep.subr.mxu0 0.0
  %1973 = vmatpush2.msra.mxu0 0.0
  %1974 = vmatprep.subr.mxu0 0.0
  %1975 = vmatpush2.msra.mxu0 0.0
  %1976 = vmatprep.subr.mxu0 0.0
  %1977 = vmatpush2.msra.mxu0 0.0
  %1978 = vmatprep.subr.mxu0 0.0
  %1979 = vmatpush2.msra.mxu0 0.0
  %1980 = vmatprep.subr.mxu0 0.0
  %1981 = vmatpush2.msra.mxu0 0.0
  %1982 = vmatprep.subr.mxu0 0.0
  %1983 = vmatpush2.msra.mxu0 0.0
  %1984 = vmatprep.subr.mxu0 0.0
  %1985 = vmatpush2.msra.mxu0 0.0
  %1986 = vmatprep.subr.mxu0 0.0
  %1987 = vmatpush2.msra.mxu0 0.0
  %1988 = vmatprep.subr.mxu0 0.0
  %1989 = vmatpush2.msra.mxu0 0.0
  %1990 = vmatprep.subr.mxu0 0.0
  %1991 = vmatpush2.msra.mxu0 0.0
  %1992 = vmatprep.subr.mxu0 0.0
  %1993 = vmatpush2.msra.mxu0 0.0
  %1994 = vmatprep.subr.mxu0 0.0
  %1995 = vmatpush2.msra.mxu0 0.0
  %1996 = vmatprep.subr.mxu0 0.0
  %1997 = vmatpush2.msra.mxu0 0.0
  %1998 = vmatprep.mubr.f32.mxu0 0.0
  %1999 = vmatmul.mubr.f32.gmra.mxu0 %v1929
  %v2000 = vpop.f32.mrf.mxu0
  %v2001 = vadd.f32 %v1920, %v2000
  %v2002 = vpop.f32.mrf.mxu0
  %2003 = vmatprep.mubr.f32.mxu0 0.0
  %2004 = vmatmul.mubr.f32.gmra.mxu0 %v1932
  %v2005 = vpop.f32.mrf.mxu0
  %v2006 = vadd.f32 %v1925, %v2005
  %v2007 = vpop.f32.mrf.mxu0
  %2008 = vdwg.mxu0
  %s2009 = scalar_lea.vmem %s7, 32
  %v2010 = vld [vmem:[%s2009] sm:$0xff]
  %v2011 = vld [vmem:[%s2009 + $0x8] sm:$0xff]
  %s2012 = scalar_lea.vmem %s8, 16
  %v2013 = vld [vmem:[%s2012] sm:$0xf]
  %v2014 = vld [vmem:[%s2012 + $0x4] sm:$0xf]
  %v2015 = vunpack.c.l.bf16 %v2013
  %v2016 = vunpack.c.l.bf16 %v2014
  %v2018 = vsel %vm1136, %v2010, 0
  %v2021 = vsel %vm1136, %v2011, 0
  %2023 = vmatprep.subr.mxu0 0.0
  %2024 = vmatpush1.msra.mxu0 0.0
  %2025 = vmatprep.subr.mxu0 0.0
  %2026 = vmatpush1.msra.mxu0 0.0
  %2027 = vmatprep.subr.mxu0 0.0
  %2028 = vmatpush1.msra.mxu0 0.0
  %2029 = vmatprep.subr.mxu0 0.0
  %2030 = vmatpush1.msra.mxu0 0.0
  %2031 = vmatprep.subr.mxu0 0.0
  %2032 = vmatpush1.msra.mxu0 0.0
  %2033 = vmatprep.subr.mxu0 0.0
  %2034 = vmatpush1.msra.mxu0 0.0
  %2035 = vmatprep.subr.mxu0 0.0
  %2036 = vmatpush1.msra.mxu0 0.0
  %2037 = vmatprep.subr.mxu0 0.0
  %2038 = vmatpush1.msra.mxu0 0.0
  %2039 = vmatprep.subr.mxu0 0.0
  %2040 = vmatpush1.msra.mxu0 0.0
  %2041 = vmatprep.subr.mxu0 0.0
  %2042 = vmatpush1.msra.mxu0 0.0
  %2043 = vmatprep.subr.mxu0 0.0
  %2044 = vmatpush1.msra.mxu0 0.0
  %2045 = vmatprep.subr.mxu0 0.0
  %2046 = vmatpush1.msra.mxu0 0.0
  %2047 = vmatprep.subr.mxu0 0.0
  %2048 = vmatpush1.msra.mxu0 0.0
  %2049 = vmatprep.subr.mxu0 0.0
  %2050 = vmatpush1.msra.mxu0 0.0
  %2051 = vmatprep.subr.mxu0 0.0
  %2052 = vmatpush1.msra.mxu0 %v1670
  %2053 = vmatprep.subr.mxu0 0.0
  %2054 = vmatpush1.msra.mxu0 %v1669
  %2055 = vmatprep.subr.mxu0 0.0
  %2056 = vmatpush2.msra.mxu0 0.0
  %2057 = vmatprep.subr.mxu0 0.0
  %2058 = vmatpush2.msra.mxu0 0.0
  %2059 = vmatprep.subr.mxu0 0.0
  %2060 = vmatpush2.msra.mxu0 0.0
  %2061 = vmatprep.subr.mxu0 0.0
  %2062 = vmatpush2.msra.mxu0 0.0
  %2063 = vmatprep.subr.mxu0 0.0
  %2064 = vmatpush2.msra.mxu0 0.0
  %2065 = vmatprep.subr.mxu0 0.0
  %2066 = vmatpush2.msra.mxu0 0.0
  %2067 = vmatprep.subr.mxu0 0.0
  %2068 = vmatpush2.msra.mxu0 0.0
  %2069 = vmatprep.subr.mxu0 0.0
  %2070 = vmatpush2.msra.mxu0 0.0
  %2071 = vmatprep.subr.mxu0 0.0
  %2072 = vmatpush2.msra.mxu0 0.0
  %2073 = vmatprep.subr.mxu0 0.0
  %2074 = vmatpush2.msra.mxu0 0.0
  %2075 = vmatprep.subr.mxu0 0.0
  %2076 = vmatpush2.msra.mxu0 0.0
  %2077 = vmatprep.subr.mxu0 0.0
  %2078 = vmatpush2.msra.mxu0 0.0
  %2079 = vmatprep.subr.mxu0 0.0
  %2080 = vmatpush2.msra.mxu0 0.0
  %2081 = vmatprep.subr.mxu0 0.0
  %2082 = vmatpush2.msra.mxu0 0.0
  %2083 = vmatprep.subr.mxu0 0.0
  %2084 = vmatpush2.msra.mxu0 0.0
  %2085 = vmatprep.subr.mxu0 0.0
  %2086 = vmatpush2.msra.mxu0 0.0
  %2087 = vmatprep.mubr.f32.mxu0 0.0
  %2088 = vmatmul.mubr.f32.gmra.mxu0 %v2018
  %v2089 = vpop.f32.mrf.mxu0
  %v2090 = vadd.f32 0.0, %v2089
  %v2091 = vpop.f32.mrf.mxu0
  %2092 = vmatprep.mubr.f32.mxu0 0.0
  %2093 = vmatmul.mubr.f32.gmra.mxu0 %v2021
  %v2094 = vpop.f32.mrf.mxu0
  %v2095 = vadd.f32 0.0, %v2094
  %v2096 = vpop.f32.mrf.mxu0
  %2097 = vdwg.mxu0
  %v2099 = vsel %vm1136, %v2090, 0
  %v2102 = vsel %vm1136, %v2095, 0
  %2104 = vmatprep.subr.mxu0 0.0
  %2105 = vmatpush1.msra.mxu0 0.0
  %2106 = vmatprep.subr.mxu0 0.0
  %2107 = vmatpush1.msra.mxu0 0.0
  %2108 = vmatprep.subr.mxu0 0.0
  %2109 = vmatpush1.msra.mxu0 0.0
  %2110 = vmatprep.subr.mxu0 0.0
  %2111 = vmatpush1.msra.mxu0 0.0
  %2112 = vmatprep.subr.mxu0 0.0
  %2113 = vmatpush1.msra.mxu0 0.0
  %2114 = vmatprep.subr.mxu0 0.0
  %2115 = vmatpush1.msra.mxu0 0.0
  %2116 = vmatprep.subr.mxu0 0.0
  %2117 = vmatpush1.msra.mxu0 0.0
  %2118 = vmatprep.subr.mxu0 0.0
  %2119 = vmatpush1.msra.mxu0 0.0
  %2120 = vmatprep.subr.mxu0 0.0
  %2121 = vmatpush1.msra.mxu0 0.0
  %2122 = vmatprep.subr.mxu0 0.0
  %2123 = vmatpush1.msra.mxu0 0.0
  %2124 = vmatprep.subr.mxu0 0.0
  %2125 = vmatpush1.msra.mxu0 0.0
  %2126 = vmatprep.subr.mxu0 0.0
  %2127 = vmatpush1.msra.mxu0 0.0
  %2128 = vmatprep.subr.mxu0 0.0
  %2129 = vmatpush1.msra.mxu0 0.0
  %2130 = vmatprep.subr.mxu0 0.0
  %2131 = vmatpush1.msra.mxu0 0.0
  %2132 = vmatprep.subr.mxu0 0.0
  %2133 = vmatpush1.msra.mxu0 %v2016
  %2134 = vmatprep.subr.mxu0 0.0
  %2135 = vmatpush1.msra.mxu0 %v2015
  %2136 = vmatprep.subr.mxu0 0.0
  %2137 = vmatpush2.msra.mxu0 0.0
  %2138 = vmatprep.subr.mxu0 0.0
  %2139 = vmatpush2.msra.mxu0 0.0
  %2140 = vmatprep.subr.mxu0 0.0
  %2141 = vmatpush2.msra.mxu0 0.0
  %2142 = vmatprep.subr.mxu0 0.0
  %2143 = vmatpush2.msra.mxu0 0.0
  %2144 = vmatprep.subr.mxu0 0.0
  %2145 = vmatpush2.msra.mxu0 0.0
  %2146 = vmatprep.subr.mxu0 0.0
  %2147 = vmatpush2.msra.mxu0 0.0
  %2148 = vmatprep.subr.mxu0 0.0
  %2149 = vmatpush2.msra.mxu0 0.0
  %2150 = vmatprep.subr.mxu0 0.0
  %2151 = vmatpush2.msra.mxu0 0.0
  %2152 = vmatprep.subr.mxu0 0.0
  %2153 = vmatpush2.msra.mxu0 0.0
  %2154 = vmatprep.subr.mxu0 0.0
  %2155 = vmatpush2.msra.mxu0 0.0
  %2156 = vmatprep.subr.mxu0 0.0
  %2157 = vmatpush2.msra.mxu0 0.0
  %2158 = vmatprep.subr.mxu0 0.0
  %2159 = vmatpush2.msra.mxu0 0.0
  %2160 = vmatprep.subr.mxu0 0.0
  %2161 = vmatpush2.msra.mxu0 0.0
  %2162 = vmatprep.subr.mxu0 0.0
  %2163 = vmatpush2.msra.mxu0 0.0
  %2164 = vmatprep.subr.mxu0 0.0
  %2165 = vmatpush2.msra.mxu0 0.0
  %2166 = vmatprep.subr.mxu0 0.0
  %2167 = vmatpush2.msra.mxu0 0.0
  %2168 = vmatprep.mubr.f32.mxu0 0.0
  %2169 = vmatmul.mubr.f32.gmra.mxu0 %v2099
  %v2170 = vpop.f32.mrf.mxu0
  %v2171 = vadd.f32 0.0, %v2170
  %v2172 = vpop.f32.mrf.mxu0
  %2173 = vmatprep.mubr.f32.mxu0 0.0
  %2174 = vmatmul.mubr.f32.gmra.mxu0 %v2102
  %v2175 = vpop.f32.mrf.mxu0
  %v2176 = vadd.f32 0.0, %v2175
  %v2177 = vpop.f32.mrf.mxu0
  %2178 = vdwg.mxu0
  %v2179 = vadd.f32 %v2001, %v2171
  %v2180 = vadd.f32 %v2006, %v2176
  %s2181 = scalar_lea.vmem %s7, 48
  %v2182 = vld [vmem:[%s2181] sm:$0xff]
  %v2183 = vld [vmem:[%s2181 + $0x8] sm:$0xff]
  %s2184 = scalar_lea.vmem %s8, 24
  %v2185 = vld [vmem:[%s2184] sm:$0xf]
  %v2186 = vld [vmem:[%s2184 + $0x4] sm:$0xf]
  %v2187 = vunpack.c.l.bf16 %v2185
  %v2188 = vunpack.c.l.bf16 %v2186
  %v2190 = vsel %vm1136, %v2182, 0
  %v2193 = vsel %vm1136, %v2183, 0
  %2195 = vmatprep.subr.mxu0 0.0
  %2196 = vmatpush1.msra.mxu0 0.0
  %2197 = vmatprep.subr.mxu0 0.0
  %2198 = vmatpush1.msra.mxu0 0.0
  %2199 = vmatprep.subr.mxu0 0.0
  %2200 = vmatpush1.msra.mxu0 0.0
  %2201 = vmatprep.subr.mxu0 0.0
  %2202 = vmatpush1.msra.mxu0 0.0
  %2203 = vmatprep.subr.mxu0 0.0
  %2204 = vmatpush1.msra.mxu0 0.0
  %2205 = vmatprep.subr.mxu0 0.0
  %2206 = vmatpush1.msra.mxu0 0.0
  %2207 = vmatprep.subr.mxu0 0.0
  %2208 = vmatpush1.msra.mxu0 0.0
  %2209 = vmatprep.subr.mxu0 0.0
  %2210 = vmatpush1.msra.mxu0 0.0
  %2211 = vmatprep.subr.mxu0 0.0
  %2212 = vmatpush1.msra.mxu0 0.0
  %2213 = vmatprep.subr.mxu0 0.0
  %2214 = vmatpush1.msra.mxu0 0.0
  %2215 = vmatprep.subr.mxu0 0.0
  %2216 = vmatpush1.msra.mxu0 0.0
  %2217 = vmatprep.subr.mxu0 0.0
  %2218 = vmatpush1.msra.mxu0 0.0
  %2219 = vmatprep.subr.mxu0 0.0
  %2220 = vmatpush1.msra.mxu0 0.0
  %2221 = vmatprep.subr.mxu0 0.0
  %2222 = vmatpush1.msra.mxu0 0.0
  %2223 = vmatprep.subr.mxu0 0.0
  %2224 = vmatpush1.msra.mxu0 %v1670
  %2225 = vmatprep.subr.mxu0 0.0
  %2226 = vmatpush1.msra.mxu0 %v1669
  %2227 = vmatprep.subr.mxu0 0.0
  %2228 = vmatpush2.msra.mxu0 0.0
  %2229 = vmatprep.subr.mxu0 0.0
  %2230 = vmatpush2.msra.mxu0 0.0
  %2231 = vmatprep.subr.mxu0 0.0
  %2232 = vmatpush2.msra.mxu0 0.0
  %2233 = vmatprep.subr.mxu0 0.0
  %2234 = vmatpush2.msra.mxu0 0.0
  %2235 = vmatprep.subr.mxu0 0.0
  %2236 = vmatpush2.msra.mxu0 0.0
  %2237 = vmatprep.subr.mxu0 0.0
  %2238 = vmatpush2.msra.mxu0 0.0
  %2239 = vmatprep.subr.mxu0 0.0
  %2240 = vmatpush2.msra.mxu0 0.0
  %2241 = vmatprep.subr.mxu0 0.0
  %2242 = vmatpush2.msra.mxu0 0.0
  %2243 = vmatprep.subr.mxu0 0.0
  %2244 = vmatpush2.msra.mxu0 0.0
  %2245 = vmatprep.subr.mxu0 0.0
  %2246 = vmatpush2.msra.mxu0 0.0
  %2247 = vmatprep.subr.mxu0 0.0
  %2248 = vmatpush2.msra.mxu0 0.0
  %2249 = vmatprep.subr.mxu0 0.0
  %2250 = vmatpush2.msra.mxu0 0.0
  %2251 = vmatprep.subr.mxu0 0.0
  %2252 = vmatpush2.msra.mxu0 0.0
  %2253 = vmatprep.subr.mxu0 0.0
  %2254 = vmatpush2.msra.mxu0 0.0
  %2255 = vmatprep.subr.mxu0 0.0
  %2256 = vmatpush2.msra.mxu0 0.0
  %2257 = vmatprep.subr.mxu0 0.0
  %2258 = vmatpush2.msra.mxu0 0.0
  %2259 = vmatprep.mubr.f32.mxu0 0.0
  %2260 = vmatmul.mubr.f32.gmra.mxu0 %v2190
  %v2261 = vpop.f32.mrf.mxu0
  %v2262 = vadd.f32 0.0, %v2261
  %v2263 = vpop.f32.mrf.mxu0
  %2264 = vmatprep.mubr.f32.mxu0 0.0
  %2265 = vmatmul.mubr.f32.gmra.mxu0 %v2193
  %v2266 = vpop.f32.mrf.mxu0
  %v2267 = vadd.f32 0.0, %v2266
  %v2268 = vpop.f32.mrf.mxu0
  %2269 = vdwg.mxu0
  %v2271 = vsel %vm1136, %v2262, 0
  %v2274 = vsel %vm1136, %v2267, 0
  %2276 = vmatprep.subr.mxu0 0.0
  %2277 = vmatpush1.msra.mxu0 0.0
  %2278 = vmatprep.subr.mxu0 0.0
  %2279 = vmatpush1.msra.mxu0 0.0
  %2280 = vmatprep.subr.mxu0 0.0
  %2281 = vmatpush1.msra.mxu0 0.0
  %2282 = vmatprep.subr.mxu0 0.0
  %2283 = vmatpush1.msra.mxu0 0.0
  %2284 = vmatprep.subr.mxu0 0.0
  %2285 = vmatpush1.msra.mxu0 0.0
  %2286 = vmatprep.subr.mxu0 0.0
  %2287 = vmatpush1.msra.mxu0 0.0
  %2288 = vmatprep.subr.mxu0 0.0
  %2289 = vmatpush1.msra.mxu0 0.0
  %2290 = vmatprep.subr.mxu0 0.0
  %2291 = vmatpush1.msra.mxu0 0.0
  %2292 = vmatprep.subr.mxu0 0.0
  %2293 = vmatpush1.msra.mxu0 0.0
  %2294 = vmatprep.subr.mxu0 0.0
  %2295 = vmatpush1.msra.mxu0 0.0
  %2296 = vmatprep.subr.mxu0 0.0
  %2297 = vmatpush1.msra.mxu0 0.0
  %2298 = vmatprep.subr.mxu0 0.0
  %2299 = vmatpush1.msra.mxu0 0.0
  %2300 = vmatprep.subr.mxu0 0.0
  %2301 = vmatpush1.msra.mxu0 0.0
  %2302 = vmatprep.subr.mxu0 0.0
  %2303 = vmatpush1.msra.mxu0 0.0
  %2304 = vmatprep.subr.mxu0 0.0
  %2305 = vmatpush1.msra.mxu0 %v2188
  %2306 = vmatprep.subr.mxu0 0.0
  %2307 = vmatpush1.msra.mxu0 %v2187
  %2308 = vmatprep.subr.mxu0 0.0
  %2309 = vmatpush2.msra.mxu0 0.0
  %2310 = vmatprep.subr.mxu0 0.0
  %2311 = vmatpush2.msra.mxu0 0.0
  %2312 = vmatprep.subr.mxu0 0.0
  %2313 = vmatpush2.msra.mxu0 0.0
  %2314 = vmatprep.subr.mxu0 0.0
  %2315 = vmatpush2.msra.mxu0 0.0
  %2316 = vmatprep.subr.mxu0 0.0
  %2317 = vmatpush2.msra.mxu0 0.0
  %2318 = vmatprep.subr.mxu0 0.0
  %2319 = vmatpush2.msra.mxu0 0.0
  %2320 = vmatprep.subr.mxu0 0.0
  %2321 = vmatpush2.msra.mxu0 0.0
  %2322 = vmatprep.subr.mxu0 0.0
  %2323 = vmatpush2.msra.mxu0 0.0
  %2324 = vmatprep.subr.mxu0 0.0
  %2325 = vmatpush2.msra.mxu0 0.0
  %2326 = vmatprep.subr.mxu0 0.0
  %2327 = vmatpush2.msra.mxu0 0.0
  %2328 = vmatprep.subr.mxu0 0.0
  %2329 = vmatpush2.msra.mxu0 0.0
  %2330 = vmatprep.subr.mxu0 0.0
  %2331 = vmatpush2.msra.mxu0 0.0
  %2332 = vmatprep.subr.mxu0 0.0
  %2333 = vmatpush2.msra.mxu0 0.0
  %2334 = vmatprep.subr.mxu0 0.0
  %2335 = vmatpush2.msra.mxu0 0.0
  %2336 = vmatprep.subr.mxu0 0.0
  %2337 = vmatpush2.msra.mxu0 0.0
  %2338 = vmatprep.subr.mxu0 0.0
  %2339 = vmatpush2.msra.mxu0 0.0
  %2340 = vmatprep.mubr.f32.mxu0 0.0
  %2341 = vmatmul.mubr.f32.gmra.mxu0 %v2271
  %v2342 = vpop.f32.mrf.mxu0
  %v2343 = vadd.f32 0.0, %v2342
  %v2344 = vpop.f32.mrf.mxu0
  %2345 = vmatprep.mubr.f32.mxu0 0.0
  %2346 = vmatmul.mubr.f32.gmra.mxu0 %v2274
  %v2347 = vpop.f32.mrf.mxu0
  %v2348 = vadd.f32 0.0, %v2347
  %v2349 = vpop.f32.mrf.mxu0
  %2350 = vdwg.mxu0
  %v2351 = vadd.f32 %v2179, %v2343
  %v2352 = vadd.f32 %v2180, %v2348
  %v2353 = vld [vmem:[%s9] sm:$0xff]
  %v2354 = vld [vmem:[%s9 + $0x8] sm:$0xff]
  %2356 = vset.pattern.permute.xlu0 0
  %2357 = vperm.xlu0 %2356, %v2353
  %v2358 = vpop.permute.xlu0 %2357
  %2361 = vset.pattern.permute.xlu0 0
  %2362 = vperm.xlu0 %2361, %v2354
  %v2363 = vpop.permute.xlu0 %2362
  %v2365 = vadd.f32 %v2351, %v2358
  %v2366 = vadd.f32 %v2352, %v2363
  %v2367 = vmax.f32 %v2365, 0.0
  %v2368 = vmax.f32 %v2366, 0.0
  %v2369 = vld [vmem:[%s10] sm:$0xff]
  %v2370 = vld [vmem:[%s11] sm:$0xff]
  %v2371 = vld [vmem:[%s11 + $0x8] sm:$0xff]
  %v2372 = vld [vmem:[%s11 + $0x10] sm:$0xff]
  %v2373 = vld [vmem:[%s11 + $0x18] sm:$0xff]
  %v2374 = vld [vmem:[%s11 + $0x20] sm:$0xff]
  %v2375 = vld [vmem:[%s11 + $0x28] sm:$0xff]
  %v2376 = vld [vmem:[%s11 + $0x30] sm:$0xff]
  %v2377 = vld [vmem:[%s11 + $0x38] sm:$0xff]
  %v2378 = vunpack.c.l.bf16 %v2370
  %v2379 = vunpack.c.h.bf16 %v2370
  %v2380 = vunpack.c.l.bf16 %v2371
  %v2381 = vunpack.c.h.bf16 %v2371
  %v2382 = vunpack.c.l.bf16 %v2372
  %v2383 = vunpack.c.h.bf16 %v2372
  %v2384 = vunpack.c.l.bf16 %v2373
  %v2385 = vunpack.c.h.bf16 %v2373
  %v2386 = vunpack.c.l.bf16 %v2374
  %v2387 = vunpack.c.h.bf16 %v2374
  %v2388 = vunpack.c.l.bf16 %v2375
  %v2389 = vunpack.c.h.bf16 %v2375
  %v2390 = vunpack.c.l.bf16 %v2376
  %v2391 = vunpack.c.h.bf16 %v2376
  %v2392 = vunpack.c.l.bf16 %v2377
  %v2393 = vunpack.c.h.bf16 %v2377
  %v2395 = vsel %vm1136, %v2369, 0
  %2397 = vmatprep.subr.mxu0 0.0
  %2398 = vmatpush1.msra.mxu0 0.0
  %2399 = vmatprep.subr.mxu0 0.0
  %2400 = vmatpush1.msra.mxu0 0.0
  %2401 = vmatprep.subr.mxu0 0.0
  %2402 = vmatpush1.msra.mxu0 0.0
  %2403 = vmatprep.subr.mxu0 0.0
  %2404 = vmatpush1.msra.mxu0 0.0
  %2405 = vmatprep.subr.mxu0 0.0
  %2406 = vmatpush1.msra.mxu0 0.0
  %2407 = vmatprep.subr.mxu0 0.0
  %2408 = vmatpush1.msra.mxu0 0.0
  %2409 = vmatprep.subr.mxu0 0.0
  %2410 = vmatpush1.msra.mxu0 0.0
  %2411 = vmatprep.subr.mxu0 0.0
  %2412 = vmatpush1.msra.mxu0 0.0
  %2413 = vmatprep.subr.mxu0 0.0
  %2414 = vmatpush1.msra.mxu0 0.0
  %2415 = vmatprep.subr.mxu0 0.0
  %2416 = vmatpush1.msra.mxu0 0.0
  %2417 = vmatprep.subr.mxu0 0.0
  %2418 = vmatpush1.msra.mxu0 0.0
  %2419 = vmatprep.subr.mxu0 0.0
  %2420 = vmatpush1.msra.mxu0 0.0
  %2421 = vmatprep.subr.mxu0 0.0
  %2422 = vmatpush1.msra.mxu0 0.0
  %2423 = vmatprep.subr.mxu0 0.0
  %2424 = vmatpush1.msra.mxu0 0.0
  %2425 = vmatprep.subr.mxu0 0.0
  %2426 = vmatpush1.msra.mxu0 %v2368
  %2427 = vmatprep.subr.mxu0 0.0
  %2428 = vmatpush1.msra.mxu0 %v2367
  %2429 = vmatprep.subr.mxu0 0.0
  %2430 = vmatpush2.msra.mxu0 0.0
  %2431 = vmatprep.subr.mxu0 0.0
  %2432 = vmatpush2.msra.mxu0 0.0
  %2433 = vmatprep.subr.mxu0 0.0
  %2434 = vmatpush2.msra.mxu0 0.0
  %2435 = vmatprep.subr.mxu0 0.0
  %2436 = vmatpush2.msra.mxu0 0.0
  %2437 = vmatprep.subr.mxu0 0.0
  %2438 = vmatpush2.msra.mxu0 0.0
  %2439 = vmatprep.subr.mxu0 0.0
  %2440 = vmatpush2.msra.mxu0 0.0
  %2441 = vmatprep.subr.mxu0 0.0
  %2442 = vmatpush2.msra.mxu0 0.0
  %2443 = vmatprep.subr.mxu0 0.0
  %2444 = vmatpush2.msra.mxu0 0.0
  %2445 = vmatprep.subr.mxu0 0.0
  %2446 = vmatpush2.msra.mxu0 0.0
  %2447 = vmatprep.subr.mxu0 0.0
  %2448 = vmatpush2.msra.mxu0 0.0
  %2449 = vmatprep.subr.mxu0 0.0
  %2450 = vmatpush2.msra.mxu0 0.0
  %2451 = vmatprep.subr.mxu0 0.0
  %2452 = vmatpush2.msra.mxu0 0.0
  %2453 = vmatprep.subr.mxu0 0.0
  %2454 = vmatpush2.msra.mxu0 0.0
  %2455 = vmatprep.subr.mxu0 0.0
  %2456 = vmatpush2.msra.mxu0 0.0
  %2457 = vmatprep.subr.mxu0 0.0
  %2458 = vmatpush2.msra.mxu0 0.0
  %2459 = vmatprep.subr.mxu0 0.0
  %2460 = vmatpush2.msra.mxu0 0.0
  %2461 = vmatprep.mubr.f32.mxu0 0.0
  %2462 = vmatmul.mubr.f32.gmra.mxu0 %v2395
  %v2463 = vpop.f32.mrf.mxu0
  %v2464 = vadd.f32 0.0, %v2463
  %v2465 = vpop.f32.mrf.mxu0
  %2466 = vdwg.mxu0
  %s2467 = scalar_lea.vmem %s10, 8
  %v2468 = vld [vmem:[%s2467] sm:$0xff]
  %s2469 = scalar_lea.vmem %s11, 64
  %v2470 = vld [vmem:[%s2469] sm:$0xff]
  %v2471 = vld [vmem:[%s2469 + $0x8] sm:$0xff]
  %v2472 = vld [vmem:[%s2469 + $0x10] sm:$0xff]
  %v2473 = vld [vmem:[%s2469 + $0x18] sm:$0xff]
  %v2474 = vld [vmem:[%s2469 + $0x20] sm:$0xff]
  %v2475 = vld [vmem:[%s2469 + $0x28] sm:$0xff]
  %v2476 = vld [vmem:[%s2469 + $0x30] sm:$0xff]
  %v2477 = vld [vmem:[%s2469 + $0x38] sm:$0xff]
  %v2478 = vunpack.c.l.bf16 %v2470
  %v2479 = vunpack.c.h.bf16 %v2470
  %v2480 = vunpack.c.l.bf16 %v2471
  %v2481 = vunpack.c.h.bf16 %v2471
  %v2482 = vunpack.c.l.bf16 %v2472
  %v2483 = vunpack.c.h.bf16 %v2472
  %v2484 = vunpack.c.l.bf16 %v2473
  %v2485 = vunpack.c.h.bf16 %v2473
  %v2486 = vunpack.c.l.bf16 %v2474
  %v2487 = vunpack.c.h.bf16 %v2474
  %v2488 = vunpack.c.l.bf16 %v2475
  %v2489 = vunpack.c.h.bf16 %v2475
  %v2490 = vunpack.c.l.bf16 %v2476
  %v2491 = vunpack.c.h.bf16 %v2476
  %v2492 = vunpack.c.l.bf16 %v2477
  %v2493 = vunpack.c.h.bf16 %v2477
  %v2495 = vsel %vm1136, %v2468, 0
  %2497 = vmatprep.subr.mxu0 0.0
  %2498 = vmatpush1.msra.mxu0 0.0
  %2499 = vmatprep.subr.mxu0 0.0
  %2500 = vmatpush1.msra.mxu0 0.0
  %2501 = vmatprep.subr.mxu0 0.0
  %2502 = vmatpush1.msra.mxu0 0.0
  %2503 = vmatprep.subr.mxu0 0.0
  %2504 = vmatpush1.msra.mxu0 0.0
  %2505 = vmatprep.subr.mxu0 0.0
  %2506 = vmatpush1.msra.mxu0 0.0
  %2507 = vmatprep.subr.mxu0 0.0
  %2508 = vmatpush1.msra.mxu0 0.0
  %2509 = vmatprep.subr.mxu0 0.0
  %2510 = vmatpush1.msra.mxu0 0.0
  %2511 = vmatprep.subr.mxu0 0.0
  %2512 = vmatpush1.msra.mxu0 0.0
  %2513 = vmatprep.subr.mxu0 0.0
  %2514 = vmatpush1.msra.mxu0 0.0
  %2515 = vmatprep.subr.mxu0 0.0
  %2516 = vmatpush1.msra.mxu0 0.0
  %2517 = vmatprep.subr.mxu0 0.0
  %2518 = vmatpush1.msra.mxu0 0.0
  %2519 = vmatprep.subr.mxu0 0.0
  %2520 = vmatpush1.msra.mxu0 0.0
  %2521 = vmatprep.subr.mxu0 0.0
  %2522 = vmatpush1.msra.mxu0 0.0
  %2523 = vmatprep.subr.mxu0 0.0
  %2524 = vmatpush1.msra.mxu0 0.0
  %2525 = vmatprep.subr.mxu0 0.0
  %2526 = vmatpush1.msra.mxu0 %v2368
  %2527 = vmatprep.subr.mxu0 0.0
  %2528 = vmatpush1.msra.mxu0 %v2367
  %2529 = vmatprep.subr.mxu0 0.0
  %2530 = vmatpush2.msra.mxu0 0.0
  %2531 = vmatprep.subr.mxu0 0.0
  %2532 = vmatpush2.msra.mxu0 0.0
  %2533 = vmatprep.subr.mxu0 0.0
  %2534 = vmatpush2.msra.mxu0 0.0
  %2535 = vmatprep.subr.mxu0 0.0
  %2536 = vmatpush2.msra.mxu0 0.0
  %2537 = vmatprep.subr.mxu0 0.0
  %2538 = vmatpush2.msra.mxu0 0.0
  %2539 = vmatprep.subr.mxu0 0.0
  %2540 = vmatpush2.msra.mxu0 0.0
  %2541 = vmatprep.subr.mxu0 0.0
  %2542 = vmatpush2.msra.mxu0 0.0
  %2543 = vmatprep.subr.mxu0 0.0
  %2544 = vmatpush2.msra.mxu0 0.0
  %2545 = vmatprep.subr.mxu0 0.0
  %2546 = vmatpush2.msra.mxu0 0.0
  %2547 = vmatprep.subr.mxu0 0.0
  %2548 = vmatpush2.msra.mxu0 0.0
  %2549 = vmatprep.subr.mxu0 0.0
  %2550 = vmatpush2.msra.mxu0 0.0
  %2551 = vmatprep.subr.mxu0 0.0
  %2552 = vmatpush2.msra.mxu0 0.0
  %2553 = vmatprep.subr.mxu0 0.0
  %2554 = vmatpush2.msra.mxu0 0.0
  %2555 = vmatprep.subr.mxu0 0.0
  %2556 = vmatpush2.msra.mxu0 0.0
  %2557 = vmatprep.subr.mxu0 0.0
  %2558 = vmatpush2.msra.mxu0 0.0
  %2559 = vmatprep.subr.mxu0 0.0
  %2560 = vmatpush2.msra.mxu0 0.0
  %2561 = vmatprep.mubr.f32.mxu0 0.0
  %2562 = vmatmul.mubr.f32.gmra.mxu0 %v2495
  %v2563 = vpop.f32.mrf.mxu0
  %v2564 = vadd.f32 0.0, %v2563
  %v2565 = vpop.f32.mrf.mxu0
  %2566 = vdwg.mxu0
  %v2568 = vsel %vm959, %v2564, 0
  %2570 = vmatprep.subr.mxu0 0.0
  %2571 = vmatpush1.msra.mxu0 0.0
  %2572 = vmatprep.subr.mxu0 0.0
  %2573 = vmatpush1.msra.mxu0 0.0
  %2574 = vmatprep.subr.mxu0 0.0
  %2575 = vmatpush1.msra.mxu0 0.0
  %2576 = vmatprep.subr.mxu0 0.0
  %2577 = vmatpush1.msra.mxu0 0.0
  %2578 = vmatprep.subr.mxu0 0.0
  %2579 = vmatpush1.msra.mxu0 0.0
  %2580 = vmatprep.subr.mxu0 0.0
  %2581 = vmatpush1.msra.mxu0 0.0
  %2582 = vmatprep.subr.mxu0 0.0
  %2583 = vmatpush1.msra.mxu0 0.0
  %2584 = vmatprep.subr.mxu0 0.0
  %2585 = vmatpush1.msra.mxu0 0.0
  %2586 = vmatprep.subr.mxu0 %v2493
  %2587 = vmatpush1.msra.mxu0 %v2492
  %2588 = vmatprep.subr.mxu0 %v2491
  %2589 = vmatpush1.msra.mxu0 %v2490
  %2590 = vmatprep.subr.mxu0 %v2489
  %2591 = vmatpush1.msra.mxu0 %v2488
  %2592 = vmatprep.subr.mxu0 %v2487
  %2593 = vmatpush1.msra.mxu0 %v2486
  %2594 = vmatprep.subr.mxu0 %v2485
  %2595 = vmatpush1.msra.mxu0 %v2484
  %2596 = vmatprep.subr.mxu0 %v2483
  %2597 = vmatpush1.msra.mxu0 %v2482
  %2598 = vmatprep.subr.mxu0 %v2481
  %2599 = vmatpush1.msra.mxu0 %v2480
  %2600 = vmatprep.subr.mxu0 %v2479
  %2601 = vmatpush1.msra.mxu0 %v2478
  %2602 = vmatprep.subr.mxu0 0.0
  %2603 = vmatpush2.msra.mxu0 0.0
  %2604 = vmatprep.subr.mxu0 0.0
  %2605 = vmatpush2.msra.mxu0 0.0
  %2606 = vmatprep.subr.mxu0 0.0
  %2607 = vmatpush2.msra.mxu0 0.0
  %2608 = vmatprep.subr.mxu0 0.0
  %2609 = vmatpush2.msra.mxu0 0.0
  %2610 = vmatprep.subr.mxu0 0.0
  %2611 = vmatpush2.msra.mxu0 0.0
  %2612 = vmatprep.subr.mxu0 0.0
  %2613 = vmatpush2.msra.mxu0 0.0
  %2614 = vmatprep.subr.mxu0 0.0
  %2615 = vmatpush2.msra.mxu0 0.0
  %2616 = vmatprep.subr.mxu0 0.0
  %2617 = vmatpush2.msra.mxu0 0.0
  %2618 = vmatprep.subr.mxu0 0.0
  %2619 = vmatpush2.msra.mxu0 0.0
  %2620 = vmatprep.subr.mxu0 0.0
  %2621 = vmatpush2.msra.mxu0 0.0
  %2622 = vmatprep.subr.mxu0 0.0
  %2623 = vmatpush2.msra.mxu0 0.0
  %2624 = vmatprep.subr.mxu0 0.0
  %2625 = vmatpush2.msra.mxu0 0.0
  %2626 = vmatprep.subr.mxu0 0.0
  %2627 = vmatpush2.msra.mxu0 0.0
  %2628 = vmatprep.subr.mxu0 0.0
  %2629 = vmatpush2.msra.mxu0 0.0
  %2630 = vmatprep.subr.mxu0 0.0
  %2631 = vmatpush2.msra.mxu0 0.0
  %2632 = vmatprep.subr.mxu0 0.0
  %2633 = vmatpush2.msra.mxu0 0.0
  %2634 = vmatprep.mubr.f32.mxu0 0.0
  %2635 = vmatmul.mubr.f32.gmra.mxu0 %v2568
  %v2636 = vpop.f32.mrf.mxu0
  %v2637 = vadd.f32 0.0, %v2636
  %v2638 = vpop.f32.mrf.mxu0
  %v2639 = vadd.f32 0.0, %v2638
  %2640 = vdwg.mxu0
  %v2642 = vsel %vm959, %v2464, 0
  %2644 = vmatprep.subr.mxu0 0.0
  %2645 = vmatpush1.msra.mxu0 0.0
  %2646 = vmatprep.subr.mxu0 0.0
  %2647 = vmatpush1.msra.mxu0 0.0
  %2648 = vmatprep.subr.mxu0 0.0
  %2649 = vmatpush1.msra.mxu0 0.0
  %2650 = vmatprep.subr.mxu0 0.0
  %2651 = vmatpush1.msra.mxu0 0.0
  %2652 = vmatprep.subr.mxu0 0.0
  %2653 = vmatpush1.msra.mxu0 0.0
  %2654 = vmatprep.subr.mxu0 0.0
  %2655 = vmatpush1.msra.mxu0 0.0
  %2656 = vmatprep.subr.mxu0 0.0
  %2657 = vmatpush1.msra.mxu0 0.0
  %2658 = vmatprep.subr.mxu0 0.0
  %2659 = vmatpush1.msra.mxu0 0.0
  %2660 = vmatprep.subr.mxu0 %v2393
  %2661 = vmatpush1.msra.mxu0 %v2392
  %2662 = vmatprep.subr.mxu0 %v2391
  %2663 = vmatpush1.msra.mxu0 %v2390
  %2664 = vmatprep.subr.mxu0 %v2389
  %2665 = vmatpush1.msra.mxu0 %v2388
  %2666 = vmatprep.subr.mxu0 %v2387
  %2667 = vmatpush1.msra.mxu0 %v2386
  %2668 = vmatprep.subr.mxu0 %v2385
  %2669 = vmatpush1.msra.mxu0 %v2384
  %2670 = vmatprep.subr.mxu0 %v2383
  %2671 = vmatpush1.msra.mxu0 %v2382
  %2672 = vmatprep.subr.mxu0 %v2381
  %2673 = vmatpush1.msra.mxu0 %v2380
  %2674 = vmatprep.subr.mxu0 %v2379
  %2675 = vmatpush1.msra.mxu0 %v2378
  %2676 = vmatprep.subr.mxu0 0.0
  %2677 = vmatpush2.msra.mxu0 0.0
  %2678 = vmatprep.subr.mxu0 0.0
  %2679 = vmatpush2.msra.mxu0 0.0
  %2680 = vmatprep.subr.mxu0 0.0
  %2681 = vmatpush2.msra.mxu0 0.0
  %2682 = vmatprep.subr.mxu0 0.0
  %2683 = vmatpush2.msra.mxu0 0.0
  %2684 = vmatprep.subr.mxu0 0.0
  %2685 = vmatpush2.msra.mxu0 0.0
  %2686 = vmatprep.subr.mxu0 0.0
  %2687 = vmatpush2.msra.mxu0 0.0
  %2688 = vmatprep.subr.mxu0 0.0
  %2689 = vmatpush2.msra.mxu0 0.0
  %2690 = vmatprep.subr.mxu0 0.0
  %2691 = vmatpush2.msra.mxu0 0.0
  %2692 = vmatprep.subr.mxu0 0.0
  %2693 = vmatpush2.msra.mxu0 0.0
  %2694 = vmatprep.subr.mxu0 0.0
  %2695 = vmatpush2.msra.mxu0 0.0
  %2696 = vmatprep.subr.mxu0 0.0
  %2697 = vmatpush2.msra.mxu0 0.0
  %2698 = vmatprep.subr.mxu0 0.0
  %2699 = vmatpush2.msra.mxu0 0.0
  %2700 = vmatprep.subr.mxu0 0.0
  %2701 = vmatpush2.msra.mxu0 0.0
  %2702 = vmatprep.subr.mxu0 0.0
  %2703 = vmatpush2.msra.mxu0 0.0
  %2704 = vmatprep.subr.mxu0 0.0
  %2705 = vmatpush2.msra.mxu0 0.0
  %2706 = vmatprep.subr.mxu0 0.0
  %2707 = vmatpush2.msra.mxu0 0.0
  %2708 = vmatprep.mubr.f32.mxu0 0.0
  %2709 = vmatmul.mubr.f32.gmra.mxu0 %v2642
  %v2710 = vpop.f32.mrf.mxu0
  %v2711 = vadd.f32 %v2637, %v2710
  %v2712 = vpop.f32.mrf.mxu0
  %v2713 = vadd.f32 %v2639, %v2712
  %2714 = vdwg.mxu0
  %s2715 = scalar_lea.vmem %s10, 16
  %v2716 = vld [vmem:[%s2715] sm:$0xff]
  %s2717 = scalar_lea.vmem %s11, 128
  %v2718 = vld [vmem:[%s2717] sm:$0xff]
  %v2719 = vld [vmem:[%s2717 + $0x8] sm:$0xff]
  %v2720 = vld [vmem:[%s2717 + $0x10] sm:$0xff]
  %v2721 = vld [vmem:[%s2717 + $0x18] sm:$0xff]
  %v2722 = vld [vmem:[%s2717 + $0x20] sm:$0xff]
  %v2723 = vld [vmem:[%s2717 + $0x28] sm:$0xff]
  %v2724 = vld [vmem:[%s2717 + $0x30] sm:$0xff]
  %v2725 = vld [vmem:[%s2717 + $0x38] sm:$0xff]
  %v2726 = vunpack.c.l.bf16 %v2718
  %v2727 = vunpack.c.h.bf16 %v2718
  %v2728 = vunpack.c.l.bf16 %v2719
  %v2729 = vunpack.c.h.bf16 %v2719
  %v2730 = vunpack.c.l.bf16 %v2720
  %v2731 = vunpack.c.h.bf16 %v2720
  %v2732 = vunpack.c.l.bf16 %v2721
  %v2733 = vunpack.c.h.bf16 %v2721
  %v2734 = vunpack.c.l.bf16 %v2722
  %v2735 = vunpack.c.h.bf16 %v2722
  %v2736 = vunpack.c.l.bf16 %v2723
  %v2737 = vunpack.c.h.bf16 %v2723
  %v2738 = vunpack.c.l.bf16 %v2724
  %v2739 = vunpack.c.h.bf16 %v2724
  %v2740 = vunpack.c.l.bf16 %v2725
  %v2741 = vunpack.c.h.bf16 %v2725
  %v2743 = vsel %vm1136, %v2716, 0
  %2745 = vmatprep.subr.mxu0 0.0
  %2746 = vmatpush1.msra.mxu0 0.0
  %2747 = vmatprep.subr.mxu0 0.0
  %2748 = vmatpush1.msra.mxu0 0.0
  %2749 = vmatprep.subr.mxu0 0.0
  %2750 = vmatpush1.msra.mxu0 0.0
  %2751 = vmatprep.subr.mxu0 0.0
  %2752 = vmatpush1.msra.mxu0 0.0
  %2753 = vmatprep.subr.mxu0 0.0
  %2754 = vmatpush1.msra.mxu0 0.0
  %2755 = vmatprep.subr.mxu0 0.0
  %2756 = vmatpush1.msra.mxu0 0.0
  %2757 = vmatprep.subr.mxu0 0.0
  %2758 = vmatpush1.msra.mxu0 0.0
  %2759 = vmatprep.subr.mxu0 0.0
  %2760 = vmatpush1.msra.mxu0 0.0
  %2761 = vmatprep.subr.mxu0 0.0
  %2762 = vmatpush1.msra.mxu0 0.0
  %2763 = vmatprep.subr.mxu0 0.0
  %2764 = vmatpush1.msra.mxu0 0.0
  %2765 = vmatprep.subr.mxu0 0.0
  %2766 = vmatpush1.msra.mxu0 0.0
  %2767 = vmatprep.subr.mxu0 0.0
  %2768 = vmatpush1.msra.mxu0 0.0
  %2769 = vmatprep.subr.mxu0 0.0
  %2770 = vmatpush1.msra.mxu0 0.0
  %2771 = vmatprep.subr.mxu0 0.0
  %2772 = vmatpush1.msra.mxu0 0.0
  %2773 = vmatprep.subr.mxu0 0.0
  %2774 = vmatpush1.msra.mxu0 %v2368
  %2775 = vmatprep.subr.mxu0 0.0
  %2776 = vmatpush1.msra.mxu0 %v2367
  %2777 = vmatprep.subr.mxu0 0.0
  %2778 = vmatpush2.msra.mxu0 0.0
  %2779 = vmatprep.subr.mxu0 0.0
  %2780 = vmatpush2.msra.mxu0 0.0
  %2781 = vmatprep.subr.mxu0 0.0
  %2782 = vmatpush2.msra.mxu0 0.0
  %2783 = vmatprep.subr.mxu0 0.0
  %2784 = vmatpush2.msra.mxu0 0.0
  %2785 = vmatprep.subr.mxu0 0.0
  %2786 = vmatpush2.msra.mxu0 0.0
  %2787 = vmatprep.subr.mxu0 0.0
  %2788 = vmatpush2.msra.mxu0 0.0
  %2789 = vmatprep.subr.mxu0 0.0
  %2790 = vmatpush2.msra.mxu0 0.0
  %2791 = vmatprep.subr.mxu0 0.0
  %2792 = vmatpush2.msra.mxu0 0.0
  %2793 = vmatprep.subr.mxu0 0.0
  %2794 = vmatpush2.msra.mxu0 0.0
  %2795 = vmatprep.subr.mxu0 0.0
  %2796 = vmatpush2.msra.mxu0 0.0
  %2797 = vmatprep.subr.mxu0 0.0
  %2798 = vmatpush2.msra.mxu0 0.0
  %2799 = vmatprep.subr.mxu0 0.0
  %2800 = vmatpush2.msra.mxu0 0.0
  %2801 = vmatprep.subr.mxu0 0.0
  %2802 = vmatpush2.msra.mxu0 0.0
  %2803 = vmatprep.subr.mxu0 0.0
  %2804 = vmatpush2.msra.mxu0 0.0
  %2805 = vmatprep.subr.mxu0 0.0
  %2806 = vmatpush2.msra.mxu0 0.0
  %2807 = vmatprep.subr.mxu0 0.0
  %2808 = vmatpush2.msra.mxu0 0.0
  %2809 = vmatprep.mubr.f32.mxu0 0.0
  %2810 = vmatmul.mubr.f32.gmra.mxu0 %v2743
  %v2811 = vpop.f32.mrf.mxu0
  %v2812 = vadd.f32 0.0, %v2811
  %v2813 = vpop.f32.mrf.mxu0
  %2814 = vdwg.mxu0
  %v2816 = vsel %vm959, %v2812, 0
  %2818 = vmatprep.subr.mxu0 0.0
  %2819 = vmatpush1.msra.mxu0 0.0
  %2820 = vmatprep.subr.mxu0 0.0
  %2821 = vmatpush1.msra.mxu0 0.0
  %2822 = vmatprep.subr.mxu0 0.0
  %2823 = vmatpush1.msra.mxu0 0.0
  %2824 = vmatprep.subr.mxu0 0.0
  %2825 = vmatpush1.msra.mxu0 0.0
  %2826 = vmatprep.subr.mxu0 0.0
  %2827 = vmatpush1.msra.mxu0 0.0
  %2828 = vmatprep.subr.mxu0 0.0
  %2829 = vmatpush1.msra.mxu0 0.0
  %2830 = vmatprep.subr.mxu0 0.0
  %2831 = vmatpush1.msra.mxu0 0.0
  %2832 = vmatprep.subr.mxu0 0.0
  %2833 = vmatpush1.msra.mxu0 0.0
  %2834 = vmatprep.subr.mxu0 %v2741
  %2835 = vmatpush1.msra.mxu0 %v2740
  %2836 = vmatprep.subr.mxu0 %v2739
  %2837 = vmatpush1.msra.mxu0 %v2738
  %2838 = vmatprep.subr.mxu0 %v2737
  %2839 = vmatpush1.msra.mxu0 %v2736
  %2840 = vmatprep.subr.mxu0 %v2735
  %2841 = vmatpush1.msra.mxu0 %v2734
  %2842 = vmatprep.subr.mxu0 %v2733
  %2843 = vmatpush1.msra.mxu0 %v2732
  %2844 = vmatprep.subr.mxu0 %v2731
  %2845 = vmatpush1.msra.mxu0 %v2730
  %2846 = vmatprep.subr.mxu0 %v2729
  %2847 = vmatpush1.msra.mxu0 %v2728
  %2848 = vmatprep.subr.mxu0 %v2727
  %2849 = vmatpush1.msra.mxu0 %v2726
  %2850 = vmatprep.subr.mxu0 0.0
  %2851 = vmatpush2.msra.mxu0 0.0
  %2852 = vmatprep.subr.mxu0 0.0
  %2853 = vmatpush2.msra.mxu0 0.0
  %2854 = vmatprep.subr.mxu0 0.0
  %2855 = vmatpush2.msra.mxu0 0.0
  %2856 = vmatprep.subr.mxu0 0.0
  %2857 = vmatpush2.msra.mxu0 0.0
  %2858 = vmatprep.subr.mxu0 0.0
  %2859 = vmatpush2.msra.mxu0 0.0
  %2860 = vmatprep.subr.mxu0 0.0
  %2861 = vmatpush2.msra.mxu0 0.0
  %2862 = vmatprep.subr.mxu0 0.0
  %2863 = vmatpush2.msra.mxu0 0.0
  %2864 = vmatprep.subr.mxu0 0.0
  %2865 = vmatpush2.msra.mxu0 0.0
  %2866 = vmatprep.subr.mxu0 0.0
  %2867 = vmatpush2.msra.mxu0 0.0
  %2868 = vmatprep.subr.mxu0 0.0
  %2869 = vmatpush2.msra.mxu0 0.0
  %2870 = vmatprep.subr.mxu0 0.0
  %2871 = vmatpush2.msra.mxu0 0.0
  %2872 = vmatprep.subr.mxu0 0.0
  %2873 = vmatpush2.msra.mxu0 0.0
  %2874 = vmatprep.subr.mxu0 0.0
  %2875 = vmatpush2.msra.mxu0 0.0
  %2876 = vmatprep.subr.mxu0 0.0
  %2877 = vmatpush2.msra.mxu0 0.0
  %2878 = vmatprep.subr.mxu0 0.0
  %2879 = vmatpush2.msra.mxu0 0.0
  %2880 = vmatprep.subr.mxu0 0.0
  %2881 = vmatpush2.msra.mxu0 0.0
  %2882 = vmatprep.mubr.f32.mxu0 0.0
  %2883 = vmatmul.mubr.f32.gmra.mxu0 %v2816
  %v2884 = vpop.f32.mrf.mxu0
  %v2885 = vadd.f32 0.0, %v2884
  %v2886 = vpop.f32.mrf.mxu0
  %v2887 = vadd.f32 0.0, %v2886
  %2888 = vdwg.mxu0
  %v2889 = vadd.f32 %v2711, %v2885
  %v2890 = vadd.f32 %v2713, %v2887
  %s2891 = scalar_lea.vmem %s10, 24
  %v2892 = vld [vmem:[%s2891] sm:$0xff]
  %s2893 = scalar_lea.vmem %s11, 192
  %v2894 = vld [vmem:[%s2893] sm:$0xff]
  %v2895 = vld [vmem:[%s2893 + $0x8] sm:$0xff]
  %v2896 = vld [vmem:[%s2893 + $0x10] sm:$0xff]
  %v2897 = vld [vmem:[%s2893 + $0x18] sm:$0xff]
  %v2898 = vld [vmem:[%s2893 + $0x20] sm:$0xff]
  %v2899 = vld [vmem:[%s2893 + $0x28] sm:$0xff]
  %v2900 = vld [vmem:[%s2893 + $0x30] sm:$0xff]
  %v2901 = vld [vmem:[%s2893 + $0x38] sm:$0xff]
  %v2902 = vunpack.c.l.bf16 %v2894
  %v2903 = vunpack.c.h.bf16 %v2894
  %v2904 = vunpack.c.l.bf16 %v2895
  %v2905 = vunpack.c.h.bf16 %v2895
  %v2906 = vunpack.c.l.bf16 %v2896
  %v2907 = vunpack.c.h.bf16 %v2896
  %v2908 = vunpack.c.l.bf16 %v2897
  %v2909 = vunpack.c.h.bf16 %v2897
  %v2910 = vunpack.c.l.bf16 %v2898
  %v2911 = vunpack.c.h.bf16 %v2898
  %v2912 = vunpack.c.l.bf16 %v2899
  %v2913 = vunpack.c.h.bf16 %v2899
  %v2914 = vunpack.c.l.bf16 %v2900
  %v2915 = vunpack.c.h.bf16 %v2900
  %v2916 = vunpack.c.l.bf16 %v2901
  %v2917 = vunpack.c.h.bf16 %v2901
  %v2919 = vsel %vm1136, %v2892, 0
  %2921 = vmatprep.subr.mxu0 0.0
  %2922 = vmatpush1.msra.mxu0 0.0
  %2923 = vmatprep.subr.mxu0 0.0
  %2924 = vmatpush1.msra.mxu0 0.0
  %2925 = vmatprep.subr.mxu0 0.0
  %2926 = vmatpush1.msra.mxu0 0.0
  %2927 = vmatprep.subr.mxu0 0.0
  %2928 = vmatpush1.msra.mxu0 0.0
  %2929 = vmatprep.subr.mxu0 0.0
  %2930 = vmatpush1.msra.mxu0 0.0
  %2931 = vmatprep.subr.mxu0 0.0
  %2932 = vmatpush1.msra.mxu0 0.0
  %2933 = vmatprep.subr.mxu0 0.0
  %2934 = vmatpush1.msra.mxu0 0.0
  %2935 = vmatprep.subr.mxu0 0.0
  %2936 = vmatpush1.msra.mxu0 0.0
  %2937 = vmatprep.subr.mxu0 0.0
  %2938 = vmatpush1.msra.mxu0 0.0
  %2939 = vmatprep.subr.mxu0 0.0
  %2940 = vmatpush1.msra.mxu0 0.0
  %2941 = vmatprep.subr.mxu0 0.0
  %2942 = vmatpush1.msra.mxu0 0.0
  %2943 = vmatprep.subr.mxu0 0.0
  %2944 = vmatpush1.msra.mxu0 0.0
  %2945 = vmatprep.subr.mxu0 0.0
  %2946 = vmatpush1.msra.mxu0 0.0
  %2947 = vmatprep.subr.mxu0 0.0
  %2948 = vmatpush1.msra.mxu0 0.0
  %2949 = vmatprep.subr.mxu0 0.0
  %2950 = vmatpush1.msra.mxu0 %v2368
  %2951 = vmatprep.subr.mxu0 0.0
  %2952 = vmatpush1.msra.mxu0 %v2367
  %2953 = vmatprep.subr.mxu0 0.0
  %2954 = vmatpush2.msra.mxu0 0.0
  %2955 = vmatprep.subr.mxu0 0.0
  %2956 = vmatpush2.msra.mxu0 0.0
  %2957 = vmatprep.subr.mxu0 0.0
  %2958 = vmatpush2.msra.mxu0 0.0
  %2959 = vmatprep.subr.mxu0 0.0
  %2960 = vmatpush2.msra.mxu0 0.0
  %2961 = vmatprep.subr.mxu0 0.0
  %2962 = vmatpush2.msra.mxu0 0.0
  %2963 = vmatprep.subr.mxu0 0.0
  %2964 = vmatpush2.msra.mxu0 0.0
  %2965 = vmatprep.subr.mxu0 0.0
  %2966 = vmatpush2.msra.mxu0 0.0
  %2967 = vmatprep.subr.mxu0 0.0
  %2968 = vmatpush2.msra.mxu0 0.0
  %2969 = vmatprep.subr.mxu0 0.0
  %2970 = vmatpush2.msra.mxu0 0.0
  %2971 = vmatprep.subr.mxu0 0.0
  %2972 = vmatpush2.msra.mxu0 0.0
  %2973 = vmatprep.subr.mxu0 0.0
  %2974 = vmatpush2.msra.mxu0 0.0
  %2975 = vmatprep.subr.mxu0 0.0
  %2976 = vmatpush2.msra.mxu0 0.0
  %2977 = vmatprep.subr.mxu0 0.0
  %2978 = vmatpush2.msra.mxu0 0.0
  %2979 = vmatprep.subr.mxu0 0.0
  %2980 = vmatpush2.msra.mxu0 0.0
  %2981 = vmatprep.subr.mxu0 0.0
  %2982 = vmatpush2.msra.mxu0 0.0
  %2983 = vmatprep.subr.mxu0 0.0
  %2984 = vmatpush2.msra.mxu0 0.0
  %2985 = vmatprep.mubr.f32.mxu0 0.0
  %2986 = vmatmul.mubr.f32.gmra.mxu0 %v2919
  %v2987 = vpop.f32.mrf.mxu0
  %v2988 = vadd.f32 0.0, %v2987
  %v2989 = vpop.f32.mrf.mxu0
  %2990 = vdwg.mxu0
  %v2992 = vsel %vm959, %v2988, 0
  %2994 = vmatprep.subr.mxu0 0.0
  %2995 = vmatpush1.msra.mxu0 0.0
  %2996 = vmatprep.subr.mxu0 0.0
  %2997 = vmatpush1.msra.mxu0 0.0
  %2998 = vmatprep.subr.mxu0 0.0
  %2999 = vmatpush1.msra.mxu0 0.0
  %3000 = vmatprep.subr.mxu0 0.0
  %3001 = vmatpush1.msra.mxu0 0.0
  %3002 = vmatprep.subr.mxu0 0.0
  %3003 = vmatpush1.msra.mxu0 0.0
  %3004 = vmatprep.subr.mxu0 0.0
  %3005 = vmatpush1.msra.mxu0 0.0
  %3006 = vmatprep.subr.mxu0 0.0
  %3007 = vmatpush1.msra.mxu0 0.0
  %3008 = vmatprep.subr.mxu0 0.0
  %3009 = vmatpush1.msra.mxu0 0.0
  %3010 = vmatprep.subr.mxu0 %v2917
  %3011 = vmatpush1.msra.mxu0 %v2916
  %3012 = vmatprep.subr.mxu0 %v2915
  %3013 = vmatpush1.msra.mxu0 %v2914
  %3014 = vmatprep.subr.mxu0 %v2913
  %3015 = vmatpush1.msra.mxu0 %v2912
  %3016 = vmatprep.subr.mxu0 %v2911
  %3017 = vmatpush1.msra.mxu0 %v2910
  %3018 = vmatprep.subr.mxu0 %v2909
  %3019 = vmatpush1.msra.mxu0 %v2908
  %3020 = vmatprep.subr.mxu0 %v2907
  %3021 = vmatpush1.msra.mxu0 %v2906
  %3022 = vmatprep.subr.mxu0 %v2905
  %3023 = vmatpush1.msra.mxu0 %v2904
  %3024 = vmatprep.subr.mxu0 %v2903
  %3025 = vmatpush1.msra.mxu0 %v2902
  %3026 = vmatprep.subr.mxu0 0.0
  %3027 = vmatpush2.msra.mxu0 0.0
  %3028 = vmatprep.subr.mxu0 0.0
  %3029 = vmatpush2.msra.mxu0 0.0
  %3030 = vmatprep.subr.mxu0 0.0
  %3031 = vmatpush2.msra.mxu0 0.0
  %3032 = vmatprep.subr.mxu0 0.0
  %3033 = vmatpush2.msra.mxu0 0.0
  %3034 = vmatprep.subr.mxu0 0.0
  %3035 = vmatpush2.msra.mxu0 0.0
  %3036 = vmatprep.subr.mxu0 0.0
  %3037 = vmatpush2.msra.mxu0 0.0
  %3038 = vmatprep.subr.mxu0 0.0
  %3039 = vmatpush2.msra.mxu0 0.0
  %3040 = vmatprep.subr.mxu0 0.0
  %3041 = vmatpush2.msra.mxu0 0.0
  %3042 = vmatprep.subr.mxu0 0.0
  %3043 = vmatpush2.msra.mxu0 0.0
  %3044 = vmatprep.subr.mxu0 0.0
  %3045 = vmatpush2.msra.mxu0 0.0
  %3046 = vmatprep.subr.mxu0 0.0
  %3047 = vmatpush2.msra.mxu0 0.0
  %3048 = vmatprep.subr.mxu0 0.0
  %3049 = vmatpush2.msra.mxu0 0.0
  %3050 = vmatprep.subr.mxu0 0.0
  %3051 = vmatpush2.msra.mxu0 0.0
  %3052 = vmatprep.subr.mxu0 0.0
  %3053 = vmatpush2.msra.mxu0 0.0
  %3054 = vmatprep.subr.mxu0 0.0
  %3055 = vmatpush2.msra.mxu0 0.0
  %3056 = vmatprep.subr.mxu0 0.0
  %3057 = vmatpush2.msra.mxu0 0.0
  %3058 = vmatprep.mubr.f32.mxu0 0.0
  %3059 = vmatmul.mubr.f32.gmra.mxu0 %v2992
  %v3060 = vpop.f32.mrf.mxu0
  %v3061 = vadd.f32 0.0, %v3060
  %v3062 = vpop.f32.mrf.mxu0
  %v3063 = vadd.f32 0.0, %v3062
  %3064 = vdwg.mxu0
  %v3065 = vadd.f32 %v2889, %v3061
  %v3066 = vadd.f32 %v2890, %v3063
  %v3067 = vld [vmem:[%s12] sm:$0xff]
  %3069 = vset.pattern.permute.xlu0 0
  %3070 = vperm.xlu0 %3069, %v3067
  %v3071 = vpop.permute.xlu0 %3070
  %v3073 = vadd.f32 %v3065, %v3071
  %v3074 = vadd.f32 %v3066, %v3071
  %v3075 = vxor.u32 %v3073, 2147483648
  %v3076 = vxor.u32 %v3074, 2147483648
  %v3077 = vmul.f32 %v3075, 1.442695
  %v3078 = vpow.pop %v3077
  %v3079 = vmul.f32 %v3076, 1.442695
  %v3080 = vpow.pop %v3079
  %v3081 = vadd.f32 %v3078, 1.0
  %v3082 = vadd.f32 %v3080, 1.0
  %v3083 = vrcp.pop %v3081
  %v3084 = vmul.f32 1.0, %v3083
  %v3085 = vrcp.pop %v3082
  %v3086 = vmul.f32 1.0, %v3085
  %3087 = vst [vmem:[%s13] sm:$0xff] %v3084
  %3088 = vst [vmem:[%s13 + $0x8] sm:$0xff] %v3086
  // Predicated region
  $region54: #{run.1} parent=0 // pred_check
    _
  $region55: #{run.1} parent=0 // pred_check_branch
    %3090 = sbr.rel (0) target = $region57
  $region56: #{run.1} parent=0 // pred_region
    _
  $region57: #{run.1} parent=0 // pred_fallthru
    _
  // Predicated region
  $region58: #{run.1} parent=0 // pred_check
    _
  $region59: #{run.1} parent=0 // pred_check_branch
    %3092 = sbr.rel (0) target = $region61
  $region60: #{run.1} parent=0 // pred_region
    _
  $region61: #{run.1} parent=0 // pred_fallthru
    _

</llo_original>
